<compile_context>
chip_gen: v6e
topology: v6e:2x2x1
jax: 0.10.0
libtpu: 0.0.40
codegen_flags: <defaults>
</compile_context>

<pallas_src>
import math

import jax
import jax.numpy as jnp
import numpy as np
from jax import lax
from jax.experimental import pallas as pl
from jax.experimental.pallas import tpu as pltpu

_CONV_PAD = 8      # sublane-aligned halo rows in the conv/y scratch (>= d_conv - 1)
_TIME_CHUNK = 16   # scan time chunk (static unroll length); L is padded to a multiple
_CH_CHUNK = 512    # channel chunk for the scan carry (keeps h / dA register-resident)
_SLAB = 256        # L rows processed per grid step (VMEM is O(_SLAB * d_inner))


def _silu(v):
    # v * sigmoid(v); approximate reciprocal keeps the divide on the EUP slot.
    return v * pl.reciprocal(1.0 + jnp.exp(-v), approx=True)


def _softplus(v):
    # matches torch.nn.functional.softplus (threshold=20); log1p for tiny exp(v)
    return jnp.where(v > 20.0, v, jnp.log1p(jnp.exp(jnp.minimum(v, 20.0))))


def ssm_block_kernel(
    x_ref,       # (SL, D)             f32  input slab (also the residual)
    gamma_ref,   # (1, D)              f32  LayerNorm weight
    beta_ref,    # (1, D)              f32  LayerNorm bias
    win_ref,     # (D, 2*d_inner)      bf16 fused in_proj [x-branch | z-branch]
    convw_ref,   # (d_conv, d_inner)   f32  depthwise conv taps (channel-last)
    convb_ref,   # (1, d_inner)        f32
    wxp_ref,     # (d_inner, Rp)       f32  fused x_proj [dt | B | C | 0-pad]
    wdtp_ref,    # (dt_rank, d_inner)  f32
    bdtp_ref,    # (1, d_inner)        f32
    at_ref,      # (d_state, d_inner)  f32  A^T, A = -exp(A_log)
    dvec_ref,    # (1, d_inner)        f32
    wout_ref,    # (d_inner, D)        bf16
    o_ref,       # (SL, D)             f32  output slab
    xy_scr,      # (PAD+SL, d_inner)   f32  rows [0,PAD): conv halo; [PAD,PAD+SL): xp, then y
    carry_scr,   # (PAD, d_inner)      f32  last PAD rows of xp -> next slab's conv halo
    dt_scr,      # (SL, d_inner)       f32
    u_scr,       # (SL, d_inner)       f32  dt * xs
    bm_scr,      # (SL, d_state)       f32
    cm_scr,      # (SL, d_state)       f32
    h_scr,       # (d_state, d_inner)  f32  scan state carried across L-slabs
):
    SL, D = x_ref.shape
    d_state, d_inner = at_ref.shape
    d_conv = convw_ref.shape[0]
    dt_rank = wdtp_ref.shape[0]
    PAD = _CONV_PAD
    T = _TIME_CHUNK
    n_tc = SL // T
    CH = min(_CH_CHUNK, d_inner)

    s = pl.program_id(1)

    # New sequence: reset the scan state and the conv halo.
    @pl.when(s == 0)
    def _():
        h_scr[...] = jnp.zeros_like(h_scr)
        carry_scr[...] = jnp.zeros_like(carry_scr)

    residual = x_ref[...]

    # ---- LayerNorm over the feature dim --------------------------------------
    mu = jnp.mean(residual, axis=-1, keepdims=True)
    xc = residual - mu
    var = jnp.mean(xc * xc, axis=-1, keepdims=True)
    xn = xc * lax.rsqrt(var + 1e-5) * gamma_ref[...] + beta_ref[...]

    # ---- fused in_proj: one MXU pass, bf16 weights, f32 accumulation ----------
    xz = jnp.dot(xn.astype(win_ref.dtype), win_ref[...],
                 preferred_element_type=jnp.float32)
    xp = xz[:, :d_inner]
    z = xz[:, d_inner:]

    # ---- causal depthwise conv: halo rows + shifted VMEM window reads ---------
    xy_scr[pl.ds(0, PAD), :] = carry_scr[...]          # prev-slab tail (zeros at s==0)
    xy_scr[pl.ds(PAD, SL), :] = xp
    carry_scr[...] = xp[SL - PAD:, :]                  # halo for the next slab

    convw = convw_ref[...]                             # hoisted taps
    acc = convb_ref[...] + convw[d_conv - 1:d_conv, :] * xp        # shift-0 tap
    for k in range(d_conv - 1):                        # static unroll
        win = xy_scr[pl.ds(PAD - (d_conv - 1) + k, SL), :]
        acc = acc + convw[k:k + 1, :] * win
    xs = _silu(acc)

    # ---- fused x_proj (lane-padded) + dt_proj + softplus ----------------------
    xdbl = jnp.dot(xs, wxp_ref[...], preferred_element_type=jnp.float32)
    dt_lo = xdbl[:, :dt_rank]
    bm = xdbl[:, dt_rank:dt_rank + d_state]
    cm = xdbl[:, dt_rank + d_state:dt_rank + 2 * d_state]
    dt = _softplus(
        jnp.dot(dt_lo, wdtp_ref[...], preferred_element_type=jnp.float32)
        + bdtp_ref[...])

    dt_scr[...] = dt
    u_scr[...] = dt * xs
    bm_scr[...] = bm
    cm_scr[...] = cm

    a_full = at_ref[...]                               # (d_state, d_inner)

    # ---- chunked selective scan ----------------------------------------------
    # channels outer (static), time chunks inner (fori), T-step static unroll.
    # dA/dBx are computed per step (register-resident) and y is assembled per
    # chunk (no where-scatter).
    for ch0 in range(0, d_inner, CH):
        ch = min(CH, d_inner - ch0)
        a_c = a_full[:, ch0:ch0 + ch]                  # (d_state, ch)

        def scan_chunk(c, h, ch0=ch0, ch=ch, a_c=a_c):
            t0 = pl.multiple_of(c * T, T)
            dt_c = dt_scr[pl.ds(t0, T), pl.ds(ch0, ch)]      # (T, ch)
            u_c = u_scr[pl.ds(t0, T), pl.ds(ch0, ch)]        # (T, ch)
            bmT_c = bm_scr[pl.ds(t0, T), :].T                # (d_state, T): one tiny
            cmT_c = cm_scr[pl.ds(t0, T), :].T                # transpose per chunk
            rows = []
            for t in range(T):                               # static unroll
                dA_t = jnp.exp(dt_c[t:t + 1, :] * a_c)       # (d_state, ch), EUP off-path
                h = dA_t * h + bmT_c[:, t:t + 1] * u_c[t:t + 1, :]   # VPU recurrence
                rows.append(jnp.sum(cmT_c[:, t:t + 1] * h, axis=0, keepdims=True))
            y_blk = jnp.concatenate(rows, axis=0)            # (T, ch)
            xy_scr[pl.ds(PAD + t0, T), pl.ds(ch0, ch)] = y_blk   # reuse dead xp rows
            return h

        h_scr[:, pl.ds(ch0, ch)] = lax.fori_loop(
            0, n_tc, scan_chunk, h_scr[:, pl.ds(ch0, ch)])

    # ---- skip connection (D), gating, out_proj, residual ----------------------
    y = xy_scr[pl.ds(PAD, SL), :] + dvec_ref[...] * xs
    gated = (y * _silu(z)).astype(wout_ref.dtype)
    out = jnp.dot(gated, wout_ref[...], preferred_element_type=jnp.float32) + residual
    o_ref[...] = out.astype(o_ref.dtype)


def _vmem_limit_bytes():
    """Generation-dependent VMEM budget (~82% of physical, clamped)."""
    try:
        cap = int(pltpu.get_tpu_info().vmem_capacity_bytes)
    except Exception:                       # query unavailable -> assume v7x (64 MiB)
        cap = 64 * 1024 * 1024
    return max(32 * 1024 * 1024, min(int(cap * 0.82), 112 * 1024 * 1024))


def make_params(key, d_model, d_state=16, d_conv=4, expand=2, dt_rank=None):
    d_inner = int(expand * d_model)
    dt_rank = dt_rank or math.ceil(d_model / 16)
    ks = jax.random.split(key, 7)

    def unif(k, shape, fan_in):
        b = 1.0 / math.sqrt(fan_in)
        return jax.random.uniform(k, shape, jnp.float32, -b, b)

    p = {
        "in_proj_w": unif(ks[0], (2 * d_inner, d_model), d_model),
        "conv_w": unif(ks[1], (d_inner, 1, d_conv), d_conv),
        "conv_b": unif(ks[2], (d_inner,), d_conv),
        "x_proj_w": unif(ks[3], (dt_rank + 2 * d_state, d_inner), d_inner),
        "dt_proj_w": unif(ks[4], (d_inner, dt_rank), dt_rank),
        "dt_proj_b": unif(ks[5], (d_inner,), dt_rank),
        "A_log": jnp.log(jnp.tile(
            jnp.arange(1, d_state + 1, dtype=jnp.float32), (d_inner, 1))),
        "D": jnp.ones((d_inner,), jnp.float32),
        "out_proj_w": unif(ks[6], (d_model, d_inner), d_inner),
        "ln_gamma": jnp.ones((d_model,), jnp.float32),
        "ln_beta": jnp.zeros((d_model,), jnp.float32),
    }
    cfg = dict(d_inner=d_inner, dt_rank=dt_rank, d_state=d_state, d_conv=d_conv)
    return p, cfg


def ssm_block_forward(x, p, cfg):
    B, L, D = x.shape
    d_inner, dt_rank = cfg["d_inner"], cfg["dt_rank"]
    d_state, d_conv = cfg["d_state"], cfg["d_conv"]
    assert d_conv - 1 <= _CONV_PAD

    # Pad L so every slab is a multiple of the 16-row scan chunk (fast path on
    # every generation); padded rows are causal-safe and sliced off at the end.
    L16 = ((L + _TIME_CHUNK - 1) // _TIME_CHUNK) * _TIME_CHUNK
    SL = min(_SLAB, L16)
    L_pad = ((L16 + SL - 1) // SL) * SL
    n_slabs = L_pad // SL
    if L_pad != L:
        x = jnp.pad(x, ((0, 0), (0, L_pad - L), (0, 0)))

    wdtype = jnp.bfloat16   # big projections only; the dt / dA / h chain stays f32

    # --- parameter plumbing (plain JAX glue) ----------------------------------
    win = p["in_proj_w"].T.astype(wdtype)                     # (D, 2*d_inner) [x | z]
    convw = p["conv_w"][:, 0, :].T                            # (d_conv, d_inner)
    convb = p["conv_b"][None, :]
    R = dt_rank + 2 * d_state                                 # fused x_proj width
    Rp = ((R + 127) // 128) * 128
    wxp = jnp.zeros((d_inner, Rp), jnp.float32).at[:, :R].set(p["x_proj_w"].T)
    wdtp = p["dt_proj_w"].T                                   # (dt_rank, d_inner)
    bdtp = p["dt_proj_b"][None, :]
    a_t = (-jnp.exp(p["A_log"])).T                            # (d_state, d_inner)
    dvec = p["D"][None, :]
    wout = p["out_proj_w"].T.astype(wdtype)                   # (d_inner, D)
    gamma = p["ln_gamma"][None, :]
    beta = p["ln_beta"][None, :]

    operands = (x, gamma, beta, win, convw, convb, wxp, wdtp, bdtp, a_t, dvec, wout)

    def call(single_buffer_weights):
        def const_spec(arr):
            idx = lambda b, s, _nd=arr.ndim: (0,) * _nd
            if single_buffer_weights:
                # grid-invariant weights: drop the dead second pipeline buffer
                return pl.BlockSpec(arr.shape, idx, pipeline_mode=pl.Buffered(1))
            return pl.BlockSpec(arr.shape, idx)

        in_specs = [pl.BlockSpec((None, SL, D), lambda b, s: (b, s, 0))]
        in_specs += [const_spec(a) for a in operands[1:]]

        grid_spec = pltpu.PrefetchScalarGridSpec(
            num_scalar_prefetch=0,
            grid=(B, n_slabs),
            in_specs=in_specs,
            out_specs=pl.BlockSpec((None, SL, D), lambda b, s: (b, s, 0)),
            scratch_shapes=[
                pltpu.VMEM((_CONV_PAD + SL, d_inner), jnp.float32),  # conv halo + xp / y
                pltpu.VMEM((_CONV_PAD, d_inner), jnp.float32),       # next-slab conv halo
                pltpu.VMEM((SL, d_inner), jnp.float32),              # dt
                pltpu.VMEM((SL, d_inner), jnp.float32),              # dt * xs
                pltpu.VMEM((SL, d_state), jnp.float32),              # B(t)
                pltpu.VMEM((SL, d_state), jnp.float32),              # C(t)
                pltpu.VMEM((d_state, d_inner), jnp.float32),         # h carry
            ],
        )
        return pl.pallas_call(
            ssm_block_kernel,
            out_shape=jax.ShapeDtypeStruct((B, L_pad, D), jnp.float32),
            grid_spec=grid_spec,
            compiler_params=pltpu.CompilerParams(
                dimension_semantics=("parallel", "arbitrary"),
                vmem_limit_bytes=_vmem_limit_bytes()),
        )(*operands)

    try:
        out = call(True)
    except Exception:
        out = call(False)     # jax without BlockSpec.pipeline_mode support
    return out[:, :L, :] if L_pad != L else out


def ssm_block_reference(x, p, cfg):
    """Pure-JAX f32 reference (mirrors the PyTorch module)."""
    B, L, D = x.shape
    d_inner, dt_rank = cfg["d_inner"], cfg["dt_rank"]
    d_state, d_conv = cfg["d_state"], cfg["d_conv"]

    mu = x.mean(-1, keepdims=True)
    xc = x - mu
    var = (xc * xc).mean(-1, keepdims=True)
    xn = xc / jnp.sqrt(var + 1e-5) * p["ln_gamma"] + p["ln_beta"]

    xz = xn @ p["in_proj_w"].T
    xp, z = xz[..., :d_inner], xz[..., d_inner:]

    xpad = jnp.pad(xp, ((0, 0), (d_conv - 1, 0), (0, 0)))
    conv = sum(p["conv_w"][:, 0, k] * xpad[:, k:k + L, :] for k in range(d_conv))
    conv = conv + p["conv_b"]
    xs = jax.nn.silu(conv)

    x_dbl = xs @ p["x_proj_w"].T
    dt = x_dbl[..., :dt_rank]
    bm = x_dbl[..., dt_rank:dt_rank + d_state]
    cm = x_dbl[..., dt_rank + d_state:]
    dt = _softplus(dt @ p["dt_proj_w"].T + p["dt_proj_b"])

    A = -jnp.exp(p["A_log"])
    dA = jnp.exp(dt[..., None] * A[None, None])                # (B,L,d_inner,d_state)
    dBx = dt[..., None] * bm[..., None, :] * xs[..., None]     # (B,L,d_inner,d_state)

    def step(h, inp):
        dA_i, dBx_i, c_i = inp
        h = dA_i * h + dBx_i
        y = jnp.einsum('bdn,bn->bd', h, c_i)
        return h, y

    h0 = jnp.zeros((B, d_inner, d_state), jnp.float32)
    _, ys = lax.scan(step, h0, (dA.transpose(1, 0, 2, 3),
                                dBx.transpose(1, 0, 2, 3),
                                cm.transpose(1, 0, 2)))
    y = ys.transpose(1, 0, 2) + p["D"] * xs
    return (y * jax.nn.silu(z)) @ p["out_proj_w"].T + x


if __name__ == "__main__":
    d_model = 32
    B, L = 2, 8

    key = jax.random.PRNGKey(0)
    kx, kp = jax.random.split(key)
    x = jax.random.normal(kx, (B, L, d_model), dtype=jnp.float32)
    params, cfg = make_params(kp, d_model)

    out = jax.block_until_ready(ssm_block_forward(x, params, cfg))
    ref = jax.block_until_ready(ssm_block_reference(x, params, cfg))

    # bf16 in_proj/out_proj weights -> slightly looser tolerance vs f32 reference
    np.testing.assert_allclose(np.asarray(out), np.asarray(ref),
                               rtol=2e-2, atol=2e-2)
    print("KERNEL_OK")
</pallas_src>

<mosaic_0001>
module attributes {stable_mosaic.version = 11 : i64} {
  func.func @ssm_block_kernel(%arg0: i32, %arg1: i32, %arg2: memref<1x16x32xf32, #tpu.memory_space<vmem>>, %arg3: memref<1x32xf32, #tpu.memory_space<vmem>>, %arg4: memref<1x32xf32, #tpu.memory_space<vmem>>, %arg5: memref<32x128xbf16, #tpu.memory_space<vmem>>, %arg6: memref<4x64xf32, #tpu.memory_space<vmem>>, %arg7: memref<1x64xf32, #tpu.memory_space<vmem>>, %arg8: memref<64x128xf32, #tpu.memory_space<vmem>>, %arg9: memref<2x64xf32, #tpu.memory_space<vmem>>, %arg10: memref<1x64xf32, #tpu.memory_space<vmem>>, %arg11: memref<16x64xf32, #tpu.memory_space<vmem>>, %arg12: memref<1x64xf32, #tpu.memory_space<vmem>>, %arg13: memref<64x32xbf16, #tpu.memory_space<vmem>>, %arg14: memref<1x16x32xf32, #tpu.memory_space<vmem>>, %arg15: memref<24x64xf32, #tpu.memory_space<vmem>>, %arg16: memref<8x64xf32, #tpu.memory_space<vmem>>, %arg17: memref<16x64xf32, #tpu.memory_space<vmem>>, %arg18: memref<16x64xf32, #tpu.memory_space<vmem>>, %arg19: memref<16x16xf32, #tpu.memory_space<vmem>>, %arg20: memref<16x16xf32, #tpu.memory_space<vmem>>, %arg21: memref<16x64xf32, #tpu.memory_space<vmem>>) attributes {dimension_semantics = [#tpu.dimension_semantics<parallel>, #tpu.dimension_semantics<arbitrary>], iteration_bounds = array<i64: 2, 1>, scalar_prefetch = 0 : i64, scratch_operands = 7 : i64, tpu.core_type = #tpu.core_type<tc>, window_params = [{transform_indices = @transform_0, window_bounds = array<i64: 1, 16, 32>}, {pipeline_mode = #tpu.pipeline_mode<synchronous>, transform_indices = @transform_1, window_bounds = array<i64: 1, 32>}, {pipeline_mode = #tpu.pipeline_mode<synchronous>, transform_indices = @transform_2, window_bounds = array<i64: 1, 32>}, {pipeline_mode = #tpu.pipeline_mode<synchronous>, transform_indices = @transform_3, window_bounds = array<i64: 32, 128>}, {pipeline_mode = #tpu.pipeline_mode<synchronous>, transform_indices = @transform_4, window_bounds = array<i64: 4, 64>}, {pipeline_mode = #tpu.pipeline_mode<synchronous>, transform_indices = @transform_5, window_bounds = array<i64: 1, 64>}, {pipeline_mode = #tpu.pipeline_mode<synchronous>, transform_indices = @transform_6, window_bounds = array<i64: 64, 128>}, {pipeline_mode = #tpu.pipeline_mode<synchronous>, transform_indices = @transform_7, window_bounds = array<i64: 2, 64>}, {pipeline_mode = #tpu.pipeline_mode<synchronous>, transform_indices = @transform_8, window_bounds = array<i64: 1, 64>}, {pipeline_mode = #tpu.pipeline_mode<synchronous>, transform_indices = @transform_9, window_bounds = array<i64: 16, 64>}, {pipeline_mode = #tpu.pipeline_mode<synchronous>, transform_indices = @transform_10, window_bounds = array<i64: 1, 64>}, {pipeline_mode = #tpu.pipeline_mode<synchronous>, transform_indices = @transform_11, window_bounds = array<i64: 64, 32>}, {transform_indices = @transform_12, window_bounds = array<i64: 1, 16, 32>}]} {
    %c0_i32 = arith.constant 0 : i32
    %0 = arith.cmpi eq, %arg1, %c0_i32 : i32
    %1 = arith.extui %0 : i1 to i32
    %c0_i32_0 = arith.constant 0 : i32
    %2 = arith.cmpi ne, %1, %c0_i32_0 : i32
    scf.if %2 {
      %cst_88 = arith.constant 0.000000e+00 : f32
      %383 = vector.broadcast %cst_88 : f32 to vector<16x64xf32>
      %c0_89 = arith.constant 0 : index
      %c0_90 = arith.constant 0 : index
      %384 = vector.load %arg21[%c0_89, %c0_90] : memref<16x64xf32, #tpu.memory_space<vmem>>, vector<16x64xf32>
      tpu.vector_store %arg21[%c0_89, %c0_90], %383 {strides = array<i32>} : memref<16x64xf32, #tpu.memory_space<vmem>>, vector<16x64xf32>,
      %cst_91 = arith.constant 0.000000e+00 : f32
      %385 = vector.broadcast %cst_91 : f32 to vector<8x64xf32>
      %c0_92 = arith.constant 0 : index
      %c0_93 = arith.constant 0 : index
      %386 = vector.load %arg16[%c0_92, %c0_93] : memref<8x64xf32, #tpu.memory_space<vmem>>, vector<8x64xf32>
      tpu.vector_store %arg16[%c0_92, %c0_93], %385 {strides = array<i32>} : memref<8x64xf32, #tpu.memory_space<vmem>>, vector<8x64xf32>,
    } else {
    }
    %c0 = arith.constant 0 : index
    %c0_1 = arith.constant 0 : index
    %c0_2 = arith.constant 0 : index
    %3 = vector.load %arg2[%c0, %c0_1, %c0_2] : memref<1x16x32xf32, #tpu.memory_space<vmem>>, vector<1x16x32xf32>
    %4 = vector.shape_cast %3 : vector<1x16x32xf32> to vector<16x32xf32>
    %cst = arith.constant dense<0.000000e+00> : vector<16xf32>
    %5 = vector.multi_reduction <add>, %4, %cst [1] : vector<16x32xf32> to vector<16xf32>
    %6 = vector.shape_cast %5 : vector<16xf32> to vector<16x1xf32>
    %cst_3 = arith.constant 3.200000e+01 : f32
    %7 = vector.broadcast %cst_3 : f32 to vector<16x1xf32>
    %8 = arith.divf %6, %7 : vector<16x1xf32>
    %9 = vector.broadcast %8 : vector<16x1xf32> to vector<16x32xf32>
    %10 = arith.subf %4, %9 : vector<16x32xf32>
    %11 = arith.mulf %10, %10 : vector<16x32xf32>
    %cst_4 = arith.constant dense<0.000000e+00> : vector<16xf32>
    %12 = vector.multi_reduction <add>, %11, %cst_4 [1] : vector<16x32xf32> to vector<16xf32>
    %13 = vector.shape_cast %12 : vector<16xf32> to vector<16x1xf32>
    %cst_5 = arith.constant 3.200000e+01 : f32
    %14 = vector.broadcast %cst_5 : f32 to vector<16x1xf32>
    %15 = arith.divf %13, %14 : vector<16x1xf32>
    %cst_6 = arith.constant 9.99999974E-6 : f32
    %16 = vector.broadcast %cst_6 : f32 to vector<16x1xf32>
    %17 = arith.addf %15, %16 : vector<16x1xf32>
    %18 = math.rsqrt %17 : vector<16x1xf32>
    %19 = vector.broadcast %18 : vector<16x1xf32> to vector<16x32xf32>
    %20 = arith.mulf %10, %19 : vector<16x32xf32>
    %c0_7 = arith.constant 0 : index
    %c0_8 = arith.constant 0 : index
    %21 = vector.load %arg3[%c0_7, %c0_8] : memref<1x32xf32, #tpu.memory_space<vmem>>, vector<1x32xf32>
    %22 = vector.broadcast %21 : vector<1x32xf32> to vector<16x32xf32>
    %23 = arith.mulf %20, %22 : vector<16x32xf32>
    %c0_9 = arith.constant 0 : index
    %c0_10 = arith.constant 0 : index
    %24 = vector.load %arg4[%c0_9, %c0_10] : memref<1x32xf32, #tpu.memory_space<vmem>>, vector<1x32xf32>
    %25 = vector.broadcast %24 : vector<1x32xf32> to vector<16x32xf32>
    %26 = arith.addf %23, %25 : vector<16x32xf32>
    %27 = arith.truncf %26 : vector<16x32xf32> to vector<16x32xbf16>
    %c0_11 = arith.constant 0 : index
    %c0_12 = arith.constant 0 : index
    %28 = vector.load %arg5[%c0_11, %c0_12] : memref<32x128xbf16, #tpu.memory_space<vmem>>, vector<32x128xbf16>
    %cst_13 = arith.constant dense<0.000000e+00> : vector<16x128xf32>
    %29 = tpu.matmul %27, %28, %cst_13 {dimension_numbers = #tpu.dot_dimension_numbers<[1], [0], [0], [1], [0, 0, 1, 1], [], []>} : vector<16x32xbf16>, vector<32x128xbf16>, vector<16x128xf32> -> vector<16x128xf32>
    %30 = vector.extract_strided_slice %29 {offsets = [0, 0], sizes = [16, 64], strides = [1, 1]} : vector<16x128xf32> to vector<16x64xf32>
    %31 = vector.extract_strided_slice %29 {offsets = [0, 64], sizes = [16, 64], strides = [1, 1]} : vector<16x128xf32> to vector<16x64xf32>
    %c0_14 = arith.constant 0 : index
    %c0_15 = arith.constant 0 : index
    %32 = vector.load %arg16[%c0_14, %c0_15] : memref<8x64xf32, #tpu.memory_space<vmem>>, vector<8x64xf32>
    %c0_16 = arith.constant 0 : index
    %c0_17 = arith.constant 0 : index
    %33 = vector.load %arg15[%c0_16, %c0_17] : memref<24x64xf32, #tpu.memory_space<vmem>>, vector<8x64xf32>
    tpu.vector_store %arg15[%c0_16, %c0_17], %32 {strides = array<i32>} : memref<24x64xf32, #tpu.memory_space<vmem>>, vector<8x64xf32>,
    %c8 = arith.constant 8 : index
    %c0_18 = arith.constant 0 : index
    %34 = vector.load %arg15[%c8, %c0_18] : memref<24x64xf32, #tpu.memory_space<vmem>>, vector<16x64xf32>
    tpu.vector_store %arg15[%c8, %c0_18], %30 {strides = array<i32>} : memref<24x64xf32, #tpu.memory_space<vmem>>, vector<16x64xf32>,
    %35 = vector.extract_strided_slice %30 {offsets = [8, 0], sizes = [8, 64], strides = [1, 1]} : vector<16x64xf32> to vector<8x64xf32>
    %c0_19 = arith.constant 0 : index
    %c0_20 = arith.constant 0 : index
    %36 = vector.load %arg16[%c0_19, %c0_20] : memref<8x64xf32, #tpu.memory_space<vmem>>, vector<8x64xf32>
    tpu.vector_store %arg16[%c0_19, %c0_20], %35 {strides = array<i32>} : memref<8x64xf32, #tpu.memory_space<vmem>>, vector<8x64xf32>,
    %c0_21 = arith.constant 0 : index
    %c0_22 = arith.constant 0 : index
    %37 = vector.load %arg6[%c0_21, %c0_22] : memref<4x64xf32, #tpu.memory_space<vmem>>, vector<4x64xf32>
    %c0_23 = arith.constant 0 : index
    %c0_24 = arith.constant 0 : index
    %38 = vector.load %arg7[%c0_23, %c0_24] : memref<1x64xf32, #tpu.memory_space<vmem>>, vector<1x64xf32>
    %39 = vector.extract_strided_slice %37 {offsets = [3, 0], sizes = [1, 64], strides = [1, 1]} : vector<4x64xf32> to vector<1x64xf32>
    %40 = vector.broadcast %39 : vector<1x64xf32> to vector<16x64xf32>
    %41 = arith.mulf %40, %30 : vector<16x64xf32>
    %42 = vector.broadcast %38 : vector<1x64xf32> to vector<16x64xf32>
    %43 = arith.addf %42, %41 : vector<16x64xf32>
    %c5 = arith.constant 5 : index
    %c0_25 = arith.constant 0 : index
    %44 = vector.load %arg15[%c5, %c0_25] : memref<24x64xf32, #tpu.memory_space<vmem>>, vector<16x64xf32>
    %45 = vector.extract_strided_slice %37 {offsets = [0, 0], sizes = [1, 64], strides = [1, 1]} : vector<4x64xf32> to vector<1x64xf32>
    %46 = vector.broadcast %45 : vector<1x64xf32> to vector<16x64xf32>
    %47 = arith.mulf %46, %44 : vector<16x64xf32>
    %48 = arith.addf %43, %47 : vector<16x64xf32>
    %c6 = arith.constant 6 : index
    %c0_26 = arith.constant 0 : index
    %49 = vector.load %arg15[%c6, %c0_26] : memref<24x64xf32, #tpu.memory_space<vmem>>, vector<16x64xf32>
    %50 = vector.extract_strided_slice %37 {offsets = [1, 0], sizes = [1, 64], strides = [1, 1]} : vector<4x64xf32> to vector<1x64xf32>
    %51 = vector.broadcast %50 : vector<1x64xf32> to vector<16x64xf32>
    %52 = arith.mulf %51, %49 : vector<16x64xf32>
    %53 = arith.addf %48, %52 : vector<16x64xf32>
    %c7 = arith.constant 7 : index
    %c0_27 = arith.constant 0 : index
    %54 = vector.load %arg15[%c7, %c0_27] : memref<24x64xf32, #tpu.memory_space<vmem>>, vector<16x64xf32>
    %55 = vector.extract_strided_slice %37 {offsets = [2, 0], sizes = [1, 64], strides = [1, 1]} : vector<4x64xf32> to vector<1x64xf32>
    %56 = vector.broadcast %55 : vector<1x64xf32> to vector<16x64xf32>
    %57 = arith.mulf %56, %54 : vector<16x64xf32>
    %58 = arith.addf %53, %57 : vector<16x64xf32>
    %cst_28 = arith.constant 0.000000e+00 : f32
    %59 = vector.broadcast %cst_28 : f32 to vector<16x64xf32>
    %60 = arith.subf %59, %58 : vector<16x64xf32>
    %61 = math.exp %60 : vector<16x64xf32>
    %cst_29 = arith.constant 1.000000e+00 : f32
    %62 = vector.broadcast %cst_29 : f32 to vector<16x64xf32>
    %63 = arith.addf %62, %61 : vector<16x64xf32>
    %64 = tpu.reciprocal %63 {approx = true} : vector<16x64xf32> -> vector<16x64xf32>
    %65 = arith.mulf %58, %64 : vector<16x64xf32>
    %c0_30 = arith.constant 0 : index
    %c0_31 = arith.constant 0 : index
    %66 = vector.load %arg8[%c0_30, %c0_31] : memref<64x128xf32, #tpu.memory_space<vmem>>, vector<64x128xf32>
    %cst_32 = arith.constant dense<0.000000e+00> : vector<16x128xf32>
    %67 = tpu.matmul %65, %66, %cst_32 {dimension_numbers = #tpu.dot_dimension_numbers<[1], [0], [0], [1], [0, 0, 1, 1], [], []>} : vector<16x64xf32>, vector<64x128xf32>, vector<16x128xf32> -> vector<16x128xf32>
    %68 = vector.extract_strided_slice %67 {offsets = [0, 0], sizes = [16, 2], strides = [1, 1]} : vector<16x128xf32> to vector<16x2xf32>
    %69 = vector.extract_strided_slice %67 {offsets = [0, 2], sizes = [16, 16], strides = [1, 1]} : vector<16x128xf32> to vector<16x16xf32>
    %70 = vector.extract_strided_slice %67 {offsets = [0, 18], sizes = [16, 16], strides = [1, 1]} : vector<16x128xf32> to vector<16x16xf32>
    %c0_33 = arith.constant 0 : index
    %c0_34 = arith.constant 0 : index
    %71 = vector.load %arg9[%c0_33, %c0_34] : memref<2x64xf32, #tpu.memory_space<vmem>>, vector<2x64xf32>
    %cst_35 = arith.constant dense<0.000000e+00> : vector<16x64xf32>
    %72 = tpu.matmul %68, %71, %cst_35 {dimension_numbers = #tpu.dot_dimension_numbers<[1], [0], [0], [1], [0, 0, 1, 1], [], []>} : vector<16x2xf32>, vector<2x64xf32>, vector<16x64xf32> -> vector<16x64xf32>
    %c0_36 = arith.constant 0 : index
    %c0_37 = arith.constant 0 : index
    %73 = vector.load %arg10[%c0_36, %c0_37] : memref<1x64xf32, #tpu.memory_space<vmem>>, vector<1x64xf32>
    %74 = vector.broadcast %73 : vector<1x64xf32> to vector<16x64xf32>
    %75 = arith.addf %72, %74 : vector<16x64xf32>
    %cst_38 = arith.constant 2.000000e+01 : f32
    %76 = vector.broadcast %cst_38 : f32 to vector<16x64xf32>
    %77 = arith.cmpf ogt, %75, %76 : vector<16x64xf32>
    %cst_39 = arith.constant 2.000000e+01 : f32
    %78 = vector.broadcast %cst_39 : f32 to vector<16x64xf32>
    %79 = arith.minimumf %75, %78 : vector<16x64xf32>
    %80 = math.exp %79 : vector<16x64xf32>
    %81 = math.log1p %80 : vector<16x64xf32>
    %82 = arith.select %77, %75, %81 : vector<16x64xi1>, vector<16x64xf32>
    %c0_40 = arith.constant 0 : index
    %c0_41 = arith.constant 0 : index
    %83 = vector.load %arg17[%c0_40, %c0_41] : memref<16x64xf32, #tpu.memory_space<vmem>>, vector<16x64xf32>
    tpu.vector_store %arg17[%c0_40, %c0_41], %82 {strides = array<i32>} : memref<16x64xf32, #tpu.memory_space<vmem>>, vector<16x64xf32>,
    %84 = arith.mulf %82, %65 : vector<16x64xf32>
    %c0_42 = arith.constant 0 : index
    %c0_43 = arith.constant 0 : index
    %85 = vector.load %arg18[%c0_42, %c0_43] : memref<16x64xf32, #tpu.memory_space<vmem>>, vector<16x64xf32>
    tpu.vector_store %arg18[%c0_42, %c0_43], %84 {strides = array<i32>} : memref<16x64xf32, #tpu.memory_space<vmem>>, vector<16x64xf32>,
    %c0_44 = arith.constant 0 : index
    %c0_45 = arith.constant 0 : index
    %86 = vector.load %arg19[%c0_44, %c0_45] : memref<16x16xf32, #tpu.memory_space<vmem>>, vector<16x16xf32>
    tpu.vector_store %arg19[%c0_44, %c0_45], %69 {strides = array<i32>} : memref<16x16xf32, #tpu.memory_space<vmem>>, vector<16x16xf32>,
    %c0_46 = arith.constant 0 : index
    %c0_47 = arith.constant 0 : index
    %87 = vector.load %arg20[%c0_46, %c0_47] : memref<16x16xf32, #tpu.memory_space<vmem>>, vector<16x16xf32>
    tpu.vector_store %arg20[%c0_46, %c0_47], %70 {strides = array<i32>} : memref<16x16xf32, #tpu.memory_space<vmem>>, vector<16x16xf32>,
    %c0_48 = arith.constant 0 : index
    %c0_49 = arith.constant 0 : index
    %88 = vector.load %arg11[%c0_48, %c0_49] : memref<16x64xf32, #tpu.memory_space<vmem>>, vector<16x64xf32>
    %c0_50 = arith.constant 0 : index
    %c0_51 = arith.constant 0 : index
    %89 = vector.load %arg21[%c0_50, %c0_51] : memref<16x64xf32, #tpu.memory_space<vmem>>, vector<16x64xf32>
    %c0_i32_52 = arith.constant 0 : i32
    %c16_i32 = arith.constant 16 : i32
    %90 = arith.muli %c0_i32_52, %c16_i32 : i32
    %91 = tpu.assume_multiple %90, 16 : i32
    %92 = arith.index_cast %91 : i32 to index
    %c0_53 = arith.constant 0 : index
    %93 = vector.load %arg17[%92, %c0_53] : memref<16x64xf32, #tpu.memory_space<vmem>>, vector<16x64xf32>
    %94 = arith.index_cast %91 : i32 to index
    %c0_54 = arith.constant 0 : index
    %95 = vector.load %arg18[%94, %c0_54] : memref<16x64xf32, #tpu.memory_space<vmem>>, vector<16x64xf32>
    %96 = arith.index_cast %91 : i32 to index
    %c0_55 = arith.constant 0 : index
    %97 = vector.load %arg19[%96, %c0_55] : memref<16x16xf32, #tpu.memory_space<vmem>>, vector<16x16xf32>
    %98 = tpu.transpose %97, [1, 0] : vector<16x16xf32> -> vector<16x16xf32>
    %99 = arith.index_cast %91 : i32 to index
    %c0_56 = arith.constant 0 : index
    %100 = vector.load %arg20[%99, %c0_56] : memref<16x16xf32, #tpu.memory_space<vmem>>, vector<16x16xf32>
    %101 = tpu.transpose %100, [1, 0] : vector<16x16xf32> -> vector<16x16xf32>
    %102 = vector.extract_strided_slice %93 {offsets = [0, 0], sizes = [1, 64], strides = [1, 1]} : vector<16x64xf32> to vector<1x64xf32>
    %103 = vector.broadcast %102 : vector<1x64xf32> to vector<16x64xf32>
    %104 = arith.mulf %103, %88 : vector<16x64xf32>
    %105 = math.exp %104 : vector<16x64xf32>
    %106 = arith.mulf %105, %89 : vector<16x64xf32>
    %107 = vector.extract_strided_slice %98 {offsets = [0, 0], sizes = [16, 1], strides = [1, 1]} : vector<16x16xf32> to vector<16x1xf32>
    %108 = vector.extract_strided_slice %95 {offsets = [0, 0], sizes = [1, 64], strides = [1, 1]} : vector<16x64xf32> to vector<1x64xf32>
    %109 = vector.broadcast %107 : vector<16x1xf32> to vector<16x64xf32>
    %110 = vector.broadcast %108 : vector<1x64xf32> to vector<16x64xf32>
    %111 = arith.mulf %109, %110 : vector<16x64xf32>
    %112 = arith.addf %106, %111 : vector<16x64xf32>
    %113 = vector.extract_strided_slice %101 {offsets = [0, 0], sizes = [16, 1], strides = [1, 1]} : vector<16x16xf32> to vector<16x1xf32>
    %114 = vector.broadcast %113 : vector<16x1xf32> to vector<16x64xf32>
    %115 = arith.mulf %114, %112 : vector<16x64xf32>
    %cst_57 = arith.constant dense<0.000000e+00> : vector<64xf32>
    %116 = vector.multi_reduction <add>, %115, %cst_57 [0] : vector<16x64xf32> to vector<64xf32>
    %117 = vector.shape_cast %116 : vector<64xf32> to vector<1x64xf32>
    %118 = vector.extract_strided_slice %93 {offsets = [1, 0], sizes = [1, 64], strides = [1, 1]} : vector<16x64xf32> to vector<1x64xf32>
    %119 = vector.broadcast %118 : vector<1x64xf32> to vector<16x64xf32>
    %120 = arith.mulf %119, %88 : vector<16x64xf32>
    %121 = math.exp %120 : vector<16x64xf32>
    %122 = arith.mulf %121, %112 : vector<16x64xf32>
    %123 = vector.extract_strided_slice %98 {offsets = [0, 1], sizes = [16, 1], strides = [1, 1]} : vector<16x16xf32> to vector<16x1xf32>
    %124 = vector.extract_strided_slice %95 {offsets = [1, 0], sizes = [1, 64], strides = [1, 1]} : vector<16x64xf32> to vector<1x64xf32>
    %125 = vector.broadcast %123 : vector<16x1xf32> to vector<16x64xf32>
    %126 = vector.broadcast %124 : vector<1x64xf32> to vector<16x64xf32>
    %127 = arith.mulf %125, %126 : vector<16x64xf32>
    %128 = arith.addf %122, %127 : vector<16x64xf32>
    %129 = vector.extract_strided_slice %101 {offsets = [0, 1], sizes = [16, 1], strides = [1, 1]} : vector<16x16xf32> to vector<16x1xf32>
    %130 = vector.broadcast %129 : vector<16x1xf32> to vector<16x64xf32>
    %131 = arith.mulf %130, %128 : vector<16x64xf32>
    %cst_58 = arith.constant dense<0.000000e+00> : vector<64xf32>
    %132 = vector.multi_reduction <add>, %131, %cst_58 [0] : vector<16x64xf32> to vector<64xf32>
    %133 = vector.shape_cast %132 : vector<64xf32> to vector<1x64xf32>
    %134 = vector.extract_strided_slice %93 {offsets = [2, 0], sizes = [1, 64], strides = [1, 1]} : vector<16x64xf32> to vector<1x64xf32>
    %135 = vector.broadcast %134 : vector<1x64xf32> to vector<16x64xf32>
    %136 = arith.mulf %135, %88 : vector<16x64xf32>
    %137 = math.exp %136 : vector<16x64xf32>
    %138 = arith.mulf %137, %128 : vector<16x64xf32>
    %139 = vector.extract_strided_slice %98 {offsets = [0, 2], sizes = [16, 1], strides = [1, 1]} : vector<16x16xf32> to vector<16x1xf32>
    %140 = vector.extract_strided_slice %95 {offsets = [2, 0], sizes = [1, 64], strides = [1, 1]} : vector<16x64xf32> to vector<1x64xf32>
    %141 = vector.broadcast %139 : vector<16x1xf32> to vector<16x64xf32>
    %142 = vector.broadcast %140 : vector<1x64xf32> to vector<16x64xf32>
    %143 = arith.mulf %141, %142 : vector<16x64xf32>
    %144 = arith.addf %138, %143 : vector<16x64xf32>
    %145 = vector.extract_strided_slice %101 {offsets = [0, 2], sizes = [16, 1], strides = [1, 1]} : vector<16x16xf32> to vector<16x1xf32>
    %146 = vector.broadcast %145 : vector<16x1xf32> to vector<16x64xf32>
    %147 = arith.mulf %146, %144 : vector<16x64xf32>
    %cst_59 = arith.constant dense<0.000000e+00> : vector<64xf32>
    %148 = vector.multi_reduction <add>, %147, %cst_59 [0] : vector<16x64xf32> to vector<64xf32>
    %149 = vector.shape_cast %148 : vector<64xf32> to vector<1x64xf32>
    %150 = vector.extract_strided_slice %93 {offsets = [3, 0], sizes = [1, 64], strides = [1, 1]} : vector<16x64xf32> to vector<1x64xf32>
    %151 = vector.broadcast %150 : vector<1x64xf32> to vector<16x64xf32>
    %152 = arith.mulf %151, %88 : vector<16x64xf32>
    %153 = math.exp %152 : vector<16x64xf32>
    %154 = arith.mulf %153, %144 : vector<16x64xf32>
    %155 = vector.extract_strided_slice %98 {offsets = [0, 3], sizes = [16, 1], strides = [1, 1]} : vector<16x16xf32> to vector<16x1xf32>
    %156 = vector.extract_strided_slice %95 {offsets = [3, 0], sizes = [1, 64], strides = [1, 1]} : vector<16x64xf32> to vector<1x64xf32>
    %157 = vector.broadcast %155 : vector<16x1xf32> to vector<16x64xf32>
    %158 = vector.broadcast %156 : vector<1x64xf32> to vector<16x64xf32>
    %159 = arith.mulf %157, %158 : vector<16x64xf32>
    %160 = arith.addf %154, %159 : vector<16x64xf32>
    %161 = vector.extract_strided_slice %101 {offsets = [0, 3], sizes = [16, 1], strides = [1, 1]} : vector<16x16xf32> to vector<16x1xf32>
    %162 = vector.broadcast %161 : vector<16x1xf32> to vector<16x64xf32>
    %163 = arith.mulf %162, %160 : vector<16x64xf32>
    %cst_60 = arith.constant dense<0.000000e+00> : vector<64xf32>
    %164 = vector.multi_reduction <add>, %163, %cst_60 [0] : vector<16x64xf32> to vector<64xf32>
    %165 = vector.shape_cast %164 : vector<64xf32> to vector<1x64xf32>
    %166 = vector.extract_strided_slice %93 {offsets = [4, 0], sizes = [1, 64], strides = [1, 1]} : vector<16x64xf32> to vector<1x64xf32>
    %167 = vector.broadcast %166 : vector<1x64xf32> to vector<16x64xf32>
    %168 = arith.mulf %167, %88 : vector<16x64xf32>
    %169 = math.exp %168 : vector<16x64xf32>
    %170 = arith.mulf %169, %160 : vector<16x64xf32>
    %171 = vector.extract_strided_slice %98 {offsets = [0, 4], sizes = [16, 1], strides = [1, 1]} : vector<16x16xf32> to vector<16x1xf32>
    %172 = vector.extract_strided_slice %95 {offsets = [4, 0], sizes = [1, 64], strides = [1, 1]} : vector<16x64xf32> to vector<1x64xf32>
    %173 = vector.broadcast %171 : vector<16x1xf32> to vector<16x64xf32>
    %174 = vector.broadcast %172 : vector<1x64xf32> to vector<16x64xf32>
    %175 = arith.mulf %173, %174 : vector<16x64xf32>
    %176 = arith.addf %170, %175 : vector<16x64xf32>
    %177 = vector.extract_strided_slice %101 {offsets = [0, 4], sizes = [16, 1], strides = [1, 1]} : vector<16x16xf32> to vector<16x1xf32>
    %178 = vector.broadcast %177 : vector<16x1xf32> to vector<16x64xf32>
    %179 = arith.mulf %178, %176 : vector<16x64xf32>
    %cst_61 = arith.constant dense<0.000000e+00> : vector<64xf32>
    %180 = vector.multi_reduction <add>, %179, %cst_61 [0] : vector<16x64xf32> to vector<64xf32>
    %181 = vector.shape_cast %180 : vector<64xf32> to vector<1x64xf32>
    %182 = vector.extract_strided_slice %93 {offsets = [5, 0], sizes = [1, 64], strides = [1, 1]} : vector<16x64xf32> to vector<1x64xf32>
    %183 = vector.broadcast %182 : vector<1x64xf32> to vector<16x64xf32>
    %184 = arith.mulf %183, %88 : vector<16x64xf32>
    %185 = math.exp %184 : vector<16x64xf32>
    %186 = arith.mulf %185, %176 : vector<16x64xf32>
    %187 = vector.extract_strided_slice %98 {offsets = [0, 5], sizes = [16, 1], strides = [1, 1]} : vector<16x16xf32> to vector<16x1xf32>
    %188 = vector.extract_strided_slice %95 {offsets = [5, 0], sizes = [1, 64], strides = [1, 1]} : vector<16x64xf32> to vector<1x64xf32>
    %189 = vector.broadcast %187 : vector<16x1xf32> to vector<16x64xf32>
    %190 = vector.broadcast %188 : vector<1x64xf32> to vector<16x64xf32>
    %191 = arith.mulf %189, %190 : vector<16x64xf32>
    %192 = arith.addf %186, %191 : vector<16x64xf32>
    %193 = vector.extract_strided_slice %101 {offsets = [0, 5], sizes = [16, 1], strides = [1, 1]} : vector<16x16xf32> to vector<16x1xf32>
    %194 = vector.broadcast %193 : vector<16x1xf32> to vector<16x64xf32>
    %195 = arith.mulf %194, %192 : vector<16x64xf32>
    %cst_62 = arith.constant dense<0.000000e+00> : vector<64xf32>
    %196 = vector.multi_reduction <add>, %195, %cst_62 [0] : vector<16x64xf32> to vector<64xf32>
    %197 = vector.shape_cast %196 : vector<64xf32> to vector<1x64xf32>
    %198 = vector.extract_strided_slice %93 {offsets = [6, 0], sizes = [1, 64], strides = [1, 1]} : vector<16x64xf32> to vector<1x64xf32>
    %199 = vector.broadcast %198 : vector<1x64xf32> to vector<16x64xf32>
    %200 = arith.mulf %199, %88 : vector<16x64xf32>
    %201 = math.exp %200 : vector<16x64xf32>
    %202 = arith.mulf %201, %192 : vector<16x64xf32>
    %203 = vector.extract_strided_slice %98 {offsets = [0, 6], sizes = [16, 1], strides = [1, 1]} : vector<16x16xf32> to vector<16x1xf32>
    %204 = vector.extract_strided_slice %95 {offsets = [6, 0], sizes = [1, 64], strides = [1, 1]} : vector<16x64xf32> to vector<1x64xf32>
    %205 = vector.broadcast %203 : vector<16x1xf32> to vector<16x64xf32>
    %206 = vector.broadcast %204 : vector<1x64xf32> to vector<16x64xf32>
    %207 = arith.mulf %205, %206 : vector<16x64xf32>
    %208 = arith.addf %202, %207 : vector<16x64xf32>
    %209 = vector.extract_strided_slice %101 {offsets = [0, 6], sizes = [16, 1], strides = [1, 1]} : vector<16x16xf32> to vector<16x1xf32>
    %210 = vector.broadcast %209 : vector<16x1xf32> to vector<16x64xf32>
    %211 = arith.mulf %210, %208 : vector<16x64xf32>
    %cst_63 = arith.constant dense<0.000000e+00> : vector<64xf32>
    %212 = vector.multi_reduction <add>, %211, %cst_63 [0] : vector<16x64xf32> to vector<64xf32>
    %213 = vector.shape_cast %212 : vector<64xf32> to vector<1x64xf32>
    %214 = vector.extract_strided_slice %93 {offsets = [7, 0], sizes = [1, 64], strides = [1, 1]} : vector<16x64xf32> to vector<1x64xf32>
    %215 = vector.broadcast %214 : vector<1x64xf32> to vector<16x64xf32>
    %216 = arith.mulf %215, %88 : vector<16x64xf32>
    %217 = math.exp %216 : vector<16x64xf32>
    %218 = arith.mulf %217, %208 : vector<16x64xf32>
    %219 = vector.extract_strided_slice %98 {offsets = [0, 7], sizes = [16, 1], strides = [1, 1]} : vector<16x16xf32> to vector<16x1xf32>
    %220 = vector.extract_strided_slice %95 {offsets = [7, 0], sizes = [1, 64], strides = [1, 1]} : vector<16x64xf32> to vector<1x64xf32>
    %221 = vector.broadcast %219 : vector<16x1xf32> to vector<16x64xf32>
    %222 = vector.broadcast %220 : vector<1x64xf32> to vector<16x64xf32>
    %223 = arith.mulf %221, %222 : vector<16x64xf32>
    %224 = arith.addf %218, %223 : vector<16x64xf32>
    %225 = vector.extract_strided_slice %101 {offsets = [0, 7], sizes = [16, 1], strides = [1, 1]} : vector<16x16xf32> to vector<16x1xf32>
    %226 = vector.broadcast %225 : vector<16x1xf32> to vector<16x64xf32>
    %227 = arith.mulf %226, %224 : vector<16x64xf32>
    %cst_64 = arith.constant dense<0.000000e+00> : vector<64xf32>
    %228 = vector.multi_reduction <add>, %227, %cst_64 [0] : vector<16x64xf32> to vector<64xf32>
    %229 = vector.shape_cast %228 : vector<64xf32> to vector<1x64xf32>
    %230 = vector.extract_strided_slice %93 {offsets = [8, 0], sizes = [1, 64], strides = [1, 1]} : vector<16x64xf32> to vector<1x64xf32>
    %231 = vector.broadcast %230 : vector<1x64xf32> to vector<16x64xf32>
    %232 = arith.mulf %231, %88 : vector<16x64xf32>
    %233 = math.exp %232 : vector<16x64xf32>
    %234 = arith.mulf %233, %224 : vector<16x64xf32>
    %235 = vector.extract_strided_slice %98 {offsets = [0, 8], sizes = [16, 1], strides = [1, 1]} : vector<16x16xf32> to vector<16x1xf32>
    %236 = vector.extract_strided_slice %95 {offsets = [8, 0], sizes = [1, 64], strides = [1, 1]} : vector<16x64xf32> to vector<1x64xf32>
    %237 = vector.broadcast %235 : vector<16x1xf32> to vector<16x64xf32>
    %238 = vector.broadcast %236 : vector<1x64xf32> to vector<16x64xf32>
    %239 = arith.mulf %237, %238 : vector<16x64xf32>
    %240 = arith.addf %234, %239 : vector<16x64xf32>
    %241 = vector.extract_strided_slice %101 {offsets = [0, 8], sizes = [16, 1], strides = [1, 1]} : vector<16x16xf32> to vector<16x1xf32>
    %242 = vector.broadcast %241 : vector<16x1xf32> to vector<16x64xf32>
    %243 = arith.mulf %242, %240 : vector<16x64xf32>
    %cst_65 = arith.constant dense<0.000000e+00> : vector<64xf32>
    %244 = vector.multi_reduction <add>, %243, %cst_65 [0] : vector<16x64xf32> to vector<64xf32>
    %245 = vector.shape_cast %244 : vector<64xf32> to vector<1x64xf32>
    %246 = vector.extract_strided_slice %93 {offsets = [9, 0], sizes = [1, 64], strides = [1, 1]} : vector<16x64xf32> to vector<1x64xf32>
    %247 = vector.broadcast %246 : vector<1x64xf32> to vector<16x64xf32>
    %248 = arith.mulf %247, %88 : vector<16x64xf32>
    %249 = math.exp %248 : vector<16x64xf32>
    %250 = arith.mulf %249, %240 : vector<16x64xf32>
    %251 = vector.extract_strided_slice %98 {offsets = [0, 9], sizes = [16, 1], strides = [1, 1]} : vector<16x16xf32> to vector<16x1xf32>
    %252 = vector.extract_strided_slice %95 {offsets = [9, 0], sizes = [1, 64], strides = [1, 1]} : vector<16x64xf32> to vector<1x64xf32>
    %253 = vector.broadcast %251 : vector<16x1xf32> to vector<16x64xf32>
    %254 = vector.broadcast %252 : vector<1x64xf32> to vector<16x64xf32>
    %255 = arith.mulf %253, %254 : vector<16x64xf32>
    %256 = arith.addf %250, %255 : vector<16x64xf32>
    %257 = vector.extract_strided_slice %101 {offsets = [0, 9], sizes = [16, 1], strides = [1, 1]} : vector<16x16xf32> to vector<16x1xf32>
    %258 = vector.broadcast %257 : vector<16x1xf32> to vector<16x64xf32>
    %259 = arith.mulf %258, %256 : vector<16x64xf32>
    %cst_66 = arith.constant dense<0.000000e+00> : vector<64xf32>
    %260 = vector.multi_reduction <add>, %259, %cst_66 [0] : vector<16x64xf32> to vector<64xf32>
    %261 = vector.shape_cast %260 : vector<64xf32> to vector<1x64xf32>
    %262 = vector.extract_strided_slice %93 {offsets = [10, 0], sizes = [1, 64], strides = [1, 1]} : vector<16x64xf32> to vector<1x64xf32>
    %263 = vector.broadcast %262 : vector<1x64xf32> to vector<16x64xf32>
    %264 = arith.mulf %263, %88 : vector<16x64xf32>
    %265 = math.exp %264 : vector<16x64xf32>
    %266 = arith.mulf %265, %256 : vector<16x64xf32>
    %267 = vector.extract_strided_slice %98 {offsets = [0, 10], sizes = [16, 1], strides = [1, 1]} : vector<16x16xf32> to vector<16x1xf32>
    %268 = vector.extract_strided_slice %95 {offsets = [10, 0], sizes = [1, 64], strides = [1, 1]} : vector<16x64xf32> to vector<1x64xf32>
    %269 = vector.broadcast %267 : vector<16x1xf32> to vector<16x64xf32>
    %270 = vector.broadcast %268 : vector<1x64xf32> to vector<16x64xf32>
    %271 = arith.mulf %269, %270 : vector<16x64xf32>
    %272 = arith.addf %266, %271 : vector<16x64xf32>
    %273 = vector.extract_strided_slice %101 {offsets = [0, 10], sizes = [16, 1], strides = [1, 1]} : vector<16x16xf32> to vector<16x1xf32>
    %274 = vector.broadcast %273 : vector<16x1xf32> to vector<16x64xf32>
    %275 = arith.mulf %274, %272 : vector<16x64xf32>
    %cst_67 = arith.constant dense<0.000000e+00> : vector<64xf32>
    %276 = vector.multi_reduction <add>, %275, %cst_67 [0] : vector<16x64xf32> to vector<64xf32>
    %277 = vector.shape_cast %276 : vector<64xf32> to vector<1x64xf32>
    %278 = vector.extract_strided_slice %93 {offsets = [11, 0], sizes = [1, 64], strides = [1, 1]} : vector<16x64xf32> to vector<1x64xf32>
    %279 = vector.broadcast %278 : vector<1x64xf32> to vector<16x64xf32>
    %280 = arith.mulf %279, %88 : vector<16x64xf32>
    %281 = math.exp %280 : vector<16x64xf32>
    %282 = arith.mulf %281, %272 : vector<16x64xf32>
    %283 = vector.extract_strided_slice %98 {offsets = [0, 11], sizes = [16, 1], strides = [1, 1]} : vector<16x16xf32> to vector<16x1xf32>
    %284 = vector.extract_strided_slice %95 {offsets = [11, 0], sizes = [1, 64], strides = [1, 1]} : vector<16x64xf32> to vector<1x64xf32>
    %285 = vector.broadcast %283 : vector<16x1xf32> to vector<16x64xf32>
    %286 = vector.broadcast %284 : vector<1x64xf32> to vector<16x64xf32>
    %287 = arith.mulf %285, %286 : vector<16x64xf32>
    %288 = arith.addf %282, %287 : vector<16x64xf32>
    %289 = vector.extract_strided_slice %101 {offsets = [0, 11], sizes = [16, 1], strides = [1, 1]} : vector<16x16xf32> to vector<16x1xf32>
    %290 = vector.broadcast %289 : vector<16x1xf32> to vector<16x64xf32>
    %291 = arith.mulf %290, %288 : vector<16x64xf32>
    %cst_68 = arith.constant dense<0.000000e+00> : vector<64xf32>
    %292 = vector.multi_reduction <add>, %291, %cst_68 [0] : vector<16x64xf32> to vector<64xf32>
    %293 = vector.shape_cast %292 : vector<64xf32> to vector<1x64xf32>
    %294 = vector.extract_strided_slice %93 {offsets = [12, 0], sizes = [1, 64], strides = [1, 1]} : vector<16x64xf32> to vector<1x64xf32>
    %295 = vector.broadcast %294 : vector<1x64xf32> to vector<16x64xf32>
    %296 = arith.mulf %295, %88 : vector<16x64xf32>
    %297 = math.exp %296 : vector<16x64xf32>
    %298 = arith.mulf %297, %288 : vector<16x64xf32>
    %299 = vector.extract_strided_slice %98 {offsets = [0, 12], sizes = [16, 1], strides = [1, 1]} : vector<16x16xf32> to vector<16x1xf32>
    %300 = vector.extract_strided_slice %95 {offsets = [12, 0], sizes = [1, 64], strides = [1, 1]} : vector<16x64xf32> to vector<1x64xf32>
    %301 = vector.broadcast %299 : vector<16x1xf32> to vector<16x64xf32>
    %302 = vector.broadcast %300 : vector<1x64xf32> to vector<16x64xf32>
    %303 = arith.mulf %301, %302 : vector<16x64xf32>
    %304 = arith.addf %298, %303 : vector<16x64xf32>
    %305 = vector.extract_strided_slice %101 {offsets = [0, 12], sizes = [16, 1], strides = [1, 1]} : vector<16x16xf32> to vector<16x1xf32>
    %306 = vector.broadcast %305 : vector<16x1xf32> to vector<16x64xf32>
    %307 = arith.mulf %306, %304 : vector<16x64xf32>
    %cst_69 = arith.constant dense<0.000000e+00> : vector<64xf32>
    %308 = vector.multi_reduction <add>, %307, %cst_69 [0] : vector<16x64xf32> to vector<64xf32>
    %309 = vector.shape_cast %308 : vector<64xf32> to vector<1x64xf32>
    %310 = vector.extract_strided_slice %93 {offsets = [13, 0], sizes = [1, 64], strides = [1, 1]} : vector<16x64xf32> to vector<1x64xf32>
    %311 = vector.broadcast %310 : vector<1x64xf32> to vector<16x64xf32>
    %312 = arith.mulf %311, %88 : vector<16x64xf32>
    %313 = math.exp %312 : vector<16x64xf32>
    %314 = arith.mulf %313, %304 : vector<16x64xf32>
    %315 = vector.extract_strided_slice %98 {offsets = [0, 13], sizes = [16, 1], strides = [1, 1]} : vector<16x16xf32> to vector<16x1xf32>
    %316 = vector.extract_strided_slice %95 {offsets = [13, 0], sizes = [1, 64], strides = [1, 1]} : vector<16x64xf32> to vector<1x64xf32>
    %317 = vector.broadcast %315 : vector<16x1xf32> to vector<16x64xf32>
    %318 = vector.broadcast %316 : vector<1x64xf32> to vector<16x64xf32>
    %319 = arith.mulf %317, %318 : vector<16x64xf32>
    %320 = arith.addf %314, %319 : vector<16x64xf32>
    %321 = vector.extract_strided_slice %101 {offsets = [0, 13], sizes = [16, 1], strides = [1, 1]} : vector<16x16xf32> to vector<16x1xf32>
    %322 = vector.broadcast %321 : vector<16x1xf32> to vector<16x64xf32>
    %323 = arith.mulf %322, %320 : vector<16x64xf32>
    %cst_70 = arith.constant dense<0.000000e+00> : vector<64xf32>
    %324 = vector.multi_reduction <add>, %323, %cst_70 [0] : vector<16x64xf32> to vector<64xf32>
    %325 = vector.shape_cast %324 : vector<64xf32> to vector<1x64xf32>
    %326 = vector.extract_strided_slice %93 {offsets = [14, 0], sizes = [1, 64], strides = [1, 1]} : vector<16x64xf32> to vector<1x64xf32>
    %327 = vector.broadcast %326 : vector<1x64xf32> to vector<16x64xf32>
    %328 = arith.mulf %327, %88 : vector<16x64xf32>
    %329 = math.exp %328 : vector<16x64xf32>
    %330 = arith.mulf %329, %320 : vector<16x64xf32>
    %331 = vector.extract_strided_slice %98 {offsets = [0, 14], sizes = [16, 1], strides = [1, 1]} : vector<16x16xf32> to vector<16x1xf32>
    %332 = vector.extract_strided_slice %95 {offsets = [14, 0], sizes = [1, 64], strides = [1, 1]} : vector<16x64xf32> to vector<1x64xf32>
    %333 = vector.broadcast %331 : vector<16x1xf32> to vector<16x64xf32>
    %334 = vector.broadcast %332 : vector<1x64xf32> to vector<16x64xf32>
    %335 = arith.mulf %333, %334 : vector<16x64xf32>
    %336 = arith.addf %330, %335 : vector<16x64xf32>
    %337 = vector.extract_strided_slice %101 {offsets = [0, 14], sizes = [16, 1], strides = [1, 1]} : vector<16x16xf32> to vector<16x1xf32>
    %338 = vector.broadcast %337 : vector<16x1xf32> to vector<16x64xf32>
    %339 = arith.mulf %338, %336 : vector<16x64xf32>
    %cst_71 = arith.constant dense<0.000000e+00> : vector<64xf32>
    %340 = vector.multi_reduction <add>, %339, %cst_71 [0] : vector<16x64xf32> to vector<64xf32>
    %341 = vector.shape_cast %340 : vector<64xf32> to vector<1x64xf32>
    %342 = vector.extract_strided_slice %93 {offsets = [15, 0], sizes = [1, 64], strides = [1, 1]} : vector<16x64xf32> to vector<1x64xf32>
    %343 = vector.broadcast %342 : vector<1x64xf32> to vector<16x64xf32>
    %344 = arith.mulf %343, %88 : vector<16x64xf32>
    %345 = math.exp %344 : vector<16x64xf32>
    %346 = arith.mulf %345, %336 : vector<16x64xf32>
    %347 = vector.extract_strided_slice %98 {offsets = [0, 15], sizes = [16, 1], strides = [1, 1]} : vector<16x16xf32> to vector<16x1xf32>
    %348 = vector.extract_strided_slice %95 {offsets = [15, 0], sizes = [1, 64], strides = [1, 1]} : vector<16x64xf32> to vector<1x64xf32>
    %349 = vector.broadcast %347 : vector<16x1xf32> to vector<16x64xf32>
    %350 = vector.broadcast %348 : vector<1x64xf32> to vector<16x64xf32>
    %351 = arith.mulf %349, %350 : vector<16x64xf32>
    %352 = arith.addf %346, %351 : vector<16x64xf32>
    %353 = vector.extract_strided_slice %101 {offsets = [0, 15], sizes = [16, 1], strides = [1, 1]} : vector<16x16xf32> to vector<16x1xf32>
    %354 = vector.broadcast %353 : vector<16x1xf32> to vector<16x64xf32>
    %355 = arith.mulf %354, %352 : vector<16x64xf32>
    %cst_72 = arith.constant dense<0.000000e+00> : vector<64xf32>
    %356 = vector.multi_reduction <add>, %355, %cst_72 [0] : vector<16x64xf32> to vector<64xf32>
    %357 = vector.shape_cast %356 : vector<64xf32> to vector<1x64xf32>
    %358 = tpu.concatenate %117, %133, %149, %165, %181, %197, %213, %229, %245, %261, %277, %293, %309, %325, %341, %357 in 0 : vector<1x64xf32>, vector<1x64xf32>, vector<1x64xf32>, vector<1x64xf32>, vector<1x64xf32>, vector<1x64xf32>, vector<1x64xf32>, vector<1x64xf32>, vector<1x64xf32>, vector<1x64xf32>, vector<1x64xf32>, vector<1x64xf32>, vector<1x64xf32>, vector<1x64xf32>, vector<1x64xf32>, vector<1x64xf32> -> vector<16x64xf32>
    %c8_i32 = arith.constant 8 : i32
    %359 = arith.addi %c8_i32, %91 : i32
    %360 = arith.index_cast %359 : i32 to index
    %c0_73 = arith.constant 0 : index
    %361 = vector.load %arg15[%360, %c0_73] : memref<24x64xf32, #tpu.memory_space<vmem>>, vector<16x64xf32>
    tpu.vector_store %arg15[%360, %c0_73], %358 {strides = array<i32>} : memref<24x64xf32, #tpu.memory_space<vmem>>, vector<16x64xf32>,
    %c1_i32 = arith.constant 1 : i32
    %c0_74 = arith.constant 0 : index
    %c0_75 = arith.constant 0 : index
    %362 = vector.load %arg21[%c0_74, %c0_75] : memref<16x64xf32, #tpu.memory_space<vmem>>, vector<16x64xf32>
    tpu.vector_store %arg21[%c0_74, %c0_75], %352 {strides = array<i32>} : memref<16x64xf32, #tpu.memory_space<vmem>>, vector<16x64xf32>,
    %c8_76 = arith.constant 8 : index
    %c0_77 = arith.constant 0 : index
    %363 = vector.load %arg15[%c8_76, %c0_77] : memref<24x64xf32, #tpu.memory_space<vmem>>, vector<16x64xf32>
    %c0_78 = arith.constant 0 : index
    %c0_79 = arith.constant 0 : index
    %364 = vector.load %arg12[%c0_78, %c0_79] : memref<1x64xf32, #tpu.memory_space<vmem>>, vector<1x64xf32>
    %365 = vector.broadcast %364 : vector<1x64xf32> to vector<16x64xf32>
    %366 = arith.mulf %365, %65 : vector<16x64xf32>
    %367 = arith.addf %363, %366 : vector<16x64xf32>
    %cst_80 = arith.constant 0.000000e+00 : f32
    %368 = vector.broadcast %cst_80 : f32 to vector<16x64xf32>
    %369 = arith.subf %368, %31 : vector<16x64xf32>
    %370 = math.exp %369 : vector<16x64xf32>
    %cst_81 = arith.constant 1.000000e+00 : f32
    %371 = vector.broadcast %cst_81 : f32 to vector<16x64xf32>
    %372 = arith.addf %371, %370 : vector<16x64xf32>
    %373 = tpu.reciprocal %372 {approx = true} : vector<16x64xf32> -> vector<16x64xf32>
    %374 = arith.mulf %31, %373 : vector<16x64xf32>
    %375 = arith.mulf %367, %374 : vector<16x64xf32>
    %376 = arith.truncf %375 : vector<16x64xf32> to vector<16x64xbf16>
    %c0_82 = arith.constant 0 : index
    %c0_83 = arith.constant 0 : index
    %377 = vector.load %arg13[%c0_82, %c0_83] : memref<64x32xbf16, #tpu.memory_space<vmem>>, vector<64x32xbf16>
    %cst_84 = arith.constant dense<0.000000e+00> : vector<16x32xf32>
    %378 = tpu.matmul %376, %377, %cst_84 {dimension_numbers = #tpu.dot_dimension_numbers<[1], [0], [0], [1], [0, 0, 1, 1], [], []>} : vector<16x64xbf16>, vector<64x32xbf16>, vector<16x32xf32> -> vector<16x32xf32>
    %379 = arith.addf %378, %4 : vector<16x32xf32>
    %c0_85 = arith.constant 0 : index
    %c0_86 = arith.constant 0 : index
    %c0_87 = arith.constant 0 : index
    %380 = vector.load %arg14[%c0_85, %c0_86, %c0_87] : memref<1x16x32xf32, #tpu.memory_space<vmem>>, vector<1x16x32xf32>
    %381 = vector.shape_cast %380 : vector<1x16x32xf32> to vector<16x32xf32>
    %382 = vector.shape_cast %379 : vector<16x32xf32> to vector<1x16x32xf32>
    tpu.vector_store %arg14[%c0_85, %c0_86, %c0_87], %382 {strides = array<i32>} : memref<1x16x32xf32, #tpu.memory_space<vmem>>, vector<1x16x32xf32>,
    return
  }
  func.func @transform_0(%arg0: i32, %arg1: i32) -> (i32, i32, i32) {
    %c0_i32 = arith.constant 0 : i32
    %c0_i32_0 = arith.constant 0 : i32
    return %arg0, %arg1, %c0_i32 : i32, i32, i32
  }
  func.func @transform_1(%arg0: i32, %arg1: i32) -> (i32, i32) {
    %c0_i32 = arith.constant 0 : i32
    %c0_i32_0 = arith.constant 0 : i32
    %c0_i32_1 = arith.constant 0 : i32
    return %c0_i32, %c0_i32_0 : i32, i32
  }
  func.func @transform_2(%arg0: i32, %arg1: i32) -> (i32, i32) {
    %c0_i32 = arith.constant 0 : i32
    %c0_i32_0 = arith.constant 0 : i32
    %c0_i32_1 = arith.constant 0 : i32
    return %c0_i32, %c0_i32_0 : i32, i32
  }
  func.func @transform_3(%arg0: i32, %arg1: i32) -> (i32, i32) {
    %c0_i32 = arith.constant 0 : i32
    %c0_i32_0 = arith.constant 0 : i32
    %c0_i32_1 = arith.constant 0 : i32
    return %c0_i32, %c0_i32_0 : i32, i32
  }
  func.func @transform_4(%arg0: i32, %arg1: i32) -> (i32, i32) {
    %c0_i32 = arith.constant 0 : i32
    %c0_i32_0 = arith.constant 0 : i32
    %c0_i32_1 = arith.constant 0 : i32
    return %c0_i32, %c0_i32_0 : i32, i32
  }
  func.func @transform_5(%arg0: i32, %arg1: i32) -> (i32, i32) {
    %c0_i32 = arith.constant 0 : i32
    %c0_i32_0 = arith.constant 0 : i32
    %c0_i32_1 = arith.constant 0 : i32
    return %c0_i32, %c0_i32_0 : i32, i32
  }
  func.func @transform_6(%arg0: i32, %arg1: i32) -> (i32, i32) {
    %c0_i32 = arith.constant 0 : i32
    %c0_i32_0 = arith.constant 0 : i32
    %c0_i32_1 = arith.constant 0 : i32
    return %c0_i32, %c0_i32_0 : i32, i32
  }
  func.func @transform_7(%arg0: i32, %arg1: i32) -> (i32, i32) {
    %c0_i32 = arith.constant 0 : i32
    %c0_i32_0 = arith.constant 0 : i32
    %c0_i32_1 = arith.constant 0 : i32
    return %c0_i32, %c0_i32_0 : i32, i32
  }
  func.func @transform_8(%arg0: i32, %arg1: i32) -> (i32, i32) {
    %c0_i32 = arith.constant 0 : i32
    %c0_i32_0 = arith.constant 0 : i32
    %c0_i32_1 = arith.constant 0 : i32
    return %c0_i32, %c0_i32_0 : i32, i32
  }
  func.func @transform_9(%arg0: i32, %arg1: i32) -> (i32, i32) {
    %c0_i32 = arith.constant 0 : i32
    %c0_i32_0 = arith.constant 0 : i32
    %c0_i32_1 = arith.constant 0 : i32
    return %c0_i32, %c0_i32_0 : i32, i32
  }
  func.func @transform_10(%arg0: i32, %arg1: i32) -> (i32, i32) {
    %c0_i32 = arith.constant 0 : i32
    %c0_i32_0 = arith.constant 0 : i32
    %c0_i32_1 = arith.constant 0 : i32
    return %c0_i32, %c0_i32_0 : i32, i32
  }
  func.func @transform_11(%arg0: i32, %arg1: i32) -> (i32, i32) {
    %c0_i32 = arith.constant 0 : i32
    %c0_i32_0 = arith.constant 0 : i32
    %c0_i32_1 = arith.constant 0 : i32
    return %c0_i32, %c0_i32_0 : i32, i32
  }
  func.func @transform_12(%arg0: i32, %arg1: i32) -> (i32, i32, i32) {
    %c0_i32 = arith.constant 0 : i32
    %c0_i32_0 = arith.constant 0 : i32
    return %arg0, %arg1, %c0_i32 : i32, i32, i32
  }
}

module attributes {stable_mosaic.version = 11 : i64} {
  func.func @ssm_block_kernel(%arg0: i32, %arg1: i32, %arg2: memref<1x16x32xf32, #tpu.memory_space<vmem>>, %arg3: memref<1x32xf32, #tpu.memory_space<vmem>>, %arg4: memref<1x32xf32, #tpu.memory_space<vmem>>, %arg5: memref<32x128xbf16, #tpu.memory_space<vmem>>, %arg6: memref<4x64xf32, #tpu.memory_space<vmem>>, %arg7: memref<1x64xf32, #tpu.memory_space<vmem>>, %arg8: memref<64x128xf32, #tpu.memory_space<vmem>>, %arg9: memref<2x64xf32, #tpu.memory_space<vmem>>, %arg10: memref<1x64xf32, #tpu.memory_space<vmem>>, %arg11: memref<16x64xf32, #tpu.memory_space<vmem>>, %arg12: memref<1x64xf32, #tpu.memory_space<vmem>>, %arg13: memref<64x32xbf16, #tpu.memory_space<vmem>>, %arg14: memref<1x16x32xf32, #tpu.memory_space<vmem>>, %arg15: memref<24x64xf32, #tpu.memory_space<vmem>>, %arg16: memref<8x64xf32, #tpu.memory_space<vmem>>, %arg17: memref<16x64xf32, #tpu.memory_space<vmem>>, %arg18: memref<16x64xf32, #tpu.memory_space<vmem>>, %arg19: memref<16x16xf32, #tpu.memory_space<vmem>>, %arg20: memref<16x16xf32, #tpu.memory_space<vmem>>, %arg21: memref<16x64xf32, #tpu.memory_space<vmem>>) attributes {dimension_semantics = [#tpu.dimension_semantics<parallel>, #tpu.dimension_semantics<arbitrary>], iteration_bounds = array<i64: 2, 1>, scalar_prefetch = 0 : i64, scratch_operands = 7 : i64, tpu.core_type = #tpu.core_type<tc>, window_params = [{transform_indices = @transform_0, window_bounds = array<i64: 1, 16, 32>}, {pipeline_mode = #tpu.pipeline_mode<synchronous>, transform_indices = @transform_1, window_bounds = array<i64: 1, 32>}, {pipeline_mode = #tpu.pipeline_mode<synchronous>, transform_indices = @transform_2, window_bounds = array<i64: 1, 32>}, {pipeline_mode = #tpu.pipeline_mode<synchronous>, transform_indices = @transform_3, window_bounds = array<i64: 32, 128>}, {pipeline_mode = #tpu.pipeline_mode<synchronous>, transform_indices = @transform_4, window_bounds = array<i64: 4, 64>}, {pipeline_mode = #tpu.pipeline_mode<synchronous>, transform_indices = @transform_5, window_bounds = array<i64: 1, 64>}, {pipeline_mode = #tpu.pipeline_mode<synchronous>, transform_indices = @transform_6, window_bounds = array<i64: 64, 128>}, {pipeline_mode = #tpu.pipeline_mode<synchronous>, transform_indices = @transform_7, window_bounds = array<i64: 2, 64>}, {pipeline_mode = #tpu.pipeline_mode<synchronous>, transform_indices = @transform_8, window_bounds = array<i64: 1, 64>}, {pipeline_mode = #tpu.pipeline_mode<synchronous>, transform_indices = @transform_9, window_bounds = array<i64: 16, 64>}, {pipeline_mode = #tpu.pipeline_mode<synchronous>, transform_indices = @transform_10, window_bounds = array<i64: 1, 64>}, {pipeline_mode = #tpu.pipeline_mode<synchronous>, transform_indices = @transform_11, window_bounds = array<i64: 64, 32>}, {transform_indices = @transform_12, window_bounds = array<i64: 1, 16, 32>}]} {
    %c0_i32 = arith.constant 0 : i32
    %0 = arith.cmpi eq, %arg1, %c0_i32 : i32
    %1 = arith.extui %0 : i1 to i32
    %c0_i32_0 = arith.constant 0 : i32
    %2 = arith.cmpi ne, %1, %c0_i32_0 : i32
    scf.if %2 {
      %cst_88 = arith.constant 0.000000e+00 : f32
      %383 = vector.broadcast %cst_88 : f32 to vector<16x64xf32>
      %c0_89 = arith.constant 0 : index
      %c0_90 = arith.constant 0 : index
      %384 = vector.load %arg21[%c0_89, %c0_90] : memref<16x64xf32, #tpu.memory_space<vmem>>, vector<16x64xf32>
      tpu.vector_store %arg21[%c0_89, %c0_90], %383 {strides = array<i32>} : memref<16x64xf32, #tpu.memory_space<vmem>>, vector<16x64xf32>,
      %cst_91 = arith.constant 0.000000e+00 : f32
      %385 = vector.broadcast %cst_91 : f32 to vector<8x64xf32>
      %c0_92 = arith.constant 0 : index
      %c0_93 = arith.constant 0 : index
      %386 = vector.load %arg16[%c0_92, %c0_93] : memref<8x64xf32, #tpu.memory_space<vmem>>, vector<8x64xf32>
      tpu.vector_store %arg16[%c0_92, %c0_93], %385 {strides = array<i32>} : memref<8x64xf32, #tpu.memory_space<vmem>>, vector<8x64xf32>,
    } else {
    }
    %c0 = arith.constant 0 : index
    %c0_1 = arith.constant 0 : index
    %c0_2 = arith.constant 0 : index
    %3 = vector.load %arg2[%c0, %c0_1, %c0_2] : memref<1x16x32xf32, #tpu.memory_space<vmem>>, vector<1x16x32xf32>
    %4 = vector.shape_cast %3 : vector<1x16x32xf32> to vector<16x32xf32>
    %cst = arith.constant dense<0.000000e+00> : vector<16xf32>
    %5 = vector.multi_reduction <add>, %4, %cst [1] : vector<16x32xf32> to vector<16xf32>
    %6 = vector.shape_cast %5 : vector<16xf32> to vector<16x1xf32>
    %cst_3 = arith.constant 3.200000e+01 : f32
    %7 = vector.broadcast %cst_3 : f32 to vector<16x1xf32>
    %8 = arith.divf %6, %7 : vector<16x1xf32>
    %9 = vector.broadcast %8 : vector<16x1xf32> to vector<16x32xf32>
    %10 = arith.subf %4, %9 : vector<16x32xf32>
    %11 = arith.mulf %10, %10 : vector<16x32xf32>
    %cst_4 = arith.constant dense<0.000000e+00> : vector<16xf32>
    %12 = vector.multi_reduction <add>, %11, %cst_4 [1] : vector<16x32xf32> to vector<16xf32>
    %13 = vector.shape_cast %12 : vector<16xf32> to vector<16x1xf32>
    %cst_5 = arith.constant 3.200000e+01 : f32
    %14 = vector.broadcast %cst_5 : f32 to vector<16x1xf32>
    %15 = arith.divf %13, %14 : vector<16x1xf32>
    %cst_6 = arith.constant 9.99999974E-6 : f32
    %16 = vector.broadcast %cst_6 : f32 to vector<16x1xf32>
    %17 = arith.addf %15, %16 : vector<16x1xf32>
    %18 = math.rsqrt %17 : vector<16x1xf32>
    %19 = vector.broadcast %18 : vector<16x1xf32> to vector<16x32xf32>
    %20 = arith.mulf %10, %19 : vector<16x32xf32>
    %c0_7 = arith.constant 0 : index
    %c0_8 = arith.constant 0 : index
    %21 = vector.load %arg3[%c0_7, %c0_8] : memref<1x32xf32, #tpu.memory_space<vmem>>, vector<1x32xf32>
    %22 = vector.broadcast %21 : vector<1x32xf32> to vector<16x32xf32>
    %23 = arith.mulf %20, %22 : vector<16x32xf32>
    %c0_9 = arith.constant 0 : index
    %c0_10 = arith.constant 0 : index
    %24 = vector.load %arg4[%c0_9, %c0_10] : memref<1x32xf32, #tpu.memory_space<vmem>>, vector<1x32xf32>
    %25 = vector.broadcast %24 : vector<1x32xf32> to vector<16x32xf32>
    %26 = arith.addf %23, %25 : vector<16x32xf32>
    %27 = arith.truncf %26 : vector<16x32xf32> to vector<16x32xbf16>
    %c0_11 = arith.constant 0 : index
    %c0_12 = arith.constant 0 : index
    %28 = vector.load %arg5[%c0_11, %c0_12] : memref<32x128xbf16, #tpu.memory_space<vmem>>, vector<32x128xbf16>
    %cst_13 = arith.constant dense<0.000000e+00> : vector<16x128xf32>
    %29 = tpu.matmul %27, %28, %cst_13 {dimension_numbers = #tpu.dot_dimension_numbers<[1], [0], [0], [1], [0, 0, 1, 1], [], []>} : vector<16x32xbf16>, vector<32x128xbf16>, vector<16x128xf32> -> vector<16x128xf32>
    %30 = vector.extract_strided_slice %29 {offsets = [0, 0], sizes = [16, 64], strides = [1, 1]} : vector<16x128xf32> to vector<16x64xf32>
    %31 = vector.extract_strided_slice %29 {offsets = [0, 64], sizes = [16, 64], strides = [1, 1]} : vector<16x128xf32> to vector<16x64xf32>
    %c0_14 = arith.constant 0 : index
    %c0_15 = arith.constant 0 : index
    %32 = vector.load %arg16[%c0_14, %c0_15] : memref<8x64xf32, #tpu.memory_space<vmem>>, vector<8x64xf32>
    %c0_16 = arith.constant 0 : index
    %c0_17 = arith.constant 0 : index
    %33 = vector.load %arg15[%c0_16, %c0_17] : memref<24x64xf32, #tpu.memory_space<vmem>>, vector<8x64xf32>
    tpu.vector_store %arg15[%c0_16, %c0_17], %32 {strides = array<i32>} : memref<24x64xf32, #tpu.memory_space<vmem>>, vector<8x64xf32>,
    %c8 = arith.constant 8 : index
    %c0_18 = arith.constant 0 : index
    %34 = vector.load %arg15[%c8, %c0_18] : memref<24x64xf32, #tpu.memory_space<vmem>>, vector<16x64xf32>
    tpu.vector_store %arg15[%c8, %c0_18], %30 {strides = array<i32>} : memref<24x64xf32, #tpu.memory_space<vmem>>, vector<16x64xf32>,
    %35 = vector.extract_strided_slice %30 {offsets = [8, 0], sizes = [8, 64], strides = [1, 1]} : vector<16x64xf32> to vector<8x64xf32>
    %c0_19 = arith.constant 0 : index
    %c0_20 = arith.constant 0 : index
    %36 = vector.load %arg16[%c0_19, %c0_20] : memref<8x64xf32, #tpu.memory_space<vmem>>, vector<8x64xf32>
    tpu.vector_store %arg16[%c0_19, %c0_20], %35 {strides = array<i32>} : memref<8x64xf32, #tpu.memory_space<vmem>>, vector<8x64xf32>,
    %c0_21 = arith.constant 0 : index
    %c0_22 = arith.constant 0 : index
    %37 = vector.load %arg6[%c0_21, %c0_22] : memref<4x64xf32, #tpu.memory_space<vmem>>, vector<4x64xf32>
    %c0_23 = arith.constant 0 : index
    %c0_24 = arith.constant 0 : index
    %38 = vector.load %arg7[%c0_23, %c0_24] : memref<1x64xf32, #tpu.memory_space<vmem>>, vector<1x64xf32>
    %39 = vector.extract_strided_slice %37 {offsets = [3, 0], sizes = [1, 64], strides = [1, 1]} : vector<4x64xf32> to vector<1x64xf32>
    %40 = vector.broadcast %39 : vector<1x64xf32> to vector<16x64xf32>
    %41 = arith.mulf %40, %30 : vector<16x64xf32>
    %42 = vector.broadcast %38 : vector<1x64xf32> to vector<16x64xf32>
    %43 = arith.addf %42, %41 : vector<16x64xf32>
    %c5 = arith.constant 5 : index
    %c0_25 = arith.constant 0 : index
    %44 = vector.load %arg15[%c5, %c0_25] : memref<24x64xf32, #tpu.memory_space<vmem>>, vector<16x64xf32>
    %45 = vector.extract_strided_slice %37 {offsets = [0, 0], sizes = [1, 64], strides = [1, 1]} : vector<4x64xf32> to vector<1x64xf32>
    %46 = vector.broadcast %45 : vector<1x64xf32> to vector<16x64xf32>
    %47 = arith.mulf %46, %44 : vector<16x64xf32>
    %48 = arith.addf %43, %47 : vector<16x64xf32>
    %c6 = arith.constant 6 : index
    %c0_26 = arith.constant 0 : index
    %49 = vector.load %arg15[%c6, %c0_26] : memref<24x64xf32, #tpu.memory_space<vmem>>, vector<16x64xf32>
    %50 = vector.extract_strided_slice %37 {offsets = [1, 0], sizes = [1, 64], strides = [1, 1]} : vector<4x64xf32> to vector<1x64xf32>
    %51 = vector.broadcast %50 : vector<1x64xf32> to vector<16x64xf32>
    %52 = arith.mulf %51, %49 : vector<16x64xf32>
    %53 = arith.addf %48, %52 : vector<16x64xf32>
    %c7 = arith.constant 7 : index
    %c0_27 = arith.constant 0 : index
    %54 = vector.load %arg15[%c7, %c0_27] : memref<24x64xf32, #tpu.memory_space<vmem>>, vector<16x64xf32>
    %55 = vector.extract_strided_slice %37 {offsets = [2, 0], sizes = [1, 64], strides = [1, 1]} : vector<4x64xf32> to vector<1x64xf32>
    %56 = vector.broadcast %55 : vector<1x64xf32> to vector<16x64xf32>
    %57 = arith.mulf %56, %54 : vector<16x64xf32>
    %58 = arith.addf %53, %57 : vector<16x64xf32>
    %cst_28 = arith.constant 0.000000e+00 : f32
    %59 = vector.broadcast %cst_28 : f32 to vector<16x64xf32>
    %60 = arith.subf %59, %58 : vector<16x64xf32>
    %61 = math.exp %60 : vector<16x64xf32>
    %cst_29 = arith.constant 1.000000e+00 : f32
    %62 = vector.broadcast %cst_29 : f32 to vector<16x64xf32>
    %63 = arith.addf %62, %61 : vector<16x64xf32>
    %64 = tpu.reciprocal %63 {approx = true} : vector<16x64xf32> -> vector<16x64xf32>
    %65 = arith.mulf %58, %64 : vector<16x64xf32>
    %c0_30 = arith.constant 0 : index
    %c0_31 = arith.constant 0 : index
    %66 = vector.load %arg8[%c0_30, %c0_31] : memref<64x128xf32, #tpu.memory_space<vmem>>, vector<64x128xf32>
    %cst_32 = arith.constant dense<0.000000e+00> : vector<16x128xf32>
    %67 = tpu.matmul %65, %66, %cst_32 {dimension_numbers = #tpu.dot_dimension_numbers<[1], [0], [0], [1], [0, 0, 1, 1], [], []>} : vector<16x64xf32>, vector<64x128xf32>, vector<16x128xf32> -> vector<16x128xf32>
    %68 = vector.extract_strided_slice %67 {offsets = [0, 0], sizes = [16, 2], strides = [1, 1]} : vector<16x128xf32> to vector<16x2xf32>
    %69 = vector.extract_strided_slice %67 {offsets = [0, 2], sizes = [16, 16], strides = [1, 1]} : vector<16x128xf32> to vector<16x16xf32>
    %70 = vector.extract_strided_slice %67 {offsets = [0, 18], sizes = [16, 16], strides = [1, 1]} : vector<16x128xf32> to vector<16x16xf32>
    %c0_33 = arith.constant 0 : index
    %c0_34 = arith.constant 0 : index
    %71 = vector.load %arg9[%c0_33, %c0_34] : memref<2x64xf32, #tpu.memory_space<vmem>>, vector<2x64xf32>
    %cst_35 = arith.constant dense<0.000000e+00> : vector<16x64xf32>
    %72 = tpu.matmul %68, %71, %cst_35 {dimension_numbers = #tpu.dot_dimension_numbers<[1], [0], [0], [1], [0, 0, 1, 1], [], []>} : vector<16x2xf32>, vector<2x64xf32>, vector<16x64xf32> -> vector<16x64xf32>
    %c0_36 = arith.constant 0 : index
    %c0_37 = arith.constant 0 : index
    %73 = vector.load %arg10[%c0_36, %c0_37] : memref<1x64xf32, #tpu.memory_space<vmem>>, vector<1x64xf32>
    %74 = vector.broadcast %73 : vector<1x64xf32> to vector<16x64xf32>
    %75 = arith.addf %72, %74 : vector<16x64xf32>
    %cst_38 = arith.constant 2.000000e+01 : f32
    %76 = vector.broadcast %cst_38 : f32 to vector<16x64xf32>
    %77 = arith.cmpf ogt, %75, %76 : vector<16x64xf32>
    %cst_39 = arith.constant 2.000000e+01 : f32
    %78 = vector.broadcast %cst_39 : f32 to vector<16x64xf32>
    %79 = arith.minimumf %75, %78 : vector<16x64xf32>
    %80 = math.exp %79 : vector<16x64xf32>
    %81 = math.log1p %80 : vector<16x64xf32>
    %82 = arith.select %77, %75, %81 : vector<16x64xi1>, vector<16x64xf32>
    %c0_40 = arith.constant 0 : index
    %c0_41 = arith.constant 0 : index
    %83 = vector.load %arg17[%c0_40, %c0_41] : memref<16x64xf32, #tpu.memory_space<vmem>>, vector<16x64xf32>
    tpu.vector_store %arg17[%c0_40, %c0_41], %82 {strides = array<i32>} : memref<16x64xf32, #tpu.memory_space<vmem>>, vector<16x64xf32>,
    %84 = arith.mulf %82, %65 : vector<16x64xf32>
    %c0_42 = arith.constant 0 : index
    %c0_43 = arith.constant 0 : index
    %85 = vector.load %arg18[%c0_42, %c0_43] : memref<16x64xf32, #tpu.memory_space<vmem>>, vector<16x64xf32>
    tpu.vector_store %arg18[%c0_42, %c0_43], %84 {strides = array<i32>} : memref<16x64xf32, #tpu.memory_space<vmem>>, vector<16x64xf32>,
    %c0_44 = arith.constant 0 : index
    %c0_45 = arith.constant 0 : index
    %86 = vector.load %arg19[%c0_44, %c0_45] : memref<16x16xf32, #tpu.memory_space<vmem>>, vector<16x16xf32>
    tpu.vector_store %arg19[%c0_44, %c0_45], %69 {strides = array<i32>} : memref<16x16xf32, #tpu.memory_space<vmem>>, vector<16x16xf32>,
    %c0_46 = arith.constant 0 : index
    %c0_47 = arith.constant 0 : index
    %87 = vector.load %arg20[%c0_46, %c0_47] : memref<16x16xf32, #tpu.memory_space<vmem>>, vector<16x16xf32>
    tpu.vector_store %arg20[%c0_46, %c0_47], %70 {strides = array<i32>} : memref<16x16xf32, #tpu.memory_space<vmem>>, vector<16x16xf32>,
    %c0_48 = arith.constant 0 : index
    %c0_49 = arith.constant 0 : index
    %88 = vector.load %arg11[%c0_48, %c0_49] : memref<16x64xf32, #tpu.memory_space<vmem>>, vector<16x64xf32>
    %c0_50 = arith.constant 0 : index
    %c0_51 = arith.constant 0 : index
    %89 = vector.load %arg21[%c0_50, %c0_51] : memref<16x64xf32, #tpu.memory_space<vmem>>, vector<16x64xf32>
    %c0_i32_52 = arith.constant 0 : i32
    %c16_i32 = arith.constant 16 : i32
    %90 = arith.muli %c0_i32_52, %c16_i32 : i32
    %91 = tpu.assume_multiple %90, 16 : i32
    %92 = arith.index_cast %91 : i32 to index
    %c0_53 = arith.constant 0 : index
    %93 = vector.load %arg17[%92, %c0_53] : memref<16x64xf32, #tpu.memory_space<vmem>>, vector<16x64xf32>
    %94 = arith.index_cast %91 : i32 to index
    %c0_54 = arith.constant 0 : index
    %95 = vector.load %arg18[%94, %c0_54] : memref<16x64xf32, #tpu.memory_space<vmem>>, vector<16x64xf32>
    %96 = arith.index_cast %91 : i32 to index
    %c0_55 = arith.constant 0 : index
    %97 = vector.load %arg19[%96, %c0_55] : memref<16x16xf32, #tpu.memory_space<vmem>>, vector<16x16xf32>
    %98 = tpu.transpose %97, [1, 0] : vector<16x16xf32> -> vector<16x16xf32>
    %99 = arith.index_cast %91 : i32 to index
    %c0_56 = arith.constant 0 : index
    %100 = vector.load %arg20[%99, %c0_56] : memref<16x16xf32, #tpu.memory_space<vmem>>, vector<16x16xf32>
    %101 = tpu.transpose %100, [1, 0] : vector<16x16xf32> -> vector<16x16xf32>
    %102 = vector.extract_strided_slice %93 {offsets = [0, 0], sizes = [1, 64], strides = [1, 1]} : vector<16x64xf32> to vector<1x64xf32>
    %103 = vector.broadcast %102 : vector<1x64xf32> to vector<16x64xf32>
    %104 = arith.mulf %103, %88 : vector<16x64xf32>
    %105 = math.exp %104 : vector<16x64xf32>
    %106 = arith.mulf %105, %89 : vector<16x64xf32>
    %107 = vector.extract_strided_slice %98 {offsets = [0, 0], sizes = [16, 1], strides = [1, 1]} : vector<16x16xf32> to vector<16x1xf32>
    %108 = vector.extract_strided_slice %95 {offsets = [0, 0], sizes = [1, 64], strides = [1, 1]} : vector<16x64xf32> to vector<1x64xf32>
    %109 = vector.broadcast %107 : vector<16x1xf32> to vector<16x64xf32>
    %110 = vector.broadcast %108 : vector<1x64xf32> to vector<16x64xf32>
    %111 = arith.mulf %109, %110 : vector<16x64xf32>
    %112 = arith.addf %106, %111 : vector<16x64xf32>
    %113 = vector.extract_strided_slice %101 {offsets = [0, 0], sizes = [16, 1], strides = [1, 1]} : vector<16x16xf32> to vector<16x1xf32>
    %114 = vector.broadcast %113 : vector<16x1xf32> to vector<16x64xf32>
    %115 = arith.mulf %114, %112 : vector<16x64xf32>
    %cst_57 = arith.constant dense<0.000000e+00> : vector<64xf32>
    %116 = vector.multi_reduction <add>, %115, %cst_57 [0] : vector<16x64xf32> to vector<64xf32>
    %117 = vector.shape_cast %116 : vector<64xf32> to vector<1x64xf32>
    %118 = vector.extract_strided_slice %93 {offsets = [1, 0], sizes = [1, 64], strides = [1, 1]} : vector<16x64xf32> to vector<1x64xf32>
    %119 = vector.broadcast %118 : vector<1x64xf32> to vector<16x64xf32>
    %120 = arith.mulf %119, %88 : vector<16x64xf32>
    %121 = math.exp %120 : vector<16x64xf32>
    %122 = arith.mulf %121, %112 : vector<16x64xf32>
    %123 = vector.extract_strided_slice %98 {offsets = [0, 1], sizes = [16, 1], strides = [1, 1]} : vector<16x16xf32> to vector<16x1xf32>
    %124 = vector.extract_strided_slice %95 {offsets = [1, 0], sizes = [1, 64], strides = [1, 1]} : vector<16x64xf32> to vector<1x64xf32>
    %125 = vector.broadcast %123 : vector<16x1xf32> to vector<16x64xf32>
    %126 = vector.broadcast %124 : vector<1x64xf32> to vector<16x64xf32>
    %127 = arith.mulf %125, %126 : vector<16x64xf32>
    %128 = arith.addf %122, %127 : vector<16x64xf32>
    %129 = vector.extract_strided_slice %101 {offsets = [0, 1], sizes = [16, 1], strides = [1, 1]} : vector<16x16xf32> to vector<16x1xf32>
    %130 = vector.broadcast %129 : vector<16x1xf32> to vector<16x64xf32>
    %131 = arith.mulf %130, %128 : vector<16x64xf32>
    %cst_58 = arith.constant dense<0.000000e+00> : vector<64xf32>
    %132 = vector.multi_reduction <add>, %131, %cst_58 [0] : vector<16x64xf32> to vector<64xf32>
    %133 = vector.shape_cast %132 : vector<64xf32> to vector<1x64xf32>
    %134 = vector.extract_strided_slice %93 {offsets = [2, 0], sizes = [1, 64], strides = [1, 1]} : vector<16x64xf32> to vector<1x64xf32>
    %135 = vector.broadcast %134 : vector<1x64xf32> to vector<16x64xf32>
    %136 = arith.mulf %135, %88 : vector<16x64xf32>
    %137 = math.exp %136 : vector<16x64xf32>
    %138 = arith.mulf %137, %128 : vector<16x64xf32>
    %139 = vector.extract_strided_slice %98 {offsets = [0, 2], sizes = [16, 1], strides = [1, 1]} : vector<16x16xf32> to vector<16x1xf32>
    %140 = vector.extract_strided_slice %95 {offsets = [2, 0], sizes = [1, 64], strides = [1, 1]} : vector<16x64xf32> to vector<1x64xf32>
    %141 = vector.broadcast %139 : vector<16x1xf32> to vector<16x64xf32>
    %142 = vector.broadcast %140 : vector<1x64xf32> to vector<16x64xf32>
    %143 = arith.mulf %141, %142 : vector<16x64xf32>
    %144 = arith.addf %138, %143 : vector<16x64xf32>
    %145 = vector.extract_strided_slice %101 {offsets = [0, 2], sizes = [16, 1], strides = [1, 1]} : vector<16x16xf32> to vector<16x1xf32>
    %146 = vector.broadcast %145 : vector<16x1xf32> to vector<16x64xf32>
    %147 = arith.mulf %146, %144 : vector<16x64xf32>
    %cst_59 = arith.constant dense<0.000000e+00> : vector<64xf32>
    %148 = vector.multi_reduction <add>, %147, %cst_59 [0] : vector<16x64xf32> to vector<64xf32>
    %149 = vector.shape_cast %148 : vector<64xf32> to vector<1x64xf32>
    %150 = vector.extract_strided_slice %93 {offsets = [3, 0], sizes = [1, 64], strides = [1, 1]} : vector<16x64xf32> to vector<1x64xf32>
    %151 = vector.broadcast %150 : vector<1x64xf32> to vector<16x64xf32>
    %152 = arith.mulf %151, %88 : vector<16x64xf32>
    %153 = math.exp %152 : vector<16x64xf32>
    %154 = arith.mulf %153, %144 : vector<16x64xf32>
    %155 = vector.extract_strided_slice %98 {offsets = [0, 3], sizes = [16, 1], strides = [1, 1]} : vector<16x16xf32> to vector<16x1xf32>
    %156 = vector.extract_strided_slice %95 {offsets = [3, 0], sizes = [1, 64], strides = [1, 1]} : vector<16x64xf32> to vector<1x64xf32>
    %157 = vector.broadcast %155 : vector<16x1xf32> to vector<16x64xf32>
    %158 = vector.broadcast %156 : vector<1x64xf32> to vector<16x64xf32>
    %159 = arith.mulf %157, %158 : vector<16x64xf32>
    %160 = arith.addf %154, %159 : vector<16x64xf32>
    %161 = vector.extract_strided_slice %101 {offsets = [0, 3], sizes = [16, 1], strides = [1, 1]} : vector<16x16xf32> to vector<16x1xf32>
    %162 = vector.broadcast %161 : vector<16x1xf32> to vector<16x64xf32>
    %163 = arith.mulf %162, %160 : vector<16x64xf32>
    %cst_60 = arith.constant dense<0.000000e+00> : vector<64xf32>
    %164 = vector.multi_reduction <add>, %163, %cst_60 [0] : vector<16x64xf32> to vector<64xf32>
    %165 = vector.shape_cast %164 : vector<64xf32> to vector<1x64xf32>
    %166 = vector.extract_strided_slice %93 {offsets = [4, 0], sizes = [1, 64], strides = [1, 1]} : vector<16x64xf32> to vector<1x64xf32>
    %167 = vector.broadcast %166 : vector<1x64xf32> to vector<16x64xf32>
    %168 = arith.mulf %167, %88 : vector<16x64xf32>
    %169 = math.exp %168 : vector<16x64xf32>
    %170 = arith.mulf %169, %160 : vector<16x64xf32>
    %171 = vector.extract_strided_slice %98 {offsets = [0, 4], sizes = [16, 1], strides = [1, 1]} : vector<16x16xf32> to vector<16x1xf32>
    %172 = vector.extract_strided_slice %95 {offsets = [4, 0], sizes = [1, 64], strides = [1, 1]} : vector<16x64xf32> to vector<1x64xf32>
    %173 = vector.broadcast %171 : vector<16x1xf32> to vector<16x64xf32>
    %174 = vector.broadcast %172 : vector<1x64xf32> to vector<16x64xf32>
    %175 = arith.mulf %173, %174 : vector<16x64xf32>
    %176 = arith.addf %170, %175 : vector<16x64xf32>
    %177 = vector.extract_strided_slice %101 {offsets = [0, 4], sizes = [16, 1], strides = [1, 1]} : vector<16x16xf32> to vector<16x1xf32>
    %178 = vector.broadcast %177 : vector<16x1xf32> to vector<16x64xf32>
    %179 = arith.mulf %178, %176 : vector<16x64xf32>
    %cst_61 = arith.constant dense<0.000000e+00> : vector<64xf32>
    %180 = vector.multi_reduction <add>, %179, %cst_61 [0] : vector<16x64xf32> to vector<64xf32>
    %181 = vector.shape_cast %180 : vector<64xf32> to vector<1x64xf32>
    %182 = vector.extract_strided_slice %93 {offsets = [5, 0], sizes = [1, 64], strides = [1, 1]} : vector<16x64xf32> to vector<1x64xf32>
    %183 = vector.broadcast %182 : vector<1x64xf32> to vector<16x64xf32>
    %184 = arith.mulf %183, %88 : vector<16x64xf32>
    %185 = math.exp %184 : vector<16x64xf32>
    %186 = arith.mulf %185, %176 : vector<16x64xf32>
    %187 = vector.extract_strided_slice %98 {offsets = [0, 5], sizes = [16, 1], strides = [1, 1]} : vector<16x16xf32> to vector<16x1xf32>
    %188 = vector.extract_strided_slice %95 {offsets = [5, 0], sizes = [1, 64], strides = [1, 1]} : vector<16x64xf32> to vector<1x64xf32>
    %189 = vector.broadcast %187 : vector<16x1xf32> to vector<16x64xf32>
    %190 = vector.broadcast %188 : vector<1x64xf32> to vector<16x64xf32>
    %191 = arith.mulf %189, %190 : vector<16x64xf32>
    %192 = arith.addf %186, %191 : vector<16x64xf32>
    %193 = vector.extract_strided_slice %101 {offsets = [0, 5], sizes = [16, 1], strides = [1, 1]} : vector<16x16xf32> to vector<16x1xf32>
    %194 = vector.broadcast %193 : vector<16x1xf32> to vector<16x64xf32>
    %195 = arith.mulf %194, %192 : vector<16x64xf32>
    %cst_62 = arith.constant dense<0.000000e+00> : vector<64xf32>
    %196 = vector.multi_reduction <add>, %195, %cst_62 [0] : vector<16x64xf32> to vector<64xf32>
    %197 = vector.shape_cast %196 : vector<64xf32> to vector<1x64xf32>
    %198 = vector.extract_strided_slice %93 {offsets = [6, 0], sizes = [1, 64], strides = [1, 1]} : vector<16x64xf32> to vector<1x64xf32>
    %199 = vector.broadcast %198 : vector<1x64xf32> to vector<16x64xf32>
    %200 = arith.mulf %199, %88 : vector<16x64xf32>
    %201 = math.exp %200 : vector<16x64xf32>
    %202 = arith.mulf %201, %192 : vector<16x64xf32>
    %203 = vector.extract_strided_slice %98 {offsets = [0, 6], sizes = [16, 1], strides = [1, 1]} : vector<16x16xf32> to vector<16x1xf32>
    %204 = vector.extract_strided_slice %95 {offsets = [6, 0], sizes = [1, 64], strides = [1, 1]} : vector<16x64xf32> to vector<1x64xf32>
    %205 = vector.broadcast %203 : vector<16x1xf32> to vector<16x64xf32>
    %206 = vector.broadcast %204 : vector<1x64xf32> to vector<16x64xf32>
    %207 = arith.mulf %205, %206 : vector<16x64xf32>
    %208 = arith.addf %202, %207 : vector<16x64xf32>
    %209 = vector.extract_strided_slice %101 {offsets = [0, 6], sizes = [16, 1], strides = [1, 1]} : vector<16x16xf32> to vector<16x1xf32>
    %210 = vector.broadcast %209 : vector<16x1xf32> to vector<16x64xf32>
    %211 = arith.mulf %210, %208 : vector<16x64xf32>
    %cst_63 = arith.constant dense<0.000000e+00> : vector<64xf32>
    %212 = vector.multi_reduction <add>, %211, %cst_63 [0] : vector<16x64xf32> to vector<64xf32>
    %213 = vector.shape_cast %212 : vector<64xf32> to vector<1x64xf32>
    %214 = vector.extract_strided_slice %93 {offsets = [7, 0], sizes = [1, 64], strides = [1, 1]} : vector<16x64xf32> to vector<1x64xf32>
    %215 = vector.broadcast %214 : vector<1x64xf32> to vector<16x64xf32>
    %216 = arith.mulf %215, %88 : vector<16x64xf32>
    %217 = math.exp %216 : vector<16x64xf32>
    %218 = arith.mulf %217, %208 : vector<16x64xf32>
    %219 = vector.extract_strided_slice %98 {offsets = [0, 7], sizes = [16, 1], strides = [1, 1]} : vector<16x16xf32> to vector<16x1xf32>
    %220 = vector.extract_strided_slice %95 {offsets = [7, 0], sizes = [1, 64], strides = [1, 1]} : vector<16x64xf32> to vector<1x64xf32>
    %221 = vector.broadcast %219 : vector<16x1xf32> to vector<16x64xf32>
    %222 = vector.broadcast %220 : vector<1x64xf32> to vector<16x64xf32>
    %223 = arith.mulf %221, %222 : vector<16x64xf32>
    %224 = arith.addf %218, %223 : vector<16x64xf32>
    %225 = vector.extract_strided_slice %101 {offsets = [0, 7], sizes = [16, 1], strides = [1, 1]} : vector<16x16xf32> to vector<16x1xf32>
    %226 = vector.broadcast %225 : vector<16x1xf32> to vector<16x64xf32>
    %227 = arith.mulf %226, %224 : vector<16x64xf32>
    %cst_64 = arith.constant dense<0.000000e+00> : vector<64xf32>
    %228 = vector.multi_reduction <add>, %227, %cst_64 [0] : vector<16x64xf32> to vector<64xf32>
    %229 = vector.shape_cast %228 : vector<64xf32> to vector<1x64xf32>
    %230 = vector.extract_strided_slice %93 {offsets = [8, 0], sizes = [1, 64], strides = [1, 1]} : vector<16x64xf32> to vector<1x64xf32>
    %231 = vector.broadcast %230 : vector<1x64xf32> to vector<16x64xf32>
    %232 = arith.mulf %231, %88 : vector<16x64xf32>
    %233 = math.exp %232 : vector<16x64xf32>
    %234 = arith.mulf %233, %224 : vector<16x64xf32>
    %235 = vector.extract_strided_slice %98 {offsets = [0, 8], sizes = [16, 1], strides = [1, 1]} : vector<16x16xf32> to vector<16x1xf32>
    %236 = vector.extract_strided_slice %95 {offsets = [8, 0], sizes = [1, 64], strides = [1, 1]} : vector<16x64xf32> to vector<1x64xf32>
    %237 = vector.broadcast %235 : vector<16x1xf32> to vector<16x64xf32>
    %238 = vector.broadcast %236 : vector<1x64xf32> to vector<16x64xf32>
    %239 = arith.mulf %237, %238 : vector<16x64xf32>
    %240 = arith.addf %234, %239 : vector<16x64xf32>
    %241 = vector.extract_strided_slice %101 {offsets = [0, 8], sizes = [16, 1], strides = [1, 1]} : vector<16x16xf32> to vector<16x1xf32>
    %242 = vector.broadcast %241 : vector<16x1xf32> to vector<16x64xf32>
    %243 = arith.mulf %242, %240 : vector<16x64xf32>
    %cst_65 = arith.constant dense<0.000000e+00> : vector<64xf32>
    %244 = vector.multi_reduction <add>, %243, %cst_65 [0] : vector<16x64xf32> to vector<64xf32>
    %245 = vector.shape_cast %244 : vector<64xf32> to vector<1x64xf32>
    %246 = vector.extract_strided_slice %93 {offsets = [9, 0], sizes = [1, 64], strides = [1, 1]} : vector<16x64xf32> to vector<1x64xf32>
    %247 = vector.broadcast %246 : vector<1x64xf32> to vector<16x64xf32>
    %248 = arith.mulf %247, %88 : vector<16x64xf32>
    %249 = math.exp %248 : vector<16x64xf32>
    %250 = arith.mulf %249, %240 : vector<16x64xf32>
    %251 = vector.extract_strided_slice %98 {offsets = [0, 9], sizes = [16, 1], strides = [1, 1]} : vector<16x16xf32> to vector<16x1xf32>
    %252 = vector.extract_strided_slice %95 {offsets = [9, 0], sizes = [1, 64], strides = [1, 1]} : vector<16x64xf32> to vector<1x64xf32>
    %253 = vector.broadcast %251 : vector<16x1xf32> to vector<16x64xf32>
    %254 = vector.broadcast %252 : vector<1x64xf32> to vector<16x64xf32>
    %255 = arith.mulf %253, %254 : vector<16x64xf32>
    %256 = arith.addf %250, %255 : vector<16x64xf32>
    %257 = vector.extract_strided_slice %101 {offsets = [0, 9], sizes = [16, 1], strides = [1, 1]} : vector<16x16xf32> to vector<16x1xf32>
    %258 = vector.broadcast %257 : vector<16x1xf32> to vector<16x64xf32>
    %259 = arith.mulf %258, %256 : vector<16x64xf32>
    %cst_66 = arith.constant dense<0.000000e+00> : vector<64xf32>
    %260 = vector.multi_reduction <add>, %259, %cst_66 [0] : vector<16x64xf32> to vector<64xf32>
    %261 = vector.shape_cast %260 : vector<64xf32> to vector<1x64xf32>
    %262 = vector.extract_strided_slice %93 {offsets = [10, 0], sizes = [1, 64], strides = [1, 1]} : vector<16x64xf32> to vector<1x64xf32>
    %263 = vector.broadcast %262 : vector<1x64xf32> to vector<16x64xf32>
    %264 = arith.mulf %263, %88 : vector<16x64xf32>
    %265 = math.exp %264 : vector<16x64xf32>
    %266 = arith.mulf %265, %256 : vector<16x64xf32>
    %267 = vector.extract_strided_slice %98 {offsets = [0, 10], sizes = [16, 1], strides = [1, 1]} : vector<16x16xf32> to vector<16x1xf32>
    %268 = vector.extract_strided_slice %95 {offsets = [10, 0], sizes = [1, 64], strides = [1, 1]} : vector<16x64xf32> to vector<1x64xf32>
    %269 = vector.broadcast %267 : vector<16x1xf32> to vector<16x64xf32>
    %270 = vector.broadcast %268 : vector<1x64xf32> to vector<16x64xf32>
    %271 = arith.mulf %269, %270 : vector<16x64xf32>
    %272 = arith.addf %266, %271 : vector<16x64xf32>
    %273 = vector.extract_strided_slice %101 {offsets = [0, 10], sizes = [16, 1], strides = [1, 1]} : vector<16x16xf32> to vector<16x1xf32>
    %274 = vector.broadcast %273 : vector<16x1xf32> to vector<16x64xf32>
    %275 = arith.mulf %274, %272 : vector<16x64xf32>
    %cst_67 = arith.constant dense<0.000000e+00> : vector<64xf32>
    %276 = vector.multi_reduction <add>, %275, %cst_67 [0] : vector<16x64xf32> to vector<64xf32>
    %277 = vector.shape_cast %276 : vector<64xf32> to vector<1x64xf32>
    %278 = vector.extract_strided_slice %93 {offsets = [11, 0], sizes = [1, 64], strides = [1, 1]} : vector<16x64xf32> to vector<1x64xf32>
    %279 = vector.broadcast %278 : vector<1x64xf32> to vector<16x64xf32>
    %280 = arith.mulf %279, %88 : vector<16x64xf32>
    %281 = math.exp %280 : vector<16x64xf32>
    %282 = arith.mulf %281, %272 : vector<16x64xf32>
    %283 = vector.extract_strided_slice %98 {offsets = [0, 11], sizes = [16, 1], strides = [1, 1]} : vector<16x16xf32> to vector<16x1xf32>
    %284 = vector.extract_strided_slice %95 {offsets = [11, 0], sizes = [1, 64], strides = [1, 1]} : vector<16x64xf32> to vector<1x64xf32>
    %285 = vector.broadcast %283 : vector<16x1xf32> to vector<16x64xf32>
    %286 = vector.broadcast %284 : vector<1x64xf32> to vector<16x64xf32>
    %287 = arith.mulf %285, %286 : vector<16x64xf32>
    %288 = arith.addf %282, %287 : vector<16x64xf32>
    %289 = vector.extract_strided_slice %101 {offsets = [0, 11], sizes = [16, 1], strides = [1, 1]} : vector<16x16xf32> to vector<16x1xf32>
    %290 = vector.broadcast %289 : vector<16x1xf32> to vector<16x64xf32>
    %291 = arith.mulf %290, %288 : vector<16x64xf32>
    %cst_68 = arith.constant dense<0.000000e+00> : vector<64xf32>
    %292 = vector.multi_reduction <add>, %291, %cst_68 [0] : vector<16x64xf32> to vector<64xf32>
    %293 = vector.shape_cast %292 : vector<64xf32> to vector<1x64xf32>
    %294 = vector.extract_strided_slice %93 {offsets = [12, 0], sizes = [1, 64], strides = [1, 1]} : vector<16x64xf32> to vector<1x64xf32>
    %295 = vector.broadcast %294 : vector<1x64xf32> to vector<16x64xf32>
    %296 = arith.mulf %295, %88 : vector<16x64xf32>
    %297 = math.exp %296 : vector<16x64xf32>
    %298 = arith.mulf %297, %288 : vector<16x64xf32>
    %299 = vector.extract_strided_slice %98 {offsets = [0, 12], sizes = [16, 1], strides = [1, 1]} : vector<16x16xf32> to vector<16x1xf32>
    %300 = vector.extract_strided_slice %95 {offsets = [12, 0], sizes = [1, 64], strides = [1, 1]} : vector<16x64xf32> to vector<1x64xf32>
    %301 = vector.broadcast %299 : vector<16x1xf32> to vector<16x64xf32>
    %302 = vector.broadcast %300 : vector<1x64xf32> to vector<16x64xf32>
    %303 = arith.mulf %301, %302 : vector<16x64xf32>
    %304 = arith.addf %298, %303 : vector<16x64xf32>
    %305 = vector.extract_strided_slice %101 {offsets = [0, 12], sizes = [16, 1], strides = [1, 1]} : vector<16x16xf32> to vector<16x1xf32>
    %306 = vector.broadcast %305 : vector<16x1xf32> to vector<16x64xf32>
    %307 = arith.mulf %306, %304 : vector<16x64xf32>
    %cst_69 = arith.constant dense<0.000000e+00> : vector<64xf32>
    %308 = vector.multi_reduction <add>, %307, %cst_69 [0] : vector<16x64xf32> to vector<64xf32>
    %309 = vector.shape_cast %308 : vector<64xf32> to vector<1x64xf32>
    %310 = vector.extract_strided_slice %93 {offsets = [13, 0], sizes = [1, 64], strides = [1, 1]} : vector<16x64xf32> to vector<1x64xf32>
    %311 = vector.broadcast %310 : vector<1x64xf32> to vector<16x64xf32>
    %312 = arith.mulf %311, %88 : vector<16x64xf32>
    %313 = math.exp %312 : vector<16x64xf32>
    %314 = arith.mulf %313, %304 : vector<16x64xf32>
    %315 = vector.extract_strided_slice %98 {offsets = [0, 13], sizes = [16, 1], strides = [1, 1]} : vector<16x16xf32> to vector<16x1xf32>
    %316 = vector.extract_strided_slice %95 {offsets = [13, 0], sizes = [1, 64], strides = [1, 1]} : vector<16x64xf32> to vector<1x64xf32>
    %317 = vector.broadcast %315 : vector<16x1xf32> to vector<16x64xf32>
    %318 = vector.broadcast %316 : vector<1x64xf32> to vector<16x64xf32>
    %319 = arith.mulf %317, %318 : vector<16x64xf32>
    %320 = arith.addf %314, %319 : vector<16x64xf32>
    %321 = vector.extract_strided_slice %101 {offsets = [0, 13], sizes = [16, 1], strides = [1, 1]} : vector<16x16xf32> to vector<16x1xf32>
    %322 = vector.broadcast %321 : vector<16x1xf32> to vector<16x64xf32>
    %323 = arith.mulf %322, %320 : vector<16x64xf32>
    %cst_70 = arith.constant dense<0.000000e+00> : vector<64xf32>
    %324 = vector.multi_reduction <add>, %323, %cst_70 [0] : vector<16x64xf32> to vector<64xf32>
    %325 = vector.shape_cast %324 : vector<64xf32> to vector<1x64xf32>
    %326 = vector.extract_strided_slice %93 {offsets = [14, 0], sizes = [1, 64], strides = [1, 1]} : vector<16x64xf32> to vector<1x64xf32>
    %327 = vector.broadcast %326 : vector<1x64xf32> to vector<16x64xf32>
    %328 = arith.mulf %327, %88 : vector<16x64xf32>
    %329 = math.exp %328 : vector<16x64xf32>
    %330 = arith.mulf %329, %320 : vector<16x64xf32>
    %331 = vector.extract_strided_slice %98 {offsets = [0, 14], sizes = [16, 1], strides = [1, 1]} : vector<16x16xf32> to vector<16x1xf32>
    %332 = vector.extract_strided_slice %95 {offsets = [14, 0], sizes = [1, 64], strides = [1, 1]} : vector<16x64xf32> to vector<1x64xf32>
    %333 = vector.broadcast %331 : vector<16x1xf32> to vector<16x64xf32>
    %334 = vector.broadcast %332 : vector<1x64xf32> to vector<16x64xf32>
    %335 = arith.mulf %333, %334 : vector<16x64xf32>
    %336 = arith.addf %330, %335 : vector<16x64xf32>
    %337 = vector.extract_strided_slice %101 {offsets = [0, 14], sizes = [16, 1], strides = [1, 1]} : vector<16x16xf32> to vector<16x1xf32>
    %338 = vector.broadcast %337 : vector<16x1xf32> to vector<16x64xf32>
    %339 = arith.mulf %338, %336 : vector<16x64xf32>
    %cst_71 = arith.constant dense<0.000000e+00> : vector<64xf32>
    %340 = vector.multi_reduction <add>, %339, %cst_71 [0] : vector<16x64xf32> to vector<64xf32>
    %341 = vector.shape_cast %340 : vector<64xf32> to vector<1x64xf32>
    %342 = vector.extract_strided_slice %93 {offsets = [15, 0], sizes = [1, 64], strides = [1, 1]} : vector<16x64xf32> to vector<1x64xf32>
    %343 = vector.broadcast %342 : vector<1x64xf32> to vector<16x64xf32>
    %344 = arith.mulf %343, %88 : vector<16x64xf32>
    %345 = math.exp %344 : vector<16x64xf32>
    %346 = arith.mulf %345, %336 : vector<16x64xf32>
    %347 = vector.extract_strided_slice %98 {offsets = [0, 15], sizes = [16, 1], strides = [1, 1]} : vector<16x16xf32> to vector<16x1xf32>
    %348 = vector.extract_strided_slice %95 {offsets = [15, 0], sizes = [1, 64], strides = [1, 1]} : vector<16x64xf32> to vector<1x64xf32>
    %349 = vector.broadcast %347 : vector<16x1xf32> to vector<16x64xf32>
    %350 = vector.broadcast %348 : vector<1x64xf32> to vector<16x64xf32>
    %351 = arith.mulf %349, %350 : vector<16x64xf32>
    %352 = arith.addf %346, %351 : vector<16x64xf32>
    %353 = vector.extract_strided_slice %101 {offsets = [0, 15], sizes = [16, 1], strides = [1, 1]} : vector<16x16xf32> to vector<16x1xf32>
    %354 = vector.broadcast %353 : vector<16x1xf32> to vector<16x64xf32>
    %355 = arith.mulf %354, %352 : vector<16x64xf32>
    %cst_72 = arith.constant dense<0.000000e+00> : vector<64xf32>
    %356 = vector.multi_reduction <add>, %355, %cst_72 [0] : vector<16x64xf32> to vector<64xf32>
    %357 = vector.shape_cast %356 : vector<64xf32> to vector<1x64xf32>
    %358 = tpu.concatenate %117, %133, %149, %165, %181, %197, %213, %229, %245, %261, %277, %293, %309, %325, %341, %357 in 0 : vector<1x64xf32>, vector<1x64xf32>, vector<1x64xf32>, vector<1x64xf32>, vector<1x64xf32>, vector<1x64xf32>, vector<1x64xf32>, vector<1x64xf32>, vector<1x64xf32>, vector<1x64xf32>, vector<1x64xf32>, vector<1x64xf32>, vector<1x64xf32>, vector<1x64xf32>, vector<1x64xf32>, vector<1x64xf32> -> vector<16x64xf32>
    %c8_i32 = arith.constant 8 : i32
    %359 = arith.addi %c8_i32, %91 : i32
    %360 = arith.index_cast %359 : i32 to index
    %c0_73 = arith.constant 0 : index
    %361 = vector.load %arg15[%360, %c0_73] : memref<24x64xf32, #tpu.memory_space<vmem>>, vector<16x64xf32>
    tpu.vector_store %arg15[%360, %c0_73], %358 {strides = array<i32>} : memref<24x64xf32, #tpu.memory_space<vmem>>, vector<16x64xf32>,
    %c1_i32 = arith.constant 1 : i32
    %c0_74 = arith.constant 0 : index
    %c0_75 = arith.constant 0 : index
    %362 = vector.load %arg21[%c0_74, %c0_75] : memref<16x64xf32, #tpu.memory_space<vmem>>, vector<16x64xf32>
    tpu.vector_store %arg21[%c0_74, %c0_75], %352 {strides = array<i32>} : memref<16x64xf32, #tpu.memory_space<vmem>>, vector<16x64xf32>,
    %c8_76 = arith.constant 8 : index
    %c0_77 = arith.constant 0 : index
    %363 = vector.load %arg15[%c8_76, %c0_77] : memref<24x64xf32, #tpu.memory_space<vmem>>, vector<16x64xf32>
    %c0_78 = arith.constant 0 : index
    %c0_79 = arith.constant 0 : index
    %364 = vector.load %arg12[%c0_78, %c0_79] : memref<1x64xf32, #tpu.memory_space<vmem>>, vector<1x64xf32>
    %365 = vector.broadcast %364 : vector<1x64xf32> to vector<16x64xf32>
    %366 = arith.mulf %365, %65 : vector<16x64xf32>
    %367 = arith.addf %363, %366 : vector<16x64xf32>
    %cst_80 = arith.constant 0.000000e+00 : f32
    %368 = vector.broadcast %cst_80 : f32 to vector<16x64xf32>
    %369 = arith.subf %368, %31 : vector<16x64xf32>
    %370 = math.exp %369 : vector<16x64xf32>
    %cst_81 = arith.constant 1.000000e+00 : f32
    %371 = vector.broadcast %cst_81 : f32 to vector<16x64xf32>
    %372 = arith.addf %371, %370 : vector<16x64xf32>
    %373 = tpu.reciprocal %372 {approx = true} : vector<16x64xf32> -> vector<16x64xf32>
    %374 = arith.mulf %31, %373 : vector<16x64xf32>
    %375 = arith.mulf %367, %374 : vector<16x64xf32>
    %376 = arith.truncf %375 : vector<16x64xf32> to vector<16x64xbf16>
    %c0_82 = arith.constant 0 : index
    %c0_83 = arith.constant 0 : index
    %377 = vector.load %arg13[%c0_82, %c0_83] : memref<64x32xbf16, #tpu.memory_space<vmem>>, vector<64x32xbf16>
    %cst_84 = arith.constant dense<0.000000e+00> : vector<16x32xf32>
    %378 = tpu.matmul %376, %377, %cst_84 {dimension_numbers = #tpu.dot_dimension_numbers<[1], [0], [0], [1], [0, 0, 1, 1], [], []>} : vector<16x64xbf16>, vector<64x32xbf16>, vector<16x32xf32> -> vector<16x32xf32>
    %379 = arith.addf %378, %4 : vector<16x32xf32>
    %c0_85 = arith.constant 0 : index
    %c0_86 = arith.constant 0 : index
    %c0_87 = arith.constant 0 : index
    %380 = vector.load %arg14[%c0_85, %c0_86, %c0_87] : memref<1x16x32xf32, #tpu.memory_space<vmem>>, vector<1x16x32xf32>
    %381 = vector.shape_cast %380 : vector<1x16x32xf32> to vector<16x32xf32>
    %382 = vector.shape_cast %379 : vector<16x32xf32> to vector<1x16x32xf32>
    tpu.vector_store %arg14[%c0_85, %c0_86, %c0_87], %382 {strides = array<i32>} : memref<1x16x32xf32, #tpu.memory_space<vmem>>, vector<1x16x32xf32>,
    return
  }
  func.func @transform_0(%arg0: i32, %arg1: i32) -> (i32, i32, i32) {
    %c0_i32 = arith.constant 0 : i32
    %c0_i32_0 = arith.constant 0 : i32
    return %arg0, %arg1, %c0_i32 : i32, i32, i32
  }
  func.func @transform_1(%arg0: i32, %arg1: i32) -> (i32, i32) {
    %c0_i32 = arith.constant 0 : i32
    %c0_i32_0 = arith.constant 0 : i32
    %c0_i32_1 = arith.constant 0 : i32
    return %c0_i32, %c0_i32_0 : i32, i32
  }
  func.func @transform_2(%arg0: i32, %arg1: i32) -> (i32, i32) {
    %c0_i32 = arith.constant 0 : i32
    %c0_i32_0 = arith.constant 0 : i32
    %c0_i32_1 = arith.constant 0 : i32
    return %c0_i32, %c0_i32_0 : i32, i32
  }
  func.func @transform_3(%arg0: i32, %arg1: i32) -> (i32, i32) {
    %c0_i32 = arith.constant 0 : i32
    %c0_i32_0 = arith.constant 0 : i32
    %c0_i32_1 = arith.constant 0 : i32
    return %c0_i32, %c0_i32_0 : i32, i32
  }
  func.func @transform_4(%arg0: i32, %arg1: i32) -> (i32, i32) {
    %c0_i32 = arith.constant 0 : i32
    %c0_i32_0 = arith.constant 0 : i32
    %c0_i32_1 = arith.constant 0 : i32
    return %c0_i32, %c0_i32_0 : i32, i32
  }
  func.func @transform_5(%arg0: i32, %arg1: i32) -> (i32, i32) {
    %c0_i32 = arith.constant 0 : i32
    %c0_i32_0 = arith.constant 0 : i32
    %c0_i32_1 = arith.constant 0 : i32
    return %c0_i32, %c0_i32_0 : i32, i32
  }
  func.func @transform_6(%arg0: i32, %arg1: i32) -> (i32, i32) {
    %c0_i32 = arith.constant 0 : i32
    %c0_i32_0 = arith.constant 0 : i32
    %c0_i32_1 = arith.constant 0 : i32
    return %c0_i32, %c0_i32_0 : i32, i32
  }
  func.func @transform_7(%arg0: i32, %arg1: i32) -> (i32, i32) {
    %c0_i32 = arith.constant 0 : i32
    %c0_i32_0 = arith.constant 0 : i32
    %c0_i32_1 = arith.constant 0 : i32
    return %c0_i32, %c0_i32_0 : i32, i32
  }
  func.func @transform_8(%arg0: i32, %arg1: i32) -> (i32, i32) {
    %c0_i32 = arith.constant 0 : i32
    %c0_i32_0 = arith.constant 0 : i32
    %c0_i32_1 = arith.constant 0 : i32
    return %c0_i32, %c0_i32_0 : i32, i32
  }
  func.func @transform_9(%arg0: i32, %arg1: i32) -> (i32, i32) {
    %c0_i32 = arith.constant 0 : i32
    %c0_i32_0 = arith.constant 0 : i32
    %c0_i32_1 = arith.constant 0 : i32
    return %c0_i32, %c0_i32_0 : i32, i32
  }
  func.func @transform_10(%arg0: i32, %arg1: i32) -> (i32, i32) {
    %c0_i32 = arith.constant 0 : i32
    %c0_i32_0 = arith.constant 0 : i32
    %c0_i32_1 = arith.constant 0 : i32
    return %c0_i32, %c0_i32_0 : i32, i32
  }
  func.func @transform_11(%arg0: i32, %arg1: i32) -> (i32, i32) {
    %c0_i32 = arith.constant 0 : i32
    %c0_i32_0 = arith.constant 0 : i32
    %c0_i32_1 = arith.constant 0 : i32
    return %c0_i32, %c0_i32_0 : i32, i32
  }
  func.func @transform_12(%arg0: i32, %arg1: i32) -> (i32, i32, i32) {
    %c0_i32 = arith.constant 0 : i32
    %c0_i32_0 = arith.constant 0 : i32
    return %arg0, %arg1, %c0_i32 : i32, i32, i32
  }
}

</mosaic_0001>

<llo_original>
// kernel: tpu_custom_call.1
$region0: #{tpu_custom_call.1}
  #allocation0 [shape = 'u32[]', space=smem, size = 0x4, offset = 0x4, fixed_abs, tag = 'smem constant byte address 0x4 - core index']
  #allocation1 [shape = 'u32[144,128]{1,0:T(1,128)}', space=vmem, size = 0x12000, scoped, tag = 'internal scratch']
  #allocation2 [shape = 'f32[24,64]{1,0:T(8,128)}', space=vmem, size = 0x3000, scoped, tag = 'scratch operand']
  #allocation3 [shape = 'f32[8,64]{1,0:T(8,128)}', space=vmem, size = 0x1000, scoped, tag = 'scratch operand']
  #allocation4 [shape = 'f32[16,64]{1,0:T(8,128)}', space=vmem, size = 0x2000, scoped, tag = 'scratch operand']
  #allocation5 [shape = 'f32[16,64]{1,0:T(8,128)}', space=vmem, size = 0x2000, scoped, tag = 'scratch operand']
  #allocation6 [shape = 'f32[16,16]{1,0:T(8,128)}', space=vmem, size = 0x2000, scoped, tag = 'scratch operand']
  #allocation7 [shape = 'f32[16,16]{1,0:T(8,128)}', space=vmem, size = 0x2000, scoped, tag = 'scratch operand']
  #allocation8 [shape = 'f32[16,64]{1,0:T(8,128)}', space=vmem, size = 0x2000, scoped, tag = 'scratch operand']
  %s0 = inlined_call_operand.vmem [shape: f32[2,16,32], index: 0, kind: input, shape index: {}]
  %s1 = inlined_call_operand.hbm [shape: f32[1,32], index: 1, kind: input, shape index: {}]
  %s2 = inlined_call_operand.hbm [shape: f32[1,32], index: 2, kind: input, shape index: {}]
  %s3 = inlined_call_operand.vmem [shape: bf16[32,128], index: 3, kind: input, shape index: {}]
  %s4 = inlined_call_operand.hbm [shape: f32[4,64], index: 4, kind: input, shape index: {}]
  %s5 = inlined_call_operand.hbm [shape: f32[1,64], index: 5, kind: input, shape index: {}]
  %s6 = inlined_call_operand.hbm [shape: f32[64,128], index: 6, kind: input, shape index: {}]
  %s7 = inlined_call_operand.hbm [shape: f32[2,64], index: 7, kind: input, shape index: {}]
  %s8 = inlined_call_operand.hbm [shape: f32[1,64], index: 8, kind: input, shape index: {}]
  %s9 = inlined_call_operand.vmem [shape: f32[16,64], index: 9, kind: input, shape index: {}]
  %s10 = inlined_call_operand.vmem [shape: f32[1,64], index: 10, kind: input, shape index: {}]
  %s11 = inlined_call_operand.vmem [shape: bf16[64,32], index: 11, kind: input, shape index: {}]
  %s12 = inlined_call_operand.hbm [shape: f32[2,16,32], index: 12, kind: output, shape index: {}]
  %s13 = sld [smem:[#allocation0]]
  $region113: #{tpu_custom_call.1} parent=0
    _
  %s15 = ssub.s32 1, %s13
  %s16 = scalar_select 0, %s15, %s13
  $region1: #{tpu_custom_call.1} parent=0
    #allocation9 [shape = 'u8[512]{0}', space=vmem, size = 0x400, scoped, tag = 'input window, operand 1, single buffered']
    #allocation10 [shape = 's32[2]{0}', space=sflag, size = 0x8, scoped, tag = 'scoped memory for tpu_custom_call.1']
    #allocation11 [shape = 's32[2]{0}', space=sflag, size = 0x8, scoped, tag = 'scoped memory for tpu_custom_call.1']
    #allocation12 [shape = 'u8[512]{0}', space=vmem, size = 0x400, scoped, tag = 'input window, operand 2, single buffered']
    #allocation13 [shape = 's32[1]{0}', space=sflag, size = 0x4, scoped, tag = 'scoped memory for tpu_custom_call.1']
    #allocation14 [shape = 'u8[2048]{0}', space=vmem, size = 0x800, scoped, tag = 'input window, operand 4, single buffered']
    #allocation15 [shape = 'u8[512]{0}', space=vmem, size = 0x400, scoped, tag = 'input window, operand 5, single buffered']
    #allocation16 [shape = 's32[1]{0}', space=sflag, size = 0x4, scoped, tag = 'scoped memory for tpu_custom_call.1']
    #allocation17 [shape = 'u8[32768]{0}', space=vmem, size = 0x8000, scoped, tag = 'input window, operand 6, single buffered']
    #allocation18 [shape = 'u8[1024]{0}', space=vmem, size = 0x400, scoped, tag = 'input window, operand 7, single buffered']
    #allocation19 [shape = 's32[1]{0}', space=sflag, size = 0x4, scoped, tag = 'scoped memory for tpu_custom_call.1']
    #allocation20 [shape = 'u8[512]{0}', space=vmem, size = 0x400, scoped, tag = 'input window, operand 8, single buffered']
    #allocation21 [shape = 'u8[16384]{0}', space=vmem, size = 0x4000, scoped, tag = 'output window, operand 0']
    %17 = vsyncpa [#allocation10], 0
    %18 = vsyncpa [#allocation13], 0
    %19 = vsyncpa [#allocation16], 0
    %20 = vsyncpa [#allocation19], 0
    %21 = vsyncpa [#allocation11], 0
    %s22 = scalar_lea.sflag [#allocation11], 1
    %23 = vsyncpa %s22, 0
    loop: start=0, step=1, limit=4
    $region2: #{tpu_custom_call.1} parent=1 // loop_pre_header
      _
    $region3: #{tpu_custom_call.1} parent=1 // loop_header
      %s25 = sphi 0, %s29
      %p26 = scmp.ge.s32.totalorder %s25, 4
      %s32 = sphi 0, %s44
      %s33 = sphi 0, %s40
      %s34 = sphi 0, %s32
      %s35 = sphi 0, %s33
      %s36 = sphi 0, %s34
      %s37 = sphi 0, %s35
      %s49 = sphi 0, %s51
      %s52 = sphi 0, %s49
      %s53 = sphi 0, %s52
      %s69 = sphi 0, %s53
      %s73 = sphi 0, %s73
      %s75 = sphi 0, %s73
      %s76 = sphi 0, %s75
      %s90 = sphi 0, %s76
      %s94 = sphi 0, %s94
      %s96 = sphi 0, %s94
      %s97 = sphi 0, %s96
      %s111 = sphi 0, %s97
      %s115 = sphi 0, %s115
      %s117 = sphi 0, %s115
      %s118 = sphi 0, %s117
      %s132 = sphi 0, %s118
      %s136 = sphi 0, %s136
      %s138 = sphi 0, %s136
      %s139 = sphi 0, %s138
      %s153 = sphi 0, %s139
      %s157 = sphi 0, %s157
      %s159 = sphi 0, %s157
      %s160 = sphi 0, %s159
      %s174 = sphi 0, %s160
      %s178 = sphi 0, %s178
      %s180 = sphi 0, %s178
      %s181 = sphi 0, %s180
      %s195 = sphi 0, %s181
      %s199 = sphi 0, %s199
      %s201 = sphi 0, %s199
      %s202 = sphi 0, %s201
      %s216 = sphi 0, %s202
      %s220 = sphi 0, %s220
      %s222 = sphi 0, %s220
      %s223 = sphi 0, %s222
      %s237 = sphi 0, %s223
      %s241 = sphi 0, %s241
      %s243 = sphi 0, %s241
      %s244 = sphi 0, %s243
      %s258 = sphi 0, %s244
      %s262 = sphi 0, %s262
      %s264 = sphi 0, %s262
      %s265 = sphi 0, %s264
      %s279 = sphi 0, %s265
      %s283 = sphi 0, %s283
      %s285 = sphi 0, %s283
      %s286 = sphi 0, %s285
      %s300 = sphi 0, %s286
      %s308 = sphi 0, %s310
      %s311 = sphi 0, %s308
      %s312 = sphi 0, %s311
      %s328 = sphi 0, %s312
    $region4: #{tpu_custom_call.1} parent=1 // loop_header_branch
      %28 = sbr.rel (%p26) target = $region8
    $region5: #{tpu_custom_call.1} parent=1 // loop_body
      %s30 = ssub.s32 %s25, 1
      %s31 = ssub.s32 %s25, 2
      %s38 = sadd.s32 1, %s33
      %p39 = scmp.ge.s32.totalorder %s38, 1
      %s40 = scalar_select %p39, 0, %s38
      %s41 = sadd.s32 1, %s32
      %s42 = scalar_select %p39, %s41, %s32
      %p43 = scmp.ge.s32.totalorder %s42, 2
      %s44 = scalar_select %p43, 0, %s42
      %s45 = ssub.s32 %s32, %s44
      %s46 = ssub.s32 %s33, %s40
      %s47 = sor.u32 %s45, %s46
      %p48 = scmp.eq.s32.totalorder %s47, 0
      %s50 = sadd.s32 %s49, 1
      %s51 = scalar_select %p48, %s49, %s50
      %p54 = pneg %p48
      %p55 = scmp.eq.s32.totalorder %s25, 1
      %p56 = por %p54, %p55
      %p57 = scmp.ne.s32.totalorder %s49, %s52
      %p58 = scmp.eq.s32.totalorder %s25, 0
      %p59 = por %p57, %p58
      %p60 = scmp.ne.s32.totalorder %s49, %s52
      %p61 = scmp.eq.s32.totalorder %s30, 1
      %p62 = por %p60, %p61
      %p63 = scmp.ne.s32.totalorder %s52, %s53
      %p64 = scmp.eq.s32.totalorder %s30, 0
      %p65 = por %p63, %p64
      %p66 = scmp.ne.s32.totalorder %s52, %s53
      %p67 = scmp.eq.s32.totalorder %s31, 1
      %p68 = por %p66, %p67
      %p70 = scmp.ne.s32.totalorder %s53, %s69
      %p71 = scmp.eq.s32.totalorder %s31, 0
      %p72 = por %p70, %p71
      %s74 = sadd.s32 %s73, 1
      %p77 = scmp.eq.s32.totalorder %s25, 1
      %p78 = scmp.ne.s32.totalorder %s73, %s75
      %p79 = scmp.eq.s32.totalorder %s25, 0
      %p80 = por %p78, %p79
      %p81 = scmp.ne.s32.totalorder %s73, %s75
      %p82 = scmp.eq.s32.totalorder %s30, 1
      %p83 = por %p81, %p82
      %p84 = scmp.ne.s32.totalorder %s75, %s76
      %p85 = scmp.eq.s32.totalorder %s30, 0
      %p86 = por %p84, %p85
      %p87 = scmp.ne.s32.totalorder %s75, %s76
      %p88 = scmp.eq.s32.totalorder %s31, 1
      %p89 = por %p87, %p88
      %p91 = scmp.ne.s32.totalorder %s76, %s90
      %p92 = scmp.eq.s32.totalorder %s31, 0
      %p93 = por %p91, %p92
      %s95 = sadd.s32 %s94, 1
      %p98 = scmp.eq.s32.totalorder %s25, 1
      %p99 = scmp.ne.s32.totalorder %s94, %s96
      %p100 = scmp.eq.s32.totalorder %s25, 0
      %p101 = por %p99, %p100
      %p102 = scmp.ne.s32.totalorder %s94, %s96
      %p103 = scmp.eq.s32.totalorder %s30, 1
      %p104 = por %p102, %p103
      %p105 = scmp.ne.s32.totalorder %s96, %s97
      %p106 = scmp.eq.s32.totalorder %s30, 0
      %p107 = por %p105, %p106
      %p108 = scmp.ne.s32.totalorder %s96, %s97
      %p109 = scmp.eq.s32.totalorder %s31, 1
      %p110 = por %p108, %p109
      %p112 = scmp.ne.s32.totalorder %s97, %s111
      %p113 = scmp.eq.s32.totalorder %s31, 0
      %p114 = por %p112, %p113
      %s116 = sadd.s32 %s115, 1
      %p119 = scmp.eq.s32.totalorder %s25, 1
      %p120 = scmp.ne.s32.totalorder %s115, %s117
      %p121 = scmp.eq.s32.totalorder %s25, 0
      %p122 = por %p120, %p121
      %p123 = scmp.ne.s32.totalorder %s115, %s117
      %p124 = scmp.eq.s32.totalorder %s30, 1
      %p125 = por %p123, %p124
      %p126 = scmp.ne.s32.totalorder %s117, %s118
      %p127 = scmp.eq.s32.totalorder %s30, 0
      %p128 = por %p126, %p127
      %p129 = scmp.ne.s32.totalorder %s117, %s118
      %p130 = scmp.eq.s32.totalorder %s31, 1
      %p131 = por %p129, %p130
      %p133 = scmp.ne.s32.totalorder %s118, %s132
      %p134 = scmp.eq.s32.totalorder %s31, 0
      %p135 = por %p133, %p134
      %s137 = sadd.s32 %s136, 1
      %p140 = scmp.eq.s32.totalorder %s25, 1
      %p141 = scmp.ne.s32.totalorder %s136, %s138
      %p142 = scmp.eq.s32.totalorder %s25, 0
      %p143 = por %p141, %p142
      %p144 = scmp.ne.s32.totalorder %s136, %s138
      %p145 = scmp.eq.s32.totalorder %s30, 1
      %p146 = por %p144, %p145
      %p147 = scmp.ne.s32.totalorder %s138, %s139
      %p148 = scmp.eq.s32.totalorder %s30, 0
      %p149 = por %p147, %p148
      %p150 = scmp.ne.s32.totalorder %s138, %s139
      %p151 = scmp.eq.s32.totalorder %s31, 1
      %p152 = por %p150, %p151
      %p154 = scmp.ne.s32.totalorder %s139, %s153
      %p155 = scmp.eq.s32.totalorder %s31, 0
      %p156 = por %p154, %p155
      %s158 = sadd.s32 %s157, 1
      %p161 = scmp.eq.s32.totalorder %s25, 1
      %p162 = scmp.ne.s32.totalorder %s157, %s159
      %p163 = scmp.eq.s32.totalorder %s25, 0
      %p164 = por %p162, %p163
      %p165 = scmp.ne.s32.totalorder %s157, %s159
      %p166 = scmp.eq.s32.totalorder %s30, 1
      %p167 = por %p165, %p166
      %p168 = scmp.ne.s32.totalorder %s159, %s160
      %p169 = scmp.eq.s32.totalorder %s30, 0
      %p170 = por %p168, %p169
      %p171 = scmp.ne.s32.totalorder %s159, %s160
      %p172 = scmp.eq.s32.totalorder %s31, 1
      %p173 = por %p171, %p172
      %p175 = scmp.ne.s32.totalorder %s160, %s174
      %p176 = scmp.eq.s32.totalorder %s31, 0
      %p177 = por %p175, %p176
      %s179 = sadd.s32 %s178, 1
      %p182 = scmp.eq.s32.totalorder %s25, 1
      %p183 = scmp.ne.s32.totalorder %s178, %s180
      %p184 = scmp.eq.s32.totalorder %s25, 0
      %p185 = por %p183, %p184
      %p186 = scmp.ne.s32.totalorder %s178, %s180
      %p187 = scmp.eq.s32.totalorder %s30, 1
      %p188 = por %p186, %p187
      %p189 = scmp.ne.s32.totalorder %s180, %s181
      %p190 = scmp.eq.s32.totalorder %s30, 0
      %p191 = por %p189, %p190
      %p192 = scmp.ne.s32.totalorder %s180, %s181
      %p193 = scmp.eq.s32.totalorder %s31, 1
      %p194 = por %p192, %p193
      %p196 = scmp.ne.s32.totalorder %s181, %s195
      %p197 = scmp.eq.s32.totalorder %s31, 0
      %p198 = por %p196, %p197
      %s200 = sadd.s32 %s199, 1
      %p203 = scmp.eq.s32.totalorder %s25, 1
      %p204 = scmp.ne.s32.totalorder %s199, %s201
      %p205 = scmp.eq.s32.totalorder %s25, 0
      %p206 = por %p204, %p205
      %p207 = scmp.ne.s32.totalorder %s199, %s201
      %p208 = scmp.eq.s32.totalorder %s30, 1
      %p209 = por %p207, %p208
      %p210 = scmp.ne.s32.totalorder %s201, %s202
      %p211 = scmp.eq.s32.totalorder %s30, 0
      %p212 = por %p210, %p211
      %p213 = scmp.ne.s32.totalorder %s201, %s202
      %p214 = scmp.eq.s32.totalorder %s31, 1
      %p215 = por %p213, %p214
      %p217 = scmp.ne.s32.totalorder %s202, %s216
      %p218 = scmp.eq.s32.totalorder %s31, 0
      %p219 = por %p217, %p218
      %s221 = sadd.s32 %s220, 1
      %p224 = scmp.eq.s32.totalorder %s25, 1
      %p225 = scmp.ne.s32.totalorder %s220, %s222
      %p226 = scmp.eq.s32.totalorder %s25, 0
      %p227 = por %p225, %p226
      %p228 = scmp.ne.s32.totalorder %s220, %s222
      %p229 = scmp.eq.s32.totalorder %s30, 1
      %p230 = por %p228, %p229
      %p231 = scmp.ne.s32.totalorder %s222, %s223
      %p232 = scmp.eq.s32.totalorder %s30, 0
      %p233 = por %p231, %p232
      %p234 = scmp.ne.s32.totalorder %s222, %s223
      %p235 = scmp.eq.s32.totalorder %s31, 1
      %p236 = por %p234, %p235
      %p238 = scmp.ne.s32.totalorder %s223, %s237
      %p239 = scmp.eq.s32.totalorder %s31, 0
      %p240 = por %p238, %p239
      %s242 = sadd.s32 %s241, 1
      %p245 = scmp.eq.s32.totalorder %s25, 1
      %p246 = scmp.ne.s32.totalorder %s241, %s243
      %p247 = scmp.eq.s32.totalorder %s25, 0
      %p248 = por %p246, %p247
      %p249 = scmp.ne.s32.totalorder %s241, %s243
      %p250 = scmp.eq.s32.totalorder %s30, 1
      %p251 = por %p249, %p250
      %p252 = scmp.ne.s32.totalorder %s243, %s244
      %p253 = scmp.eq.s32.totalorder %s30, 0
      %p254 = por %p252, %p253
      %p255 = scmp.ne.s32.totalorder %s243, %s244
      %p256 = scmp.eq.s32.totalorder %s31, 1
      %p257 = por %p255, %p256
      %p259 = scmp.ne.s32.totalorder %s244, %s258
      %p260 = scmp.eq.s32.totalorder %s31, 0
      %p261 = por %p259, %p260
      %s263 = sadd.s32 %s262, 1
      %p266 = scmp.eq.s32.totalorder %s25, 1
      %p267 = scmp.ne.s32.totalorder %s262, %s264
      %p268 = scmp.eq.s32.totalorder %s25, 0
      %p269 = por %p267, %p268
      %p270 = scmp.ne.s32.totalorder %s262, %s264
      %p271 = scmp.eq.s32.totalorder %s30, 1
      %p272 = por %p270, %p271
      %p273 = scmp.ne.s32.totalorder %s264, %s265
      %p274 = scmp.eq.s32.totalorder %s30, 0
      %p275 = por %p273, %p274
      %p276 = scmp.ne.s32.totalorder %s264, %s265
      %p277 = scmp.eq.s32.totalorder %s31, 1
      %p278 = por %p276, %p277
      %p280 = scmp.ne.s32.totalorder %s265, %s279
      %p281 = scmp.eq.s32.totalorder %s31, 0
      %p282 = por %p280, %p281
      %s284 = sadd.s32 %s283, 1
      %p287 = scmp.eq.s32.totalorder %s25, 1
      %p288 = scmp.ne.s32.totalorder %s283, %s285
      %p289 = scmp.eq.s32.totalorder %s25, 0
      %p290 = por %p288, %p289
      %p291 = scmp.ne.s32.totalorder %s283, %s285
      %p292 = scmp.eq.s32.totalorder %s30, 1
      %p293 = por %p291, %p292
      %p294 = scmp.ne.s32.totalorder %s285, %s286
      %p295 = scmp.eq.s32.totalorder %s30, 0
      %p296 = por %p294, %p295
      %p297 = scmp.ne.s32.totalorder %s285, %s286
      %p298 = scmp.eq.s32.totalorder %s31, 1
      %p299 = por %p297, %p298
      %p301 = scmp.ne.s32.totalorder %s286, %s300
      %p302 = scmp.eq.s32.totalorder %s31, 0
      %p303 = por %p301, %p302
      %s304 = ssub.s32 %s32, %s44
      %s305 = ssub.s32 %s33, %s40
      %s306 = sor.u32 %s304, %s305
      %p307 = scmp.eq.s32.totalorder %s306, 0
      %s309 = sadd.s32 %s308, 1
      %s310 = scalar_select %p307, %s308, %s309
      %p313 = pneg %p307
      %p314 = scmp.eq.s32.totalorder %s25, 1
      %p315 = por %p313, %p314
      %p316 = scmp.ne.s32.totalorder %s308, %s311
      %p317 = scmp.eq.s32.totalorder %s25, 0
      %p318 = por %p316, %p317
      %p319 = scmp.ne.s32.totalorder %s308, %s311
      %p320 = scmp.eq.s32.totalorder %s30, 1
      %p321 = por %p319, %p320
      %p322 = scmp.ne.s32.totalorder %s311, %s312
      %p323 = scmp.eq.s32.totalorder %s30, 0
      %p324 = por %p322, %p323
      %p325 = scmp.ne.s32.totalorder %s311, %s312
      %p326 = scmp.eq.s32.totalorder %s31, 1
      %p327 = por %p325, %p326
      %p329 = scmp.ne.s32.totalorder %s312, %s328
      %p330 = scmp.eq.s32.totalorder %s31, 0
      %p331 = por %p329, %p330
      %p332 = scmp.le.s32.totalorder 1, %s25
      %p333 = scmp.lt.s32.totalorder %s25, 3
      %p334 = pnand %p332, %p333
      %p335 = pneg %p334
      // Predicated region
      $region9: #{tpu_custom_call.1} parent=5 // pred_check
        _
      $region10: #{tpu_custom_call.1} parent=5 // pred_check_branch
        %337 = sbr.rel (%p334) target = $region12
      $region11: #{tpu_custom_call.1} parent=5 // pred_region
        %s338 = ssub.s32 %s25, 1
        // Predicated region
        $region13: #{tpu_custom_call.1} parent=11 // pred_check
          %p339 = pneg %p86
        $region14: #{tpu_custom_call.1} parent=11 // pred_check_branch
          %341 = sbr.rel (%p339) target = $region16
        $region15: #{tpu_custom_call.1} parent=11 // pred_region
          %s343 = ssub.s32 16, 16
          %344 = vsyncadd [#allocation10], %s343
          %s346 = sshll.u32 [#allocation9], 4
          %s347 = int_to_ptr.vmem [resolvable:$true] %s346
          %349 = dma.hbm_to_vmem [thread:$0]  %s1, 16, %s347, [#allocation10]
        $region16: #{tpu_custom_call.1} parent=11 // pred_fallthru
          _
        // Predicated region
        $region17: #{tpu_custom_call.1} parent=11 // pred_check
          %p350 = pneg %p107
        $region18: #{tpu_custom_call.1} parent=11 // pred_check_branch
          %352 = sbr.rel (%p350) target = $region20
        $region19: #{tpu_custom_call.1} parent=11 // pred_region
          %s354 = ssub.s32 16, 16
          %355 = vsyncadd [#allocation13], %s354
          %s357 = sshll.u32 [#allocation12], 4
          %s358 = int_to_ptr.vmem [resolvable:$true] %s357
          %360 = dma.hbm_to_vmem [thread:$0]  %s2, 16, %s358, [#allocation13]
        $region20: #{tpu_custom_call.1} parent=11 // pred_fallthru
          _
        // Predicated region
        $region21: #{tpu_custom_call.1} parent=11 // pred_check
          %p361 = pneg %p128
        $region22: #{tpu_custom_call.1} parent=11 // pred_check_branch
          %363 = sbr.rel (%p361) target = $region24
        $region23: #{tpu_custom_call.1} parent=11 // pred_region
          _
        $region24: #{tpu_custom_call.1} parent=11 // pred_fallthru
          _
        // Predicated region
        $region25: #{tpu_custom_call.1} parent=11 // pred_check
          %p364 = pneg %p149
        $region26: #{tpu_custom_call.1} parent=11 // pred_check_branch
          %366 = sbr.rel (%p364) target = $region28
        $region27: #{tpu_custom_call.1} parent=11 // pred_region
          %s368 = ssub.s32 64, 64
          %369 = vsyncadd [#allocation13], %s368
          %s371 = sshll.u32 [#allocation14], 4
          %s372 = int_to_ptr.vmem [resolvable:$true] %s371
          %374 = dma.hbm_to_vmem [thread:$0]  %s4, 64, %s372, [#allocation13]
        $region28: #{tpu_custom_call.1} parent=11 // pred_fallthru
          _
        // Predicated region
        $region29: #{tpu_custom_call.1} parent=11 // pred_check
          %p375 = pneg %p170
        $region30: #{tpu_custom_call.1} parent=11 // pred_check_branch
          %377 = sbr.rel (%p375) target = $region32
        $region31: #{tpu_custom_call.1} parent=11 // pred_region
          %s379 = ssub.s32 16, 16
          %380 = vsyncadd [#allocation16], %s379
          %s382 = sshll.u32 [#allocation15], 4
          %s383 = int_to_ptr.vmem [resolvable:$true] %s382
          %385 = dma.hbm_to_vmem [thread:$0]  %s5, 16, %s383, [#allocation16]
        $region32: #{tpu_custom_call.1} parent=11 // pred_fallthru
          _
        // Predicated region
        $region33: #{tpu_custom_call.1} parent=11 // pred_check
          %p386 = pneg %p191
        $region34: #{tpu_custom_call.1} parent=11 // pred_check_branch
          %388 = sbr.rel (%p386) target = $region36
        $region35: #{tpu_custom_call.1} parent=11 // pred_region
          %s390 = ssub.s32 1024, 1024
          %391 = vsyncadd [#allocation16], %s390
          %s392 = sshll.u32 [#allocation17], 4
          %s393 = int_to_ptr.vmem [resolvable:$true] %s392
          %398 = dma.hbm_to_vmem [thread:$0]  %s6, 1024, %s393, [#allocation16], 128, 128, 8
        $region36: #{tpu_custom_call.1} parent=11 // pred_fallthru
          _
        // Predicated region
        $region37: #{tpu_custom_call.1} parent=11 // pred_check
          %p399 = pneg %p212
        $region38: #{tpu_custom_call.1} parent=11 // pred_check_branch
          %401 = sbr.rel (%p399) target = $region40
        $region39: #{tpu_custom_call.1} parent=11 // pred_region
          %s403 = ssub.s32 32, 32
          %404 = vsyncadd [#allocation19], %s403
          %s406 = sshll.u32 [#allocation18], 4
          %s407 = int_to_ptr.vmem [resolvable:$true] %s406
          %409 = dma.hbm_to_vmem [thread:$0]  %s7, 32, %s407, [#allocation19]
        $region40: #{tpu_custom_call.1} parent=11 // pred_fallthru
          _
        // Predicated region
        $region41: #{tpu_custom_call.1} parent=11 // pred_check
          %p410 = pneg %p233
        $region42: #{tpu_custom_call.1} parent=11 // pred_check_branch
          %412 = sbr.rel (%p410) target = $region44
        $region43: #{tpu_custom_call.1} parent=11 // pred_region
          %s414 = ssub.s32 16, 16
          %415 = vsyncadd [#allocation19], %s414
          %s417 = sshll.u32 [#allocation20], 4
          %s418 = int_to_ptr.vmem [resolvable:$true] %s417
          %420 = dma.hbm_to_vmem [thread:$0]  %s8, 16, %s418, [#allocation19]
        $region44: #{tpu_custom_call.1} parent=11 // pred_fallthru
          _
        // Predicated region
        $region45: #{tpu_custom_call.1} parent=11 // pred_check
          %p421 = pneg %p254
        $region46: #{tpu_custom_call.1} parent=11 // pred_check_branch
          %423 = sbr.rel (%p421) target = $region48
        $region47: #{tpu_custom_call.1} parent=11 // pred_region
          _
        $region48: #{tpu_custom_call.1} parent=11 // pred_fallthru
          _
        // Predicated region
        $region49: #{tpu_custom_call.1} parent=11 // pred_check
          %p424 = pneg %p275
        $region50: #{tpu_custom_call.1} parent=11 // pred_check_branch
          %426 = sbr.rel (%p424) target = $region52
        $region51: #{tpu_custom_call.1} parent=11 // pred_region
          _
        $region52: #{tpu_custom_call.1} parent=11 // pred_fallthru
          _
        // Predicated region
        $region53: #{tpu_custom_call.1} parent=11 // pred_check
          %p427 = pneg %p296
        $region54: #{tpu_custom_call.1} parent=11 // pred_check_branch
          %429 = sbr.rel (%p427) target = $region56
        $region55: #{tpu_custom_call.1} parent=11 // pred_region
          _
        $region56: #{tpu_custom_call.1} parent=11 // pred_fallthru
          _
      $region12: #{tpu_custom_call.1} parent=5 // pred_fallthru
        _
      %p430 = scmp.lt.s32.totalorder %s25, 2
      // Predicated region
      $region57: #{tpu_custom_call.1} parent=5 // pred_check
        %p431 = pneg %p430
      $region58: #{tpu_custom_call.1} parent=5 // pred_check_branch
        %433 = sbr.rel (%p431) target = $region60
      $region59: #{tpu_custom_call.1} parent=5 // pred_region
        // Predicated region
        $region61: #{tpu_custom_call.1} parent=59 // pred_check
          %p434 = pneg %p59
        $region62: #{tpu_custom_call.1} parent=59 // pred_check_branch
          %436 = sbr.rel (%p434) target = $region64
        $region63: #{tpu_custom_call.1} parent=59 // pred_region
          %s437 = smul.u32 2, %s33
          %p438 = scmp.lt.s32.totalorder %s32, 1
          %s439 = scalar_select %p438, %s32, 1
          %p440 = scmp.lt.s32.totalorder %s437, 1
          %s441 = scalar_select %p440, %s437, 1
          %s442 = smul.addr %s439, 2
          %s443 = sadd.s32 %s441, %s442
          %s444 = smul.addr %s443, 8
          %s445 = scalar_lea.vmem %s0, %s444
          %s446 = smul.u32 2, %s33
        $region64: #{tpu_custom_call.1} parent=59 // pred_fallthru
          _
      $region60: #{tpu_custom_call.1} parent=5 // pred_fallthru
        _
      %p447 = scmp.le.s32.totalorder 1, %s25
      %p448 = scmp.lt.s32.totalorder %s25, 3
      %p449 = pnand %p447, %p448
      %p450 = pneg %p449
      // Predicated region
      $region65: #{tpu_custom_call.1} parent=5 // pred_check
        _
      $region66: #{tpu_custom_call.1} parent=5 // pred_check_branch
        %452 = sbr.rel (%p449) target = $region68
      $region67: #{tpu_custom_call.1} parent=5 // pred_region
        %s453 = ssub.s32 %s25, 1
        // Predicated region
        $region69: #{tpu_custom_call.1} parent=67 // pred_check
          %p454 = pneg %p86
        $region70: #{tpu_custom_call.1} parent=67 // pred_check_branch
          %456 = sbr.rel (%p454) target = $region72
        $region71: #{tpu_custom_call.1} parent=67 // pred_region
          %457 = dma.done [#allocation10], 16
        $region72: #{tpu_custom_call.1} parent=67 // pred_fallthru
          _
        // Predicated region
        $region73: #{tpu_custom_call.1} parent=67 // pred_check
          %p458 = pneg %p107
        $region74: #{tpu_custom_call.1} parent=67 // pred_check_branch
          %460 = sbr.rel (%p458) target = $region76
        $region75: #{tpu_custom_call.1} parent=67 // pred_region
          %461 = dma.done [#allocation13], 16
        $region76: #{tpu_custom_call.1} parent=67 // pred_fallthru
          _
        // Predicated region
        $region77: #{tpu_custom_call.1} parent=67 // pred_check
          %p462 = pneg %p149
        $region78: #{tpu_custom_call.1} parent=67 // pred_check_branch
          %464 = sbr.rel (%p462) target = $region80
        $region79: #{tpu_custom_call.1} parent=67 // pred_region
          %465 = dma.done [#allocation13], 64
        $region80: #{tpu_custom_call.1} parent=67 // pred_fallthru
          _
        // Predicated region
        $region81: #{tpu_custom_call.1} parent=67 // pred_check
          %p466 = pneg %p170
        $region82: #{tpu_custom_call.1} parent=67 // pred_check_branch
          %468 = sbr.rel (%p466) target = $region84
        $region83: #{tpu_custom_call.1} parent=67 // pred_region
          %469 = dma.done [#allocation16], 16
        $region84: #{tpu_custom_call.1} parent=67 // pred_fallthru
          _
        // Predicated region
        $region85: #{tpu_custom_call.1} parent=67 // pred_check
          %p470 = pneg %p191
        $region86: #{tpu_custom_call.1} parent=67 // pred_check_branch
          %472 = sbr.rel (%p470) target = $region88
        $region87: #{tpu_custom_call.1} parent=67 // pred_region
          %473 = dma.done [#allocation16], 1024
        $region88: #{tpu_custom_call.1} parent=67 // pred_fallthru
          _
        // Predicated region
        $region89: #{tpu_custom_call.1} parent=67 // pred_check
          %p474 = pneg %p212
        $region90: #{tpu_custom_call.1} parent=67 // pred_check_branch
          %476 = sbr.rel (%p474) target = $region92
        $region91: #{tpu_custom_call.1} parent=67 // pred_region
          %477 = dma.done [#allocation19], 32
        $region92: #{tpu_custom_call.1} parent=67 // pred_fallthru
          _
        // Predicated region
        $region93: #{tpu_custom_call.1} parent=67 // pred_check
          %p478 = pneg %p233
        $region94: #{tpu_custom_call.1} parent=67 // pred_check_branch
          %480 = sbr.rel (%p478) target = $region96
        $region95: #{tpu_custom_call.1} parent=67 // pred_region
          %481 = dma.done [#allocation19], 16
        $region96: #{tpu_custom_call.1} parent=67 // pred_fallthru
          _
        %s482 = smul.u32 2, %s35
        %p483 = scmp.lt.s32.totalorder %s34, 1
        %s484 = scalar_select %p483, %s34, 1
        %p485 = scmp.lt.s32.totalorder %s482, 1
        %s486 = scalar_select %p485, %s482, 1
        %s487 = smul.addr %s484, 2
        %s488 = sadd.s32 %s486, %s487
        %s489 = smul.addr %s488, 8
        %s490 = scalar_lea.vmem %s0, %s489
        %p491 = pneg %p65
        %p492 = pneg %p62
        %p493 = pneg %p86
        %p494 = pneg %p83
        %p495 = pneg %p107
        %p496 = pneg %p104
        %p497 = pneg %p128
        %p498 = pneg %p125
        %p499 = pneg %p149
        %p500 = pneg %p146
        %p501 = pneg %p170
        %p502 = pneg %p167
        %p503 = pneg %p191
        %p504 = pneg %p188
        %p505 = pneg %p212
        %p506 = pneg %p209
        %p507 = pneg %p233
        %p508 = pneg %p230
        %p509 = pneg %p254
        %p510 = pneg %p251
        %p511 = pneg %p275
        %p512 = pneg %p272
        %p513 = pneg %p296
        %p514 = pneg %p293
        %p515 = pneg %p324
        %p516 = pneg %p321
        %s517 = sand.u32 %s311, 1
        %s518 = scalar_lea.sflag [#allocation11], %s517
        %s519 = sand.u32 %s311, 1
        %s520 = smul.addr %s519, 16
        %s521 = scalar_lea.vmem [#allocation21], %s520
        %s522 = smul.u32 2, %s35
        %p523 = scmp.lt.s32.totalorder %s34, 1
        %s524 = scalar_select %p523, %s34, 1
        %p525 = scmp.lt.s32.totalorder %s522, 1
        %s526 = scalar_select %p525, %s522, 1
        %s527 = smul.addr %s524, 2
        %s528 = sadd.s32 %s526, %s527
        %s529 = smul.addr %s528, 8
        %s530 = scalar_lea.vmem %s0, %s529
        %s531 = smul.u32 2, %s35
        %s532 = smul.u32 2, %s35
        %p534 = scmp.eq.s32.totalorder %s35, 0
        // Predicated region
        $region97: #{tpu_custom_call.1} parent=67 // pred_check
          %p535 = pneg %p534
        $region98: #{tpu_custom_call.1} parent=67 // pred_check_branch
          %537 = sbr.rel (%p535) target = $region100
        $region99: #{tpu_custom_call.1} parent=67 // pred_region
          %vm538 = vcmask 523264
          %539 = vst.msk [vmem:[#allocation8] sm:$0xff] %vm538, 0.0
          %540 = vst.msk [vmem:[#allocation8 + $0x8] sm:$0xff] %vm538, 0.0
          %541 = vst.msk [vmem:[#allocation3] sm:$0xff] %vm538, 0.0
        $region100: #{tpu_custom_call.1} parent=67 // pred_fallthru
          _
        %v542 = vld [vmem:[%s530] sm:$0xff]
        %v543 = vld [vmem:[%s530 + $0x8] sm:$0xff]
        %vm544 = vcmask 261120
        %v545 = vsel %vm544, %v542, 0.0
        %546 = vadd.xlane.f32.xlu0 %v545
        %v547 = vpop.xlane.xlu0 %546
        %v548 = vsel %vm544, %v543, 0.0
        %549 = vadd.xlane.f32.xlu0 %v548
        %v550 = vpop.xlane.xlu0 %549
        %v551 = vrcp.pop 32.0
        %v552 = vmul.f32 %v547, %v551
        %v553 = vmul.f32 %v550, %v551
        %v554 = vsub.f32 %v542, %v552
        %v555 = vsub.f32 %v543, %v553
        %v556 = vmul.f32 %v554, %v554
        %v557 = vmul.f32 %v555, %v555
        %v558 = vsel %vm544, %v556, 0.0
        %559 = vadd.xlane.f32.xlu0 %v558
        %v560 = vpop.xlane.xlu0 %559
        %v561 = vsel %vm544, %v557, 0.0
        %562 = vadd.xlane.f32.xlu0 %v561
        %v563 = vpop.xlane.xlu0 %562
        %v564 = vmul.f32 %v560, %v551
        %v565 = vmul.f32 %v563, %v551
        %v566 = vadd.f32 %v564, 1e-05
        %v567 = vadd.f32 %v565, 1e-05
        %v568 = vrsqrt.pop %v566
        %v569 = vrsqrt.pop %v567
        %v570 = vmul.f32 %v554, %v568
        %v571 = vmul.f32 %v555, %v569
        %v572 = vld [vmem:[#allocation9] sm:$0x1]
        %v574 = vlaneseq
        %v575 = vshrl.u32 %v574, 7
        %v576 = vsub.s32 0, %v575
        %v577 = vrot.slane %v572, %v576
        %v579 = vmul.f32 %v570, %v577
        %v580 = vmul.f32 %v571, %v577
        %v581 = vld [vmem:[#allocation12] sm:$0x1]
        %v583 = vlaneseq
        %v584 = vshrl.u32 %v583, 7
        %v585 = vsub.s32 0, %v584
        %v586 = vrot.slane %v581, %v585
        %v588 = vadd.f32 %v579, %v586
        %v589 = vadd.f32 %v580, %v586
        %v590 = vpack.c.bf16 %v589, %v588
        %v591 = vld [vmem:[%s3] sm:$0xf]
        %v592 = vld [vmem:[%s3 + $0x4] sm:$0xf]
        %v593 = vld [vmem:[%s3 + $0x8] sm:$0xf]
        %v594 = vld [vmem:[%s3 + $0xc] sm:$0xf]
        %v599 = vunpack.c.l.b16 %v591
        %v600 = vunpack.c.l.b16 %v592
        %v601 = vunpack.c.l.b16 %v593
        %v602 = vunpack.c.l.b16 %v594
        %v603 = vpack.c.b16 %v600, %v599
        %v604 = vpack.c.b16 %v602, %v601
        %v608 = vsel %vm544, %v590, 0
        %610 = vmatprep.subr.bf16.mxu0 0
        %611 = vmatpush1.bf16.msra.mxu0 0
        %612 = vmatprep.subr.bf16.mxu0 0
        %613 = vmatpush1.bf16.msra.mxu0 0
        %614 = vmatprep.subr.bf16.mxu0 0
        %615 = vmatpush1.bf16.msra.mxu0 0
        %616 = vmatprep.subr.bf16.mxu0 0
        %617 = vmatpush1.bf16.msra.mxu0 0
        %618 = vmatprep.subr.bf16.mxu0 0
        %619 = vmatpush1.bf16.msra.mxu0 0
        %620 = vmatprep.subr.bf16.mxu0 0
        %621 = vmatpush1.bf16.msra.mxu0 0
        %622 = vmatprep.subr.bf16.mxu0 0
        %623 = vmatpush1.bf16.msra.mxu0 %v604
        %624 = vmatprep.subr.bf16.mxu0 0
        %625 = vmatpush1.bf16.msra.mxu0 %v603
        %626 = vmatprep.subr.bf16.mxu0 0
        %627 = vmatpush2.bf16.msra.mxu0 0
        %628 = vmatprep.subr.bf16.mxu0 0
        %629 = vmatpush2.bf16.msra.mxu0 0
        %630 = vmatprep.subr.bf16.mxu0 0
        %631 = vmatpush2.bf16.msra.mxu0 0
        %632 = vmatprep.subr.bf16.mxu0 0
        %633 = vmatpush2.bf16.msra.mxu0 0
        %634 = vmatprep.subr.bf16.mxu0 0
        %635 = vmatpush2.bf16.msra.mxu0 0
        %636 = vmatprep.subr.bf16.mxu0 0
        %637 = vmatpush2.bf16.msra.mxu0 0
        %638 = vmatprep.subr.bf16.mxu0 0
        %639 = vmatpush2.bf16.msra.mxu0 0
        %640 = vmatprep.subr.bf16.mxu0 0
        %641 = vmatpush2.bf16.msra.mxu0 0
        %642 = vmatprep.mubr.bf16.mxu0 0
        %643 = vmatmul.mubr.bf16.gmra.mxu0 %v608
        %v644 = vpop.f32.mrf.mxu0
        %v645 = vadd.f32 0.0, %v644
        %v646 = vpop.f32.mrf.mxu0
        %v647 = vpop.f32.mrf.mxu0
        %v648 = vadd.f32 0.0, %v647
        %v649 = vpop.f32.mrf.mxu0
        %650 = vdwg.mxu0
        %v651 = vld [vmem:[#allocation3] sm:$0xff]
        %vm652 = vcmask 523264
        %653 = vst.msk [vmem:[#allocation2] sm:$0xff] %vm652, %v651
        %654 = vst.msk [vmem:[#allocation2 + $0x8] sm:$0xff] %vm652, %v645
        %655 = vst.msk [vmem:[#allocation2 + $0x10] sm:$0xff] %vm652, %v648
        %656 = vst.msk [vmem:[#allocation3] sm:$0xff] %vm652, %v648
        %v657 = vld [vmem:[#allocation14] sm:$0xf]
        %v658 = vld [vmem:[#allocation15] sm:$0x1]
        %v659 = vlaneseq
        %v660 = vshrl.u32 %v659, 7
        %v661 = vsub.s32 3, %v660
        %v662 = vrot.slane %v657, %v661
        %v663 = vmul.f32 %v662, %v645
        %v664 = vmul.f32 %v662, %v648
        %v666 = vlaneseq
        %v667 = vshrl.u32 %v666, 7
        %v668 = vsub.s32 0, %v667
        %v669 = vrot.slane %v658, %v668
        %v671 = vadd.f32 %v669, %v663
        %v672 = vadd.f32 %v669, %v664
        %v673 = vld [vmem:[#allocation2 + $0x5] sm:$0xff]
        %v674 = vld [vmem:[#allocation2 + $0xd] sm:$0xff]
        %v675 = vlaneseq
        %v676 = vshrl.u32 %v675, 7
        %v677 = vsub.s32 0, %v676
        %v678 = vrot.slane %v657, %v677
        %v679 = vmul.f32 %v678, %v673
        %v680 = vmul.f32 %v678, %v674
        %v681 = vadd.f32 %v671, %v679
        %v682 = vadd.f32 %v672, %v680
        %v683 = vld [vmem:[#allocation2 + $0x6] sm:$0xff]
        %v684 = vld [vmem:[#allocation2 + $0xe] sm:$0xff]
        %v685 = vlaneseq
        %v686 = vshrl.u32 %v685, 7
        %v687 = vsub.s32 1, %v686
        %v688 = vrot.slane %v657, %v687
        %v689 = vmul.f32 %v688, %v683
        %v690 = vmul.f32 %v688, %v684
        %v691 = vadd.f32 %v681, %v689
        %v692 = vadd.f32 %v682, %v690
        %v693 = vld [vmem:[#allocation2 + $0x7] sm:$0xff]
        %v694 = vld [vmem:[#allocation2 + $0xf] sm:$0xff]
        %v695 = vlaneseq
        %v696 = vshrl.u32 %v695, 7
        %v697 = vsub.s32 2, %v696
        %v698 = vrot.slane %v657, %v697
        %v699 = vmul.f32 %v698, %v693
        %v700 = vmul.f32 %v698, %v694
        %v701 = vadd.f32 %v691, %v699
        %v702 = vadd.f32 %v692, %v700
        %v703 = vsub.f32 0.0, %v701
        %v704 = vsub.f32 0.0, %v702
        %v705 = vmul.f32 %v703, 1.442695
        %v706 = vpow.pop %v705
        %v707 = vmul.f32 %v704, 1.442695
        %v708 = vpow.pop %v707
        %v709 = vadd.f32 %v706, 1.0
        %v710 = vadd.f32 %v708, 1.0
        %v711 = vrcp.pop %v709
        %v712 = vrcp.pop %v710
        %v713 = vmul.f32 %v701, %v711
        %v714 = vmul.f32 %v702, %v712
        %v715 = vld [vmem:[#allocation17] sm:$0xff]
        %v716 = vld [vmem:[#allocation17 + $0x8] sm:$0xff]
        %v717 = vld [vmem:[#allocation17 + $0x10] sm:$0xff]
        %v718 = vld [vmem:[#allocation17 + $0x18] sm:$0xff]
        %v719 = vld [vmem:[#allocation17 + $0x20] sm:$0xff]
        %v720 = vld [vmem:[#allocation17 + $0x28] sm:$0xff]
        %v721 = vld [vmem:[#allocation17 + $0x30] sm:$0xff]
        %v722 = vld [vmem:[#allocation17 + $0x38] sm:$0xff]
        %v724 = vsel %vm652, %v713, 0
        %v727 = vsel %vm652, %v714, 0
        %729 = vmatprep.subr.mxu0 0.0
        %730 = vmatpush1.msra.mxu0 0.0
        %731 = vmatprep.subr.mxu0 0.0
        %732 = vmatpush1.msra.mxu0 0.0
        %733 = vmatprep.subr.mxu0 0.0
        %734 = vmatpush1.msra.mxu0 0.0
        %735 = vmatprep.subr.mxu0 0.0
        %736 = vmatpush1.msra.mxu0 0.0
        %737 = vmatprep.subr.mxu0 0.0
        %738 = vmatpush1.msra.mxu0 0.0
        %739 = vmatprep.subr.mxu0 0.0
        %740 = vmatpush1.msra.mxu0 0.0
        %741 = vmatprep.subr.mxu0 0.0
        %742 = vmatpush1.msra.mxu0 0.0
        %743 = vmatprep.subr.mxu0 0.0
        %744 = vmatpush1.msra.mxu0 0.0
        %745 = vmatprep.subr.mxu0 0.0
        %746 = vmatpush1.msra.mxu0 %v722
        %747 = vmatprep.subr.mxu0 0.0
        %748 = vmatpush1.msra.mxu0 %v721
        %749 = vmatprep.subr.mxu0 0.0
        %750 = vmatpush1.msra.mxu0 %v720
        %751 = vmatprep.subr.mxu0 0.0
        %752 = vmatpush1.msra.mxu0 %v719
        %753 = vmatprep.subr.mxu0 0.0
        %754 = vmatpush1.msra.mxu0 %v718
        %755 = vmatprep.subr.mxu0 0.0
        %756 = vmatpush1.msra.mxu0 %v717
        %757 = vmatprep.subr.mxu0 0.0
        %758 = vmatpush1.msra.mxu0 %v716
        %759 = vmatprep.subr.mxu0 0.0
        %760 = vmatpush1.msra.mxu0 %v715
        %761 = vmatprep.subr.mxu0 0.0
        %762 = vmatpush2.msra.mxu0 0.0
        %763 = vmatprep.subr.mxu0 0.0
        %764 = vmatpush2.msra.mxu0 0.0
        %765 = vmatprep.subr.mxu0 0.0
        %766 = vmatpush2.msra.mxu0 0.0
        %767 = vmatprep.subr.mxu0 0.0
        %768 = vmatpush2.msra.mxu0 0.0
        %769 = vmatprep.subr.mxu0 0.0
        %770 = vmatpush2.msra.mxu0 0.0
        %771 = vmatprep.subr.mxu0 0.0
        %772 = vmatpush2.msra.mxu0 0.0
        %773 = vmatprep.subr.mxu0 0.0
        %774 = vmatpush2.msra.mxu0 0.0
        %775 = vmatprep.subr.mxu0 0.0
        %776 = vmatpush2.msra.mxu0 0.0
        %777 = vmatprep.subr.mxu0 0.0
        %778 = vmatpush2.msra.mxu0 0.0
        %779 = vmatprep.subr.mxu0 0.0
        %780 = vmatpush2.msra.mxu0 0.0
        %781 = vmatprep.subr.mxu0 0.0
        %782 = vmatpush2.msra.mxu0 0.0
        %783 = vmatprep.subr.mxu0 0.0
        %784 = vmatpush2.msra.mxu0 0.0
        %785 = vmatprep.subr.mxu0 0.0
        %786 = vmatpush2.msra.mxu0 0.0
        %787 = vmatprep.subr.mxu0 0.0
        %788 = vmatpush2.msra.mxu0 0.0
        %789 = vmatprep.subr.mxu0 0.0
        %790 = vmatpush2.msra.mxu0 0.0
        %791 = vmatprep.subr.mxu0 0.0
        %792 = vmatpush2.msra.mxu0 0.0
        %793 = vmatprep.mubr.f32.mxu0 0.0
        %794 = vmatmul.mubr.f32.gmra.mxu0 %v724
        %v795 = vpop.f32.mrf.mxu0
        %v796 = vadd.f32 0.0, %v795
        %v797 = vpop.f32.mrf.mxu0
        %798 = vmatprep.mubr.f32.mxu0 0.0
        %799 = vmatmul.mubr.f32.gmra.mxu0 %v727
        %v800 = vpop.f32.mrf.mxu0
        %v801 = vadd.f32 0.0, %v800
        %v802 = vpop.f32.mrf.mxu0
        %803 = vdwg.mxu0
        %v804 = vld [vmem:[#allocation18] sm:$0x3]
        %v805 = vld [vmem:[#allocation20] sm:$0x1]
        %v807 = vlaneseq
        %v808 = vshrl.u32 %v807, 7
        %v809 = vsub.s32 0, %v808
        %v810 = vrot.slane %v805, %v809
        %vm812 = vcmask 15360
        %v814 = vsel %vm812, %v796, 0
        %v817 = vsel %vm812, %v801, 0
        %vm819 = vcmask 1041408
        %v821 = vsel %vm819, %v804, 0
        %823 = vmatprep.subr.mxu0 0.0
        %824 = vmatpush1.msra.mxu0 0.0
        %825 = vmatprep.subr.mxu0 0.0
        %826 = vmatpush1.msra.mxu0 0.0
        %827 = vmatprep.subr.mxu0 0.0
        %828 = vmatpush1.msra.mxu0 0.0
        %829 = vmatprep.subr.mxu0 0.0
        %830 = vmatpush1.msra.mxu0 0.0
        %831 = vmatprep.subr.mxu0 0.0
        %832 = vmatpush1.msra.mxu0 0.0
        %833 = vmatprep.subr.mxu0 0.0
        %834 = vmatpush1.msra.mxu0 0.0
        %835 = vmatprep.subr.mxu0 0.0
        %836 = vmatpush1.msra.mxu0 0.0
        %837 = vmatprep.subr.mxu0 0.0
        %838 = vmatpush1.msra.mxu0 0.0
        %839 = vmatprep.subr.mxu0 0.0
        %840 = vmatpush1.msra.mxu0 0.0
        %841 = vmatprep.subr.mxu0 0.0
        %842 = vmatpush1.msra.mxu0 0.0
        %843 = vmatprep.subr.mxu0 0.0
        %844 = vmatpush1.msra.mxu0 0.0
        %845 = vmatprep.subr.mxu0 0.0
        %846 = vmatpush1.msra.mxu0 0.0
        %847 = vmatprep.subr.mxu0 0.0
        %848 = vmatpush1.msra.mxu0 0.0
        %849 = vmatprep.subr.mxu0 0.0
        %850 = vmatpush1.msra.mxu0 0.0
        %851 = vmatprep.subr.mxu0 0.0
        %852 = vmatpush1.msra.mxu0 0.0
        %853 = vmatprep.subr.mxu0 0.0
        %854 = vmatpush1.msra.mxu0 %v821
        %855 = vmatprep.subr.mxu0 0.0
        %856 = vmatpush2.msra.mxu0 0.0
        %857 = vmatprep.subr.mxu0 0.0
        %858 = vmatpush2.msra.mxu0 0.0
        %859 = vmatprep.subr.mxu0 0.0
        %860 = vmatpush2.msra.mxu0 0.0
        %861 = vmatprep.subr.mxu0 0.0
        %862 = vmatpush2.msra.mxu0 0.0
        %863 = vmatprep.subr.mxu0 0.0
        %864 = vmatpush2.msra.mxu0 0.0
        %865 = vmatprep.subr.mxu0 0.0
        %866 = vmatpush2.msra.mxu0 0.0
        %867 = vmatprep.subr.mxu0 0.0
        %868 = vmatpush2.msra.mxu0 0.0
        %869 = vmatprep.subr.mxu0 0.0
        %870 = vmatpush2.msra.mxu0 0.0
        %871 = vmatprep.subr.mxu0 0.0
        %872 = vmatpush2.msra.mxu0 0.0
        %873 = vmatprep.subr.mxu0 0.0
        %874 = vmatpush2.msra.mxu0 0.0
        %875 = vmatprep.subr.mxu0 0.0
        %876 = vmatpush2.msra.mxu0 0.0
        %877 = vmatprep.subr.mxu0 0.0
        %878 = vmatpush2.msra.mxu0 0.0
        %879 = vmatprep.subr.mxu0 0.0
        %880 = vmatpush2.msra.mxu0 0.0
        %881 = vmatprep.subr.mxu0 0.0
        %882 = vmatpush2.msra.mxu0 0.0
        %883 = vmatprep.subr.mxu0 0.0
        %884 = vmatpush2.msra.mxu0 0.0
        %885 = vmatprep.subr.mxu0 0.0
        %886 = vmatpush2.msra.mxu0 0.0
        %887 = vmatprep.mubr.f32.mxu0 0.0
        %888 = vmatmul.mubr.f32.gmra.mxu0 %v814
        %v889 = vpop.f32.mrf.mxu0
        %v890 = vadd.f32 %v810, %v889
        %v891 = vpop.f32.mrf.mxu0
        %892 = vmatprep.mubr.f32.mxu0 0.0
        %893 = vmatmul.mubr.f32.gmra.mxu0 %v817
        %v894 = vpop.f32.mrf.mxu0
        %v895 = vadd.f32 %v810, %v894
        %v896 = vpop.f32.mrf.mxu0
        %897 = vdwg.mxu0
        %vm898 = vcmp.gt.f32.partialorder %v890, 20.0
        %vm899 = vcmp.gt.f32.partialorder %v895, 20.0
        %v900 = vmin.f32 %v890, 20.0
        %v901 = vmin.f32 %v895, 20.0
        %v902 = vmul.f32 %v900, 1.442695
        %v903 = vpow.pop %v902
        %v904 = vmul.f32 %v901, 1.442695
        %v905 = vpow.pop %v904
        %v906 = vadd.f32 %v903, 1.0
        %v907 = vlog2.pop %v906
        %v908 = vmul.f32 %v907, 0.6931472
        %v909 = vmul.f32 -0.5, %v903
        %v910 = vadd.f32 %v909, 1.0
        %v911 = vmul.f32 %v910, %v903
        %v912 = vand.u32 2147483647, %v903
        %vm913 = vcmp.lt.f32.partialorder %v912, 0.0004427343
        %v914 = vsel %vm913, %v911, %v908
        %v915 = vadd.f32 %v905, 1.0
        %v916 = vlog2.pop %v915
        %v917 = vmul.f32 %v916, 0.6931472
        %v918 = vmul.f32 -0.5, %v905
        %v919 = vadd.f32 %v918, 1.0
        %v920 = vmul.f32 %v919, %v905
        %v921 = vand.u32 2147483647, %v905
        %vm922 = vcmp.lt.f32.partialorder %v921, 0.0004427343
        %v923 = vsel %vm922, %v920, %v917
        %v924 = vsel %vm898, %v890, %v914
        %v925 = vsel %vm899, %v895, %v923
        %926 = vst.msk [vmem:[#allocation4] sm:$0xff] %vm652, %v924
        %927 = vst.msk [vmem:[#allocation4 + $0x8] sm:$0xff] %vm652, %v925
        %v928 = vmul.f32 %v924, %v713
        %v929 = vmul.f32 %v925, %v714
        %930 = vst.msk [vmem:[#allocation5] sm:$0xff] %vm652, %v928
        %931 = vst.msk [vmem:[#allocation5 + $0x8] sm:$0xff] %vm652, %v929
        %932 = vrot.lane.b32.xlu0 %v796, 126
        %v933 = vpop.permute.xlu0 %932
        %934 = vrot.lane.b32.xlu0 %v801, 126
        %v935 = vpop.permute.xlu0 %934
        %vm938 = vcmask 130048
        %939 = vst.msk [vmem:[#allocation6] sm:$0xff] %vm938, %v933
        %940 = vst.msk [vmem:[#allocation6 + $0x8] sm:$0xff] %vm938, %v935
        %941 = vrot.lane.b32.xlu0 %v796, 110
        %v942 = vpop.permute.xlu0 %941
        %943 = vrot.lane.b32.xlu0 %v801, 110
        %v944 = vpop.permute.xlu0 %943
        %947 = vst.msk [vmem:[#allocation7] sm:$0xff] %vm938, %v942
        %948 = vst.msk [vmem:[#allocation7 + $0x8] sm:$0xff] %vm938, %v944
        %v949 = vld [vmem:[%s9] sm:$0xff]
        %v950 = vld [vmem:[%s9 + $0x8] sm:$0xff]
        %v951 = vld [vmem:[#allocation8] sm:$0xff]
        %v952 = vld [vmem:[#allocation8 + $0x8] sm:$0xff]
        %v953 = vld [vmem:[#allocation4] sm:$0xff]
        %v954 = vld [vmem:[#allocation4 + $0x8] sm:$0xff]
        %v955 = vld [vmem:[#allocation5] sm:$0xff]
        %v956 = vld [vmem:[#allocation5 + $0x8] sm:$0xff]
        %v957 = vld [vmem:[#allocation6] sm:$0xff]
        %v958 = vld [vmem:[#allocation6 + $0x8] sm:$0xff]
        %959 = vxpose.xlu0.b32.start [1/16] %v957, 128
        %960 = vxpose.xlu0.b32.cont [2/16] %v958, 128
        %961 = vxpose.xlu0.b32.cont [3/16] 0.0, 128
        %962 = vxpose.xlu0.b32.cont [4/16] 0.0, 128
        %963 = vxpose.xlu0.b32.cont [5/16] 0.0, 128
        %964 = vxpose.xlu0.b32.cont [6/16] 0.0, 128
        %965 = vxpose.xlu0.b32.cont [7/16] 0.0, 128
        %966 = vxpose.xlu0.b32.cont [8/16] 0.0, 128
        %967 = vxpose.xlu0.b32.cont [9/16] 0.0, 128
        %968 = vxpose.xlu0.b32.cont [10/16] 0.0, 128
        %969 = vxpose.xlu0.b32.cont [11/16] 0.0, 128
        %970 = vxpose.xlu0.b32.cont [12/16] 0.0, 128
        %971 = vxpose.xlu0.b32.cont [13/16] 0.0, 128
        %972 = vxpose.xlu0.b32.cont [14/16] 0.0, 128
        %973 = vxpose.xlu0.b32.cont [15/16] 0.0, 128
        %974 = vxpose.xlu0.b32.end [16/16] 0.0, 128
        %v975 = vpop.trf.xlu0
        %v976 = vpop.trf.xlu0
        %v977 = vpop.trf.xlu0
        %v978 = vpop.trf.xlu0
        %v979 = vpop.trf.xlu0
        %v980 = vpop.trf.xlu0
        %v981 = vpop.trf.xlu0
        %v982 = vpop.trf.xlu0
        %v983 = vpop.trf.xlu0
        %v984 = vpop.trf.xlu0
        %v985 = vpop.trf.xlu0
        %v986 = vpop.trf.xlu0
        %v987 = vpop.trf.xlu0
        %v988 = vpop.trf.xlu0
        %v989 = vpop.trf.xlu0
        %v990 = vpop.trf.xlu0
        %v991 = vld [vmem:[#allocation7] sm:$0xff]
        %v992 = vld [vmem:[#allocation7 + $0x8] sm:$0xff]
        %993 = vxpose.xlu0.b32.start [1/16] %v991, 128
        %994 = vxpose.xlu0.b32.cont [2/16] %v992, 128
        %995 = vxpose.xlu0.b32.cont [3/16] 0.0, 128
        %996 = vxpose.xlu0.b32.cont [4/16] 0.0, 128
        %997 = vxpose.xlu0.b32.cont [5/16] 0.0, 128
        %998 = vxpose.xlu0.b32.cont [6/16] 0.0, 128
        %999 = vxpose.xlu0.b32.cont [7/16] 0.0, 128
        %1000 = vxpose.xlu0.b32.cont [8/16] 0.0, 128
        %1001 = vxpose.xlu0.b32.cont [9/16] 0.0, 128
        %1002 = vxpose.xlu0.b32.cont [10/16] 0.0, 128
        %1003 = vxpose.xlu0.b32.cont [11/16] 0.0, 128
        %1004 = vxpose.xlu0.b32.cont [12/16] 0.0, 128
        %1005 = vxpose.xlu0.b32.cont [13/16] 0.0, 128
        %1006 = vxpose.xlu0.b32.cont [14/16] 0.0, 128
        %1007 = vxpose.xlu0.b32.cont [15/16] 0.0, 128
        %1008 = vxpose.xlu0.b32.end [16/16] 0.0, 128
        %v1009 = vpop.trf.xlu0
        %v1010 = vpop.trf.xlu0
        %v1011 = vpop.trf.xlu0
        %v1012 = vpop.trf.xlu0
        %v1013 = vpop.trf.xlu0
        %v1014 = vpop.trf.xlu0
        %v1015 = vpop.trf.xlu0
        %v1016 = vpop.trf.xlu0
        %v1017 = vpop.trf.xlu0
        %v1018 = vpop.trf.xlu0
        %v1019 = vpop.trf.xlu0
        %v1020 = vpop.trf.xlu0
        %v1021 = vpop.trf.xlu0
        %v1022 = vpop.trf.xlu0
        %v1023 = vpop.trf.xlu0
        %v1024 = vpop.trf.xlu0
        %v1025 = vlaneseq
        %v1026 = vshrl.u32 %v1025, 7
        %v1027 = vsub.s32 0, %v1026
        %v1028 = vrot.slane %v953, %v1027
        %v1029 = vmul.f32 %v1028, %v949
        %v1030 = vmul.f32 %v1028, %v950
        %v1031 = vmul.f32 %v1029, 1.442695
        %v1032 = vpow.pop %v1031
        %v1033 = vmul.f32 %v1030, 1.442695
        %v1034 = vpow.pop %v1033
        %v1035 = vmul.f32 %v1032, %v951
        %v1036 = vmul.f32 %v1034, %v952
        %1038 = vset.pattern.permute.xlu0 0
        %1039 = vperm.xlu0 %1038, %v975
        %v1040 = vpop.permute.xlu0 %1039
        %1043 = vset.pattern.permute.xlu0 0
        %1044 = vperm.xlu0 %1043, %v976
        %v1045 = vpop.permute.xlu0 %1044
        %v1047 = vlaneseq
        %v1048 = vshrl.u32 %v1047, 7
        %v1049 = vsub.s32 0, %v1048
        %v1050 = vrot.slane %v955, %v1049
        %v1051 = vmul.f32 %v1040, %v1050
        %v1052 = vmul.f32 %v1045, %v1050
        %v1053 = vadd.f32 %v1035, %v1051
        %v1054 = vadd.f32 %v1036, %v1052
        %1056 = vset.pattern.permute.xlu0 0
        %1057 = vperm.xlu0 %1056, %v1009
        %v1058 = vpop.permute.xlu0 %1057
        %1061 = vset.pattern.permute.xlu0 0
        %1062 = vperm.xlu0 %1061, %v1010
        %v1063 = vpop.permute.xlu0 %1062
        %v1065 = vmul.f32 %v1058, %v1053
        %v1066 = vmul.f32 %v1063, %v1054
        %v1067 = vsel %vm652, %v1065, 0.0
        %v1068 = vsel %vm652, %v1066, 0.0
        %v1069 = vadd.f32 %v1067, %v1068
        %v1070 = vrot.slane %v1069, 4
        %v1071 = vadd.f32 %v1069, %v1070
        %v1072 = vrot.slane %v1071, 2
        %v1073 = vadd.f32 %v1071, %v1072
        %v1074 = vrot.slane %v1073, 1
        %v1075 = vadd.f32 %v1073, %v1074
        %v1076 = vlaneseq
        %v1077 = vshrl.u32 %v1076, 7
        %v1078 = vsub.s32 1, %v1077
        %v1079 = vrot.slane %v953, %v1078
        %v1080 = vmul.f32 %v1079, %v949
        %v1081 = vmul.f32 %v1079, %v950
        %v1082 = vmul.f32 %v1080, 1.442695
        %v1083 = vpow.pop %v1082
        %v1084 = vmul.f32 %v1081, 1.442695
        %v1085 = vpow.pop %v1084
        %v1086 = vmul.f32 %v1083, %v1053
        %v1087 = vmul.f32 %v1085, %v1054
        %1088 = vset.pattern.permute.xlu0 1
        %1089 = vperm.xlu0 %1088, %v975
        %v1090 = vpop.permute.xlu0 %1089
        %1092 = vset.pattern.permute.xlu0 1
        %1093 = vperm.xlu0 %1092, %v976
        %v1094 = vpop.permute.xlu0 %1093
        %v1096 = vlaneseq
        %v1097 = vshrl.u32 %v1096, 7
        %v1098 = vsub.s32 1, %v1097
        %v1099 = vrot.slane %v955, %v1098
        %v1100 = vmul.f32 %v1090, %v1099
        %v1101 = vmul.f32 %v1094, %v1099
        %v1102 = vadd.f32 %v1086, %v1100
        %v1103 = vadd.f32 %v1087, %v1101
        %1104 = vset.pattern.permute.xlu0 1
        %1105 = vperm.xlu0 %1104, %v1009
        %v1106 = vpop.permute.xlu0 %1105
        %1108 = vset.pattern.permute.xlu0 1
        %1109 = vperm.xlu0 %1108, %v1010
        %v1110 = vpop.permute.xlu0 %1109
        %v1112 = vmul.f32 %v1106, %v1102
        %v1113 = vmul.f32 %v1110, %v1103
        %v1114 = vsel %vm652, %v1112, 0.0
        %v1115 = vsel %vm652, %v1113, 0.0
        %v1116 = vadd.f32 %v1114, %v1115
        %v1117 = vrot.slane %v1116, 4
        %v1118 = vadd.f32 %v1116, %v1117
        %v1119 = vrot.slane %v1118, 2
        %v1120 = vadd.f32 %v1118, %v1119
        %v1121 = vrot.slane %v1120, 1
        %v1122 = vadd.f32 %v1120, %v1121
        %v1123 = vlaneseq
        %v1124 = vshrl.u32 %v1123, 7
        %v1125 = vsub.s32 2, %v1124
        %v1126 = vrot.slane %v953, %v1125
        %v1127 = vmul.f32 %v1126, %v949
        %v1128 = vmul.f32 %v1126, %v950
        %v1129 = vmul.f32 %v1127, 1.442695
        %v1130 = vpow.pop %v1129
        %v1131 = vmul.f32 %v1128, 1.442695
        %v1132 = vpow.pop %v1131
        %v1133 = vmul.f32 %v1130, %v1102
        %v1134 = vmul.f32 %v1132, %v1103
        %1135 = vset.pattern.permute.xlu0 2
        %1136 = vperm.xlu0 %1135, %v975
        %v1137 = vpop.permute.xlu0 %1136
        %1139 = vset.pattern.permute.xlu0 2
        %1140 = vperm.xlu0 %1139, %v976
        %v1141 = vpop.permute.xlu0 %1140
        %v1143 = vlaneseq
        %v1144 = vshrl.u32 %v1143, 7
        %v1145 = vsub.s32 2, %v1144
        %v1146 = vrot.slane %v955, %v1145
        %v1147 = vmul.f32 %v1137, %v1146
        %v1148 = vmul.f32 %v1141, %v1146
        %v1149 = vadd.f32 %v1133, %v1147
        %v1150 = vadd.f32 %v1134, %v1148
        %1151 = vset.pattern.permute.xlu0 2
        %1152 = vperm.xlu0 %1151, %v1009
        %v1153 = vpop.permute.xlu0 %1152
        %1155 = vset.pattern.permute.xlu0 2
        %1156 = vperm.xlu0 %1155, %v1010
        %v1157 = vpop.permute.xlu0 %1156
        %v1159 = vmul.f32 %v1153, %v1149
        %v1160 = vmul.f32 %v1157, %v1150
        %v1161 = vsel %vm652, %v1159, 0.0
        %v1162 = vsel %vm652, %v1160, 0.0
        %v1163 = vadd.f32 %v1161, %v1162
        %v1164 = vrot.slane %v1163, 4
        %v1165 = vadd.f32 %v1163, %v1164
        %v1166 = vrot.slane %v1165, 2
        %v1167 = vadd.f32 %v1165, %v1166
        %v1168 = vrot.slane %v1167, 1
        %v1169 = vadd.f32 %v1167, %v1168
        %v1170 = vlaneseq
        %v1171 = vshrl.u32 %v1170, 7
        %v1172 = vsub.s32 3, %v1171
        %v1173 = vrot.slane %v953, %v1172
        %v1174 = vmul.f32 %v1173, %v949
        %v1175 = vmul.f32 %v1173, %v950
        %v1176 = vmul.f32 %v1174, 1.442695
        %v1177 = vpow.pop %v1176
        %v1178 = vmul.f32 %v1175, 1.442695
        %v1179 = vpow.pop %v1178
        %v1180 = vmul.f32 %v1177, %v1149
        %v1181 = vmul.f32 %v1179, %v1150
        %1182 = vset.pattern.permute.xlu0 3
        %1183 = vperm.xlu0 %1182, %v975
        %v1184 = vpop.permute.xlu0 %1183
        %1186 = vset.pattern.permute.xlu0 3
        %1187 = vperm.xlu0 %1186, %v976
        %v1188 = vpop.permute.xlu0 %1187
        %v1190 = vlaneseq
        %v1191 = vshrl.u32 %v1190, 7
        %v1192 = vsub.s32 3, %v1191
        %v1193 = vrot.slane %v955, %v1192
        %v1194 = vmul.f32 %v1184, %v1193
        %v1195 = vmul.f32 %v1188, %v1193
        %v1196 = vadd.f32 %v1180, %v1194
        %v1197 = vadd.f32 %v1181, %v1195
        %1198 = vset.pattern.permute.xlu0 3
        %1199 = vperm.xlu0 %1198, %v1009
        %v1200 = vpop.permute.xlu0 %1199
        %1202 = vset.pattern.permute.xlu0 3
        %1203 = vperm.xlu0 %1202, %v1010
        %v1204 = vpop.permute.xlu0 %1203
        %v1206 = vmul.f32 %v1200, %v1196
        %v1207 = vmul.f32 %v1204, %v1197
        %v1208 = vsel %vm652, %v1206, 0.0
        %v1209 = vsel %vm652, %v1207, 0.0
        %v1210 = vadd.f32 %v1208, %v1209
        %v1211 = vrot.slane %v1210, 4
        %v1212 = vadd.f32 %v1210, %v1211
        %v1213 = vrot.slane %v1212, 2
        %v1214 = vadd.f32 %v1212, %v1213
        %v1215 = vrot.slane %v1214, 1
        %v1216 = vadd.f32 %v1214, %v1215
        %v1217 = vlaneseq
        %v1218 = vshrl.u32 %v1217, 7
        %v1219 = vsub.s32 4, %v1218
        %v1220 = vrot.slane %v953, %v1219
        %v1221 = vmul.f32 %v1220, %v949
        %v1222 = vmul.f32 %v1220, %v950
        %v1223 = vmul.f32 %v1221, 1.442695
        %v1224 = vpow.pop %v1223
        %v1225 = vmul.f32 %v1222, 1.442695
        %v1226 = vpow.pop %v1225
        %v1227 = vmul.f32 %v1224, %v1196
        %v1228 = vmul.f32 %v1226, %v1197
        %1229 = vset.pattern.permute.xlu0 4
        %1230 = vperm.xlu0 %1229, %v975
        %v1231 = vpop.permute.xlu0 %1230
        %1233 = vset.pattern.permute.xlu0 4
        %1234 = vperm.xlu0 %1233, %v976
        %v1235 = vpop.permute.xlu0 %1234
        %v1237 = vlaneseq
        %v1238 = vshrl.u32 %v1237, 7
        %v1239 = vsub.s32 4, %v1238
        %v1240 = vrot.slane %v955, %v1239
        %v1241 = vmul.f32 %v1231, %v1240
        %v1242 = vmul.f32 %v1235, %v1240
        %v1243 = vadd.f32 %v1227, %v1241
        %v1244 = vadd.f32 %v1228, %v1242
        %1245 = vset.pattern.permute.xlu0 4
        %1246 = vperm.xlu0 %1245, %v1009
        %v1247 = vpop.permute.xlu0 %1246
        %1249 = vset.pattern.permute.xlu0 4
        %1250 = vperm.xlu0 %1249, %v1010
        %v1251 = vpop.permute.xlu0 %1250
        %v1253 = vmul.f32 %v1247, %v1243
        %v1254 = vmul.f32 %v1251, %v1244
        %v1255 = vsel %vm652, %v1253, 0.0
        %v1256 = vsel %vm652, %v1254, 0.0
        %v1257 = vadd.f32 %v1255, %v1256
        %v1258 = vrot.slane %v1257, 4
        %v1259 = vadd.f32 %v1257, %v1258
        %v1260 = vrot.slane %v1259, 2
        %v1261 = vadd.f32 %v1259, %v1260
        %v1262 = vrot.slane %v1261, 1
        %v1263 = vadd.f32 %v1261, %v1262
        %v1264 = vlaneseq
        %v1265 = vshrl.u32 %v1264, 7
        %v1266 = vsub.s32 5, %v1265
        %v1267 = vrot.slane %v953, %v1266
        %v1268 = vmul.f32 %v1267, %v949
        %v1269 = vmul.f32 %v1267, %v950
        %v1270 = vmul.f32 %v1268, 1.442695
        %v1271 = vpow.pop %v1270
        %v1272 = vmul.f32 %v1269, 1.442695
        %v1273 = vpow.pop %v1272
        %v1274 = vmul.f32 %v1271, %v1243
        %v1275 = vmul.f32 %v1273, %v1244
        %1276 = vset.pattern.permute.xlu0 5
        %1277 = vperm.xlu0 %1276, %v975
        %v1278 = vpop.permute.xlu0 %1277
        %1280 = vset.pattern.permute.xlu0 5
        %1281 = vperm.xlu0 %1280, %v976
        %v1282 = vpop.permute.xlu0 %1281
        %v1284 = vlaneseq
        %v1285 = vshrl.u32 %v1284, 7
        %v1286 = vsub.s32 5, %v1285
        %v1287 = vrot.slane %v955, %v1286
        %v1288 = vmul.f32 %v1278, %v1287
        %v1289 = vmul.f32 %v1282, %v1287
        %v1290 = vadd.f32 %v1274, %v1288
        %v1291 = vadd.f32 %v1275, %v1289
        %1292 = vset.pattern.permute.xlu0 5
        %1293 = vperm.xlu0 %1292, %v1009
        %v1294 = vpop.permute.xlu0 %1293
        %1296 = vset.pattern.permute.xlu0 5
        %1297 = vperm.xlu0 %1296, %v1010
        %v1298 = vpop.permute.xlu0 %1297
        %v1300 = vmul.f32 %v1294, %v1290
        %v1301 = vmul.f32 %v1298, %v1291
        %v1302 = vsel %vm652, %v1300, 0.0
        %v1303 = vsel %vm652, %v1301, 0.0
        %v1304 = vadd.f32 %v1302, %v1303
        %v1305 = vrot.slane %v1304, 4
        %v1306 = vadd.f32 %v1304, %v1305
        %v1307 = vrot.slane %v1306, 2
        %v1308 = vadd.f32 %v1306, %v1307
        %v1309 = vrot.slane %v1308, 1
        %v1310 = vadd.f32 %v1308, %v1309
        %v1311 = vlaneseq
        %v1312 = vshrl.u32 %v1311, 7
        %v1313 = vsub.s32 6, %v1312
        %v1314 = vrot.slane %v953, %v1313
        %v1315 = vmul.f32 %v1314, %v949
        %v1316 = vmul.f32 %v1314, %v950
        %v1317 = vmul.f32 %v1315, 1.442695
        %v1318 = vpow.pop %v1317
        %v1319 = vmul.f32 %v1316, 1.442695
        %v1320 = vpow.pop %v1319
        %v1321 = vmul.f32 %v1318, %v1290
        %v1322 = vmul.f32 %v1320, %v1291
        %1323 = vset.pattern.permute.xlu0 6
        %1324 = vperm.xlu0 %1323, %v975
        %v1325 = vpop.permute.xlu0 %1324
        %1327 = vset.pattern.permute.xlu0 6
        %1328 = vperm.xlu0 %1327, %v976
        %v1329 = vpop.permute.xlu0 %1328
        %v1331 = vlaneseq
        %v1332 = vshrl.u32 %v1331, 7
        %v1333 = vsub.s32 6, %v1332
        %v1334 = vrot.slane %v955, %v1333
        %v1335 = vmul.f32 %v1325, %v1334
        %v1336 = vmul.f32 %v1329, %v1334
        %v1337 = vadd.f32 %v1321, %v1335
        %v1338 = vadd.f32 %v1322, %v1336
        %1339 = vset.pattern.permute.xlu0 6
        %1340 = vperm.xlu0 %1339, %v1009
        %v1341 = vpop.permute.xlu0 %1340
        %1343 = vset.pattern.permute.xlu0 6
        %1344 = vperm.xlu0 %1343, %v1010
        %v1345 = vpop.permute.xlu0 %1344
        %v1347 = vmul.f32 %v1341, %v1337
        %v1348 = vmul.f32 %v1345, %v1338
        %v1349 = vsel %vm652, %v1347, 0.0
        %v1350 = vsel %vm652, %v1348, 0.0
        %v1351 = vadd.f32 %v1349, %v1350
        %v1352 = vrot.slane %v1351, 4
        %v1353 = vadd.f32 %v1351, %v1352
        %v1354 = vrot.slane %v1353, 2
        %v1355 = vadd.f32 %v1353, %v1354
        %v1356 = vrot.slane %v1355, 1
        %v1357 = vadd.f32 %v1355, %v1356
        %v1358 = vlaneseq
        %v1359 = vshrl.u32 %v1358, 7
        %v1360 = vsub.s32 7, %v1359
        %v1361 = vrot.slane %v953, %v1360
        %v1362 = vmul.f32 %v1361, %v949
        %v1363 = vmul.f32 %v1361, %v950
        %v1364 = vmul.f32 %v1362, 1.442695
        %v1365 = vpow.pop %v1364
        %v1366 = vmul.f32 %v1363, 1.442695
        %v1367 = vpow.pop %v1366
        %v1368 = vmul.f32 %v1365, %v1337
        %v1369 = vmul.f32 %v1367, %v1338
        %1370 = vset.pattern.permute.xlu0 7
        %1371 = vperm.xlu0 %1370, %v975
        %v1372 = vpop.permute.xlu0 %1371
        %1374 = vset.pattern.permute.xlu0 7
        %1375 = vperm.xlu0 %1374, %v976
        %v1376 = vpop.permute.xlu0 %1375
        %v1378 = vlaneseq
        %v1379 = vshrl.u32 %v1378, 7
        %v1380 = vsub.s32 7, %v1379
        %v1381 = vrot.slane %v955, %v1380
        %v1382 = vmul.f32 %v1372, %v1381
        %v1383 = vmul.f32 %v1376, %v1381
        %v1384 = vadd.f32 %v1368, %v1382
        %v1385 = vadd.f32 %v1369, %v1383
        %1386 = vset.pattern.permute.xlu0 7
        %1387 = vperm.xlu0 %1386, %v1009
        %v1388 = vpop.permute.xlu0 %1387
        %1390 = vset.pattern.permute.xlu0 7
        %1391 = vperm.xlu0 %1390, %v1010
        %v1392 = vpop.permute.xlu0 %1391
        %v1394 = vmul.f32 %v1388, %v1384
        %v1395 = vmul.f32 %v1392, %v1385
        %v1396 = vsel %vm652, %v1394, 0.0
        %v1397 = vsel %vm652, %v1395, 0.0
        %v1398 = vadd.f32 %v1396, %v1397
        %v1399 = vrot.slane %v1398, 4
        %v1400 = vadd.f32 %v1398, %v1399
        %v1401 = vrot.slane %v1400, 2
        %v1402 = vadd.f32 %v1400, %v1401
        %v1403 = vrot.slane %v1402, 1
        %v1404 = vadd.f32 %v1402, %v1403
        %v1405 = vlaneseq
        %v1406 = vshrl.u32 %v1405, 7
        %v1407 = vsub.s32 0, %v1406
        %v1408 = vrot.slane %v954, %v1407
        %v1409 = vmul.f32 %v1408, %v949
        %v1410 = vmul.f32 %v1408, %v950
        %v1411 = vmul.f32 %v1409, 1.442695
        %v1412 = vpow.pop %v1411
        %v1413 = vmul.f32 %v1410, 1.442695
        %v1414 = vpow.pop %v1413
        %v1415 = vmul.f32 %v1412, %v1384
        %v1416 = vmul.f32 %v1414, %v1385
        %1417 = vset.pattern.permute.xlu0 8
        %1418 = vperm.xlu0 %1417, %v975
        %v1419 = vpop.permute.xlu0 %1418
        %1421 = vset.pattern.permute.xlu0 8
        %1422 = vperm.xlu0 %1421, %v976
        %v1423 = vpop.permute.xlu0 %1422
        %v1425 = vlaneseq
        %v1426 = vshrl.u32 %v1425, 7
        %v1427 = vsub.s32 0, %v1426
        %v1428 = vrot.slane %v956, %v1427
        %v1429 = vmul.f32 %v1419, %v1428
        %v1430 = vmul.f32 %v1423, %v1428
        %v1431 = vadd.f32 %v1415, %v1429
        %v1432 = vadd.f32 %v1416, %v1430
        %1433 = vset.pattern.permute.xlu0 8
        %1434 = vperm.xlu0 %1433, %v1009
        %v1435 = vpop.permute.xlu0 %1434
        %1437 = vset.pattern.permute.xlu0 8
        %1438 = vperm.xlu0 %1437, %v1010
        %v1439 = vpop.permute.xlu0 %1438
        %v1441 = vmul.f32 %v1435, %v1431
        %v1442 = vmul.f32 %v1439, %v1432
        %v1443 = vsel %vm652, %v1441, 0.0
        %v1444 = vsel %vm652, %v1442, 0.0
        %v1445 = vadd.f32 %v1443, %v1444
        %v1446 = vrot.slane %v1445, 4
        %v1447 = vadd.f32 %v1445, %v1446
        %v1448 = vrot.slane %v1447, 2
        %v1449 = vadd.f32 %v1447, %v1448
        %v1450 = vrot.slane %v1449, 1
        %v1451 = vadd.f32 %v1449, %v1450
        %v1452 = vlaneseq
        %v1453 = vshrl.u32 %v1452, 7
        %v1454 = vsub.s32 1, %v1453
        %v1455 = vrot.slane %v954, %v1454
        %v1456 = vmul.f32 %v1455, %v949
        %v1457 = vmul.f32 %v1455, %v950
        %v1458 = vmul.f32 %v1456, 1.442695
        %v1459 = vpow.pop %v1458
        %v1460 = vmul.f32 %v1457, 1.442695
        %v1461 = vpow.pop %v1460
        %v1462 = vmul.f32 %v1459, %v1431
        %v1463 = vmul.f32 %v1461, %v1432
        %1464 = vset.pattern.permute.xlu0 9
        %1465 = vperm.xlu0 %1464, %v975
        %v1466 = vpop.permute.xlu0 %1465
        %1468 = vset.pattern.permute.xlu0 9
        %1469 = vperm.xlu0 %1468, %v976
        %v1470 = vpop.permute.xlu0 %1469
        %v1472 = vlaneseq
        %v1473 = vshrl.u32 %v1472, 7
        %v1474 = vsub.s32 1, %v1473
        %v1475 = vrot.slane %v956, %v1474
        %v1476 = vmul.f32 %v1466, %v1475
        %v1477 = vmul.f32 %v1470, %v1475
        %v1478 = vadd.f32 %v1462, %v1476
        %v1479 = vadd.f32 %v1463, %v1477
        %1480 = vset.pattern.permute.xlu0 9
        %1481 = vperm.xlu0 %1480, %v1009
        %v1482 = vpop.permute.xlu0 %1481
        %1484 = vset.pattern.permute.xlu0 9
        %1485 = vperm.xlu0 %1484, %v1010
        %v1486 = vpop.permute.xlu0 %1485
        %v1488 = vmul.f32 %v1482, %v1478
        %v1489 = vmul.f32 %v1486, %v1479
        %v1490 = vsel %vm652, %v1488, 0.0
        %v1491 = vsel %vm652, %v1489, 0.0
        %v1492 = vadd.f32 %v1490, %v1491
        %v1493 = vrot.slane %v1492, 4
        %v1494 = vadd.f32 %v1492, %v1493
        %v1495 = vrot.slane %v1494, 2
        %v1496 = vadd.f32 %v1494, %v1495
        %v1497 = vrot.slane %v1496, 1
        %v1498 = vadd.f32 %v1496, %v1497
        %v1499 = vlaneseq
        %v1500 = vshrl.u32 %v1499, 7
        %v1501 = vsub.s32 2, %v1500
        %v1502 = vrot.slane %v954, %v1501
        %v1503 = vmul.f32 %v1502, %v949
        %v1504 = vmul.f32 %v1502, %v950
        %v1505 = vmul.f32 %v1503, 1.442695
        %v1506 = vpow.pop %v1505
        %v1507 = vmul.f32 %v1504, 1.442695
        %v1508 = vpow.pop %v1507
        %v1509 = vmul.f32 %v1506, %v1478
        %v1510 = vmul.f32 %v1508, %v1479
        %1511 = vset.pattern.permute.xlu0 10
        %1512 = vperm.xlu0 %1511, %v975
        %v1513 = vpop.permute.xlu0 %1512
        %1515 = vset.pattern.permute.xlu0 10
        %1516 = vperm.xlu0 %1515, %v976
        %v1517 = vpop.permute.xlu0 %1516
        %v1519 = vlaneseq
        %v1520 = vshrl.u32 %v1519, 7
        %v1521 = vsub.s32 2, %v1520
        %v1522 = vrot.slane %v956, %v1521
        %v1523 = vmul.f32 %v1513, %v1522
        %v1524 = vmul.f32 %v1517, %v1522
        %v1525 = vadd.f32 %v1509, %v1523
        %v1526 = vadd.f32 %v1510, %v1524
        %1527 = vset.pattern.permute.xlu0 10
        %1528 = vperm.xlu0 %1527, %v1009
        %v1529 = vpop.permute.xlu0 %1528
        %1531 = vset.pattern.permute.xlu0 10
        %1532 = vperm.xlu0 %1531, %v1010
        %v1533 = vpop.permute.xlu0 %1532
        %v1535 = vmul.f32 %v1529, %v1525
        %v1536 = vmul.f32 %v1533, %v1526
        %v1537 = vsel %vm652, %v1535, 0.0
        %v1538 = vsel %vm652, %v1536, 0.0
        %v1539 = vadd.f32 %v1537, %v1538
        %v1540 = vrot.slane %v1539, 4
        %v1541 = vadd.f32 %v1539, %v1540
        %v1542 = vrot.slane %v1541, 2
        %v1543 = vadd.f32 %v1541, %v1542
        %v1544 = vrot.slane %v1543, 1
        %v1545 = vadd.f32 %v1543, %v1544
        %v1546 = vlaneseq
        %v1547 = vshrl.u32 %v1546, 7
        %v1548 = vsub.s32 3, %v1547
        %v1549 = vrot.slane %v954, %v1548
        %v1550 = vmul.f32 %v1549, %v949
        %v1551 = vmul.f32 %v1549, %v950
        %v1552 = vmul.f32 %v1550, 1.442695
        %v1553 = vpow.pop %v1552
        %v1554 = vmul.f32 %v1551, 1.442695
        %v1555 = vpow.pop %v1554
        %v1556 = vmul.f32 %v1553, %v1525
        %v1557 = vmul.f32 %v1555, %v1526
        %1558 = vset.pattern.permute.xlu0 11
        %1559 = vperm.xlu0 %1558, %v975
        %v1560 = vpop.permute.xlu0 %1559
        %1562 = vset.pattern.permute.xlu0 11
        %1563 = vperm.xlu0 %1562, %v976
        %v1564 = vpop.permute.xlu0 %1563
        %v1566 = vlaneseq
        %v1567 = vshrl.u32 %v1566, 7
        %v1568 = vsub.s32 3, %v1567
        %v1569 = vrot.slane %v956, %v1568
        %v1570 = vmul.f32 %v1560, %v1569
        %v1571 = vmul.f32 %v1564, %v1569
        %v1572 = vadd.f32 %v1556, %v1570
        %v1573 = vadd.f32 %v1557, %v1571
        %1574 = vset.pattern.permute.xlu0 11
        %1575 = vperm.xlu0 %1574, %v1009
        %v1576 = vpop.permute.xlu0 %1575
        %1578 = vset.pattern.permute.xlu0 11
        %1579 = vperm.xlu0 %1578, %v1010
        %v1580 = vpop.permute.xlu0 %1579
        %v1582 = vmul.f32 %v1576, %v1572
        %v1583 = vmul.f32 %v1580, %v1573
        %v1584 = vsel %vm652, %v1582, 0.0
        %v1585 = vsel %vm652, %v1583, 0.0
        %v1586 = vadd.f32 %v1584, %v1585
        %v1587 = vrot.slane %v1586, 4
        %v1588 = vadd.f32 %v1586, %v1587
        %v1589 = vrot.slane %v1588, 2
        %v1590 = vadd.f32 %v1588, %v1589
        %v1591 = vrot.slane %v1590, 1
        %v1592 = vadd.f32 %v1590, %v1591
        %v1593 = vlaneseq
        %v1594 = vshrl.u32 %v1593, 7
        %v1595 = vsub.s32 4, %v1594
        %v1596 = vrot.slane %v954, %v1595
        %v1597 = vmul.f32 %v1596, %v949
        %v1598 = vmul.f32 %v1596, %v950
        %v1599 = vmul.f32 %v1597, 1.442695
        %v1600 = vpow.pop %v1599
        %v1601 = vmul.f32 %v1598, 1.442695
        %v1602 = vpow.pop %v1601
        %v1603 = vmul.f32 %v1600, %v1572
        %v1604 = vmul.f32 %v1602, %v1573
        %1605 = vset.pattern.permute.xlu0 12
        %1606 = vperm.xlu0 %1605, %v975
        %v1607 = vpop.permute.xlu0 %1606
        %1609 = vset.pattern.permute.xlu0 12
        %1610 = vperm.xlu0 %1609, %v976
        %v1611 = vpop.permute.xlu0 %1610
        %v1613 = vlaneseq
        %v1614 = vshrl.u32 %v1613, 7
        %v1615 = vsub.s32 4, %v1614
        %v1616 = vrot.slane %v956, %v1615
        %v1617 = vmul.f32 %v1607, %v1616
        %v1618 = vmul.f32 %v1611, %v1616
        %v1619 = vadd.f32 %v1603, %v1617
        %v1620 = vadd.f32 %v1604, %v1618
        %1621 = vset.pattern.permute.xlu0 12
        %1622 = vperm.xlu0 %1621, %v1009
        %v1623 = vpop.permute.xlu0 %1622
        %1625 = vset.pattern.permute.xlu0 12
        %1626 = vperm.xlu0 %1625, %v1010
        %v1627 = vpop.permute.xlu0 %1626
        %v1629 = vmul.f32 %v1623, %v1619
        %v1630 = vmul.f32 %v1627, %v1620
        %v1631 = vsel %vm652, %v1629, 0.0
        %v1632 = vsel %vm652, %v1630, 0.0
        %v1633 = vadd.f32 %v1631, %v1632
        %v1634 = vrot.slane %v1633, 4
        %v1635 = vadd.f32 %v1633, %v1634
        %v1636 = vrot.slane %v1635, 2
        %v1637 = vadd.f32 %v1635, %v1636
        %v1638 = vrot.slane %v1637, 1
        %v1639 = vadd.f32 %v1637, %v1638
        %v1640 = vlaneseq
        %v1641 = vshrl.u32 %v1640, 7
        %v1642 = vsub.s32 5, %v1641
        %v1643 = vrot.slane %v954, %v1642
        %v1644 = vmul.f32 %v1643, %v949
        %v1645 = vmul.f32 %v1643, %v950
        %v1646 = vmul.f32 %v1644, 1.442695
        %v1647 = vpow.pop %v1646
        %v1648 = vmul.f32 %v1645, 1.442695
        %v1649 = vpow.pop %v1648
        %v1650 = vmul.f32 %v1647, %v1619
        %v1651 = vmul.f32 %v1649, %v1620
        %1652 = vset.pattern.permute.xlu0 13
        %1653 = vperm.xlu0 %1652, %v975
        %v1654 = vpop.permute.xlu0 %1653
        %1656 = vset.pattern.permute.xlu0 13
        %1657 = vperm.xlu0 %1656, %v976
        %v1658 = vpop.permute.xlu0 %1657
        %v1660 = vlaneseq
        %v1661 = vshrl.u32 %v1660, 7
        %v1662 = vsub.s32 5, %v1661
        %v1663 = vrot.slane %v956, %v1662
        %v1664 = vmul.f32 %v1654, %v1663
        %v1665 = vmul.f32 %v1658, %v1663
        %v1666 = vadd.f32 %v1650, %v1664
        %v1667 = vadd.f32 %v1651, %v1665
        %1668 = vset.pattern.permute.xlu0 13
        %1669 = vperm.xlu0 %1668, %v1009
        %v1670 = vpop.permute.xlu0 %1669
        %1672 = vset.pattern.permute.xlu0 13
        %1673 = vperm.xlu0 %1672, %v1010
        %v1674 = vpop.permute.xlu0 %1673
        %v1676 = vmul.f32 %v1670, %v1666
        %v1677 = vmul.f32 %v1674, %v1667
        %v1678 = vsel %vm652, %v1676, 0.0
        %v1679 = vsel %vm652, %v1677, 0.0
        %v1680 = vadd.f32 %v1678, %v1679
        %v1681 = vrot.slane %v1680, 4
        %v1682 = vadd.f32 %v1680, %v1681
        %v1683 = vrot.slane %v1682, 2
        %v1684 = vadd.f32 %v1682, %v1683
        %v1685 = vrot.slane %v1684, 1
        %v1686 = vadd.f32 %v1684, %v1685
        %v1687 = vlaneseq
        %v1688 = vshrl.u32 %v1687, 7
        %v1689 = vsub.s32 6, %v1688
        %v1690 = vrot.slane %v954, %v1689
        %v1691 = vmul.f32 %v1690, %v949
        %v1692 = vmul.f32 %v1690, %v950
        %v1693 = vmul.f32 %v1691, 1.442695
        %v1694 = vpow.pop %v1693
        %v1695 = vmul.f32 %v1692, 1.442695
        %v1696 = vpow.pop %v1695
        %v1697 = vmul.f32 %v1694, %v1666
        %v1698 = vmul.f32 %v1696, %v1667
        %1699 = vset.pattern.permute.xlu0 14
        %1700 = vperm.xlu0 %1699, %v975
        %v1701 = vpop.permute.xlu0 %1700
        %1703 = vset.pattern.permute.xlu0 14
        %1704 = vperm.xlu0 %1703, %v976
        %v1705 = vpop.permute.xlu0 %1704
        %v1707 = vlaneseq
        %v1708 = vshrl.u32 %v1707, 7
        %v1709 = vsub.s32 6, %v1708
        %v1710 = vrot.slane %v956, %v1709
        %v1711 = vmul.f32 %v1701, %v1710
        %v1712 = vmul.f32 %v1705, %v1710
        %v1713 = vadd.f32 %v1697, %v1711
        %v1714 = vadd.f32 %v1698, %v1712
        %1715 = vset.pattern.permute.xlu0 14
        %1716 = vperm.xlu0 %1715, %v1009
        %v1717 = vpop.permute.xlu0 %1716
        %1719 = vset.pattern.permute.xlu0 14
        %1720 = vperm.xlu0 %1719, %v1010
        %v1721 = vpop.permute.xlu0 %1720
        %v1723 = vmul.f32 %v1717, %v1713
        %v1724 = vmul.f32 %v1721, %v1714
        %v1725 = vsel %vm652, %v1723, 0.0
        %v1726 = vsel %vm652, %v1724, 0.0
        %v1727 = vadd.f32 %v1725, %v1726
        %v1728 = vrot.slane %v1727, 4
        %v1729 = vadd.f32 %v1727, %v1728
        %v1730 = vrot.slane %v1729, 2
        %v1731 = vadd.f32 %v1729, %v1730
        %v1732 = vrot.slane %v1731, 1
        %v1733 = vadd.f32 %v1731, %v1732
        %v1734 = vlaneseq
        %v1735 = vshrl.u32 %v1734, 7
        %v1736 = vsub.s32 7, %v1735
        %v1737 = vrot.slane %v954, %v1736
        %v1738 = vmul.f32 %v1737, %v949
        %v1739 = vmul.f32 %v1737, %v950
        %v1740 = vmul.f32 %v1738, 1.442695
        %v1741 = vpow.pop %v1740
        %v1742 = vmul.f32 %v1739, 1.442695
        %v1743 = vpow.pop %v1742
        %v1744 = vmul.f32 %v1741, %v1713
        %v1745 = vmul.f32 %v1743, %v1714
        %1746 = vset.pattern.permute.xlu0 15
        %1747 = vperm.xlu0 %1746, %v975
        %v1748 = vpop.permute.xlu0 %1747
        %1750 = vset.pattern.permute.xlu0 15
        %1751 = vperm.xlu0 %1750, %v976
        %v1752 = vpop.permute.xlu0 %1751
        %v1754 = vlaneseq
        %v1755 = vshrl.u32 %v1754, 7
        %v1756 = vsub.s32 7, %v1755
        %v1757 = vrot.slane %v956, %v1756
        %v1758 = vmul.f32 %v1748, %v1757
        %v1759 = vmul.f32 %v1752, %v1757
        %v1760 = vadd.f32 %v1744, %v1758
        %v1761 = vadd.f32 %v1745, %v1759
        %1762 = vset.pattern.permute.xlu0 15
        %1763 = vperm.xlu0 %1762, %v1009
        %v1764 = vpop.permute.xlu0 %1763
        %1766 = vset.pattern.permute.xlu0 15
        %1767 = vperm.xlu0 %1766, %v1010
        %v1768 = vpop.permute.xlu0 %1767
        %v1770 = vmul.f32 %v1764, %v1760
        %v1771 = vmul.f32 %v1768, %v1761
        %v1772 = vsel %vm652, %v1770, 0.0
        %v1773 = vsel %vm652, %v1771, 0.0
        %v1774 = vadd.f32 %v1772, %v1773
        %v1775 = vrot.slane %v1774, 4
        %v1776 = vadd.f32 %v1774, %v1775
        %v1777 = vrot.slane %v1776, 2
        %v1778 = vadd.f32 %v1776, %v1777
        %v1779 = vrot.slane %v1778, 1
        %v1780 = vadd.f32 %v1778, %v1779
        %vm1781 = vcmask 1040384
        %v1782 = vsel %vm1781, %v1075, %v1122
        %v1783 = vsel %vm819, %v1782, %v1169
        %vm1784 = vcmask 1042432
        %v1785 = vsel %vm1784, %v1783, %v1216
        %vm1786 = vcmask 1043456
        %v1787 = vsel %vm1786, %v1785, %v1263
        %vm1788 = vcmask 1044480
        %v1789 = vsel %vm1788, %v1787, %v1310
        %vm1790 = vcmask 1045504
        %v1791 = vsel %vm1790, %v1789, %v1357
        %vm1792 = vcmask 1046528
        %v1793 = vsel %vm1792, %v1791, %v1404
        %v1794 = vsel %vm1781, %v1451, %v1498
        %v1795 = vsel %vm819, %v1794, %v1545
        %v1796 = vsel %vm1784, %v1795, %v1592
        %v1797 = vsel %vm1786, %v1796, %v1639
        %v1798 = vsel %vm1788, %v1797, %v1686
        %v1799 = vsel %vm1790, %v1798, %v1733
        %v1800 = vsel %vm1792, %v1799, %v1780
        %s1801 = sadd.s32 0, 8
        %s1802 = scalar_lea.vmem [#allocation2], %s1801
        %1803 = vst.msk [vmem:[%s1802] sm:$0xff] %vm652, %v1793
        %1804 = vst.msk [vmem:[%s1802 + $0x8] sm:$0xff] %vm652, %v1800
        %1805 = vst.msk [vmem:[#allocation8] sm:$0xff] %vm652, %v1760
        %1806 = vst.msk [vmem:[#allocation8 + $0x8] sm:$0xff] %vm652, %v1761
        %v1807 = vld [vmem:[#allocation2 + $0x8] sm:$0xff]
        %v1808 = vld [vmem:[#allocation2 + $0x10] sm:$0xff]
        %v1809 = vld [vmem:[%s10] sm:$0x1]
        %v1811 = vlaneseq
        %v1812 = vshrl.u32 %v1811, 7
        %v1813 = vsub.s32 0, %v1812
        %v1814 = vrot.slane %v1809, %v1813
        %v1816 = vmul.f32 %v1814, %v713
        %v1817 = vmul.f32 %v1814, %v714
        %v1818 = vadd.f32 %v1807, %v1816
        %v1819 = vadd.f32 %v1808, %v1817
        %v1820 = vsub.f32 0.0, %v645
        %v1821 = vsub.f32 0.0, %v648
        %v1822 = vmul.f32 %v1820, 1.442695
        %v1823 = vpow.pop %v1822
        %v1824 = vmul.f32 %v1821, 1.442695
        %v1825 = vpow.pop %v1824
        %v1826 = vadd.f32 %v1823, 1.0
        %v1827 = vadd.f32 %v1825, 1.0
        %v1828 = vrcp.pop %v1826
        %v1829 = vrcp.pop %v1827
        %v1830 = vmul.f32 %v645, %v1828
        %v1831 = vmul.f32 %v648, %v1829
        %1834 = vrot.lane.b32.xlu0 %v1830, 64
        %v1835 = vpop.permute.xlu0 %1834
        %1836 = vrot.lane.b32.xlu0 %v1831, 64
        %v1837 = vpop.permute.xlu0 %1836
        %v1840 = vmul.f32 %v1818, %v1835
        %v1841 = vmul.f32 %v1819, %v1837
        %v1842 = vpack.c.bf16 %v1841, %v1840
        %v1843 = vld [vmem:[%s11] sm:$0xf]
        %v1844 = vld [vmem:[%s11 + $0x4] sm:$0xf]
        %v1845 = vld [vmem:[%s11 + $0x8] sm:$0xf]
        %v1846 = vld [vmem:[%s11 + $0xc] sm:$0xf]
        %v1847 = vld [vmem:[%s11 + $0x10] sm:$0xf]
        %v1848 = vld [vmem:[%s11 + $0x14] sm:$0xf]
        %v1849 = vld [vmem:[%s11 + $0x18] sm:$0xf]
        %v1850 = vld [vmem:[%s11 + $0x1c] sm:$0xf]
        %v1859 = vunpack.c.l.b16 %v1843
        %v1860 = vunpack.c.l.b16 %v1844
        %v1861 = vunpack.c.l.b16 %v1845
        %v1862 = vunpack.c.l.b16 %v1846
        %v1863 = vunpack.c.l.b16 %v1847
        %v1864 = vunpack.c.l.b16 %v1848
        %v1865 = vunpack.c.l.b16 %v1849
        %v1866 = vunpack.c.l.b16 %v1850
        %v1867 = vpack.c.b16 %v1860, %v1859
        %v1868 = vpack.c.b16 %v1862, %v1861
        %v1869 = vpack.c.b16 %v1864, %v1863
        %v1870 = vpack.c.b16 %v1866, %v1865
        %v1876 = vsel %vm652, %v1842, 0
        %1878 = vmatprep.subr.bf16.mxu0 0
        %1879 = vmatpush1.bf16.msra.mxu0 0
        %1880 = vmatprep.subr.bf16.mxu0 0
        %1881 = vmatpush1.bf16.msra.mxu0 0
        %1882 = vmatprep.subr.bf16.mxu0 0
        %1883 = vmatpush1.bf16.msra.mxu0 0
        %1884 = vmatprep.subr.bf16.mxu0 0
        %1885 = vmatpush1.bf16.msra.mxu0 0
        %1886 = vmatprep.subr.bf16.mxu0 0
        %1887 = vmatpush1.bf16.msra.mxu0 %v1870
        %1888 = vmatprep.subr.bf16.mxu0 0
        %1889 = vmatpush1.bf16.msra.mxu0 %v1869
        %1890 = vmatprep.subr.bf16.mxu0 0
        %1891 = vmatpush1.bf16.msra.mxu0 %v1868
        %1892 = vmatprep.subr.bf16.mxu0 0
        %1893 = vmatpush1.bf16.msra.mxu0 %v1867
        %1894 = vmatprep.subr.bf16.mxu0 0
        %1895 = vmatpush2.bf16.msra.mxu0 0
        %1896 = vmatprep.subr.bf16.mxu0 0
        %1897 = vmatpush2.bf16.msra.mxu0 0
        %1898 = vmatprep.subr.bf16.mxu0 0
        %1899 = vmatpush2.bf16.msra.mxu0 0
        %1900 = vmatprep.subr.bf16.mxu0 0
        %1901 = vmatpush2.bf16.msra.mxu0 0
        %1902 = vmatprep.subr.bf16.mxu0 0
        %1903 = vmatpush2.bf16.msra.mxu0 0
        %1904 = vmatprep.subr.bf16.mxu0 0
        %1905 = vmatpush2.bf16.msra.mxu0 0
        %1906 = vmatprep.subr.bf16.mxu0 0
        %1907 = vmatpush2.bf16.msra.mxu0 0
        %1908 = vmatprep.subr.bf16.mxu0 0
        %1909 = vmatpush2.bf16.msra.mxu0 0
        %1910 = vmatprep.mubr.bf16.mxu0 0
        %1911 = vmatmul.mubr.bf16.gmra.mxu0 %v1876
        %v1912 = vpop.f32.mrf.mxu0
        %v1913 = vadd.f32 %v542, %v1912
        %v1914 = vpop.f32.mrf.mxu0
        %v1915 = vpop.f32.mrf.mxu0
        %v1916 = vadd.f32 %v543, %v1915
        %v1917 = vpop.f32.mrf.mxu0
        %1918 = vdwg.mxu0
        %1919 = vst.msk [vmem:[%s521] sm:$0xff] %vm544, %v1913
        %1920 = vst.msk [vmem:[%s521 + $0x8] sm:$0xff] %vm544, %v1916
        %s1921 = sand.u32 %s311, 1
        %s1922 = scalar_lea.sflag [#allocation11], %s1921
        %s1923 = sand.u32 %s311, 1
        %s1924 = smul.addr %s1923, 16
        %s1925 = scalar_lea.vmem [#allocation21], %s1924
        // Predicated region
        $region101: #{tpu_custom_call.1} parent=67 // pred_check
          %p1926 = pneg %p321
        $region102: #{tpu_custom_call.1} parent=67 // pred_check_branch
          %1928 = sbr.rel (%p1926) target = $region104
        $region103: #{tpu_custom_call.1} parent=67 // pred_region
          %s1929 = smul.u32 2, %s35
          %s1931 = ssub.s32 256, 256
          %1932 = vsyncadd %s1922, %s1931
          %s1933 = smul.addr %s34, 2
          %s1934 = sadd.s32 %s1929, %s1933
          %s1935 = smul.addr %s1934, 128
          %s1936 = scalar_lea.hbm %s12, %s1935
          %s1937 = sshll.u32 %s1925, 4
          %s1938 = int_to_ptr.vmem [resolvable:$true] %s1937
          %1943 = dma.vmem_to_hbm [thread:$0]  %s1938, 256, %s1936, %s1922, 128, 128, 8
        $region104: #{tpu_custom_call.1} parent=67 // pred_fallthru
          _
      $region68: #{tpu_custom_call.1} parent=5 // pred_fallthru
        _
      %p1944 = scmp.le.s32.totalorder 2, %s25
      // Predicated region
      $region105: #{tpu_custom_call.1} parent=5 // pred_check
        %p1945 = pneg %p1944
      $region106: #{tpu_custom_call.1} parent=5 // pred_check_branch
        %1947 = sbr.rel (%p1945) target = $region108
      $region107: #{tpu_custom_call.1} parent=5 // pred_region
        %s1948 = ssub.s32 %s25, 2
        // Predicated region
        $region109: #{tpu_custom_call.1} parent=107 // pred_check
          %p1949 = pneg %p327
        $region110: #{tpu_custom_call.1} parent=107 // pred_check_branch
          %1951 = sbr.rel (%p1949) target = $region112
        $region111: #{tpu_custom_call.1} parent=107 // pred_region
          %s1952 = sand.u32 %s312, 1
          %s1953 = scalar_lea.sflag [#allocation11], %s1952
          %s1954 = sand.u32 %s312, 1
          %s1955 = smul.addr %s1954, 16
          %s1956 = scalar_lea.vmem [#allocation21], %s1955
          %1957 = dma.done %s1953, 256
        $region112: #{tpu_custom_call.1} parent=107 // pred_fallthru
          _
      $region108: #{tpu_custom_call.1} parent=5 // pred_fallthru
        _
    $region6: #{tpu_custom_call.1} parent=1 // loop_footer
      %s29 = sadd.s32 1, %s25
    $region7: #{tpu_custom_call.1} parent=1 // loop_footer_branch
      %24 = sbr.rel target = $region3
    $region8: #{tpu_custom_call.1} parent=1 // loop_exit
      _
    %1958 = vsyncpa [#allocation10], 1
    %s1959 = scalar_lea.sflag [#allocation10], 1
    %1960 = vsyncpa %s1959, 1
    %1961 = vsyncpa [#allocation13], 1
    %1962 = vsyncpa [#allocation16], 1
    %1963 = vsyncpa [#allocation19], 1
    %1964 = vsyncpa [#allocation11], 1
    %s1965 = scalar_lea.sflag [#allocation11], 1
    %1966 = vsyncpa %s1965, 1

// kernel: tpu_custom_call.1
$region0: #{tpu_custom_call.1}
  #allocation0 [shape = 'u32[]', space=smem, size = 0x4, offset = 0x4, fixed_abs, tag = 'smem constant byte address 0x4 - core index']
  #allocation1 [shape = 'u32[144,128]{1,0:T(1,128)}', space=vmem, size = 0x12000, scoped, tag = 'internal scratch']
  #allocation2 [shape = 'f32[24,64]{1,0:T(8,128)}', space=vmem, size = 0x3000, scoped, tag = 'scratch operand']
  #allocation3 [shape = 'f32[8,64]{1,0:T(8,128)}', space=vmem, size = 0x1000, scoped, tag = 'scratch operand']
  #allocation4 [shape = 'f32[16,64]{1,0:T(8,128)}', space=vmem, size = 0x2000, scoped, tag = 'scratch operand']
  #allocation5 [shape = 'f32[16,64]{1,0:T(8,128)}', space=vmem, size = 0x2000, scoped, tag = 'scratch operand']
  #allocation6 [shape = 'f32[16,16]{1,0:T(8,128)}', space=vmem, size = 0x2000, scoped, tag = 'scratch operand']
  #allocation7 [shape = 'f32[16,16]{1,0:T(8,128)}', space=vmem, size = 0x2000, scoped, tag = 'scratch operand']
  #allocation8 [shape = 'f32[16,64]{1,0:T(8,128)}', space=vmem, size = 0x2000, scoped, tag = 'scratch operand']
  %s0 = inlined_call_operand.vmem [shape: f32[2,16,32], index: 0, kind: input, shape index: {}]
  %s1 = inlined_call_operand.hbm [shape: f32[1,32], index: 1, kind: input, shape index: {}]
  %s2 = inlined_call_operand.hbm [shape: f32[1,32], index: 2, kind: input, shape index: {}]
  %s3 = inlined_call_operand.vmem [shape: bf16[32,128], index: 3, kind: input, shape index: {}]
  %s4 = inlined_call_operand.hbm [shape: f32[4,64], index: 4, kind: input, shape index: {}]
  %s5 = inlined_call_operand.hbm [shape: f32[1,64], index: 5, kind: input, shape index: {}]
  %s6 = inlined_call_operand.hbm [shape: f32[64,128], index: 6, kind: input, shape index: {}]
  %s7 = inlined_call_operand.hbm [shape: f32[2,64], index: 7, kind: input, shape index: {}]
  %s8 = inlined_call_operand.hbm [shape: f32[1,64], index: 8, kind: input, shape index: {}]
  %s9 = inlined_call_operand.vmem [shape: f32[16,64], index: 9, kind: input, shape index: {}]
  %s10 = inlined_call_operand.vmem [shape: f32[1,64], index: 10, kind: input, shape index: {}]
  %s11 = inlined_call_operand.vmem [shape: bf16[64,32], index: 11, kind: input, shape index: {}]
  %s12 = inlined_call_operand.hbm [shape: f32[2,16,32], index: 12, kind: output, shape index: {}]
  %s13 = sld [smem:[#allocation0]]
  $region113: #{tpu_custom_call.1} parent=0
    _
  %s15 = ssub.s32 1, %s13
  %s16 = scalar_select 0, %s15, %s13
  $region1: #{tpu_custom_call.1} parent=0
    #allocation9 [shape = 'u8[512]{0}', space=vmem, size = 0x400, scoped, tag = 'input window, operand 1, single buffered']
    #allocation10 [shape = 's32[2]{0}', space=sflag, size = 0x8, scoped, tag = 'scoped memory for tpu_custom_call.1']
    #allocation11 [shape = 's32[2]{0}', space=sflag, size = 0x8, scoped, tag = 'scoped memory for tpu_custom_call.1']
    #allocation12 [shape = 'u8[512]{0}', space=vmem, size = 0x400, scoped, tag = 'input window, operand 2, single buffered']
    #allocation13 [shape = 's32[1]{0}', space=sflag, size = 0x4, scoped, tag = 'scoped memory for tpu_custom_call.1']
    #allocation14 [shape = 'u8[2048]{0}', space=vmem, size = 0x800, scoped, tag = 'input window, operand 4, single buffered']
    #allocation15 [shape = 'u8[512]{0}', space=vmem, size = 0x400, scoped, tag = 'input window, operand 5, single buffered']
    #allocation16 [shape = 's32[1]{0}', space=sflag, size = 0x4, scoped, tag = 'scoped memory for tpu_custom_call.1']
    #allocation17 [shape = 'u8[32768]{0}', space=vmem, size = 0x8000, scoped, tag = 'input window, operand 6, single buffered']
    #allocation18 [shape = 'u8[1024]{0}', space=vmem, size = 0x400, scoped, tag = 'input window, operand 7, single buffered']
    #allocation19 [shape = 's32[1]{0}', space=sflag, size = 0x4, scoped, tag = 'scoped memory for tpu_custom_call.1']
    #allocation20 [shape = 'u8[512]{0}', space=vmem, size = 0x400, scoped, tag = 'input window, operand 8, single buffered']
    #allocation21 [shape = 'u8[16384]{0}', space=vmem, size = 0x4000, scoped, tag = 'output window, operand 0']
    %17 = vsyncpa [#allocation10], 0
    %18 = vsyncpa [#allocation13], 0
    %19 = vsyncpa [#allocation16], 0
    %20 = vsyncpa [#allocation19], 0
    %21 = vsyncpa [#allocation11], 0
    %s22 = scalar_lea.sflag [#allocation11], 1
    %23 = vsyncpa %s22, 0
    loop: start=0, step=1, limit=4
    $region2: #{tpu_custom_call.1} parent=1 // loop_pre_header
      _
    $region3: #{tpu_custom_call.1} parent=1 // loop_header
      %s25 = sphi 0, %s29
      %p26 = scmp.ge.s32.totalorder %s25, 4
      %s32 = sphi 0, %s44
      %s33 = sphi 0, %s40
      %s34 = sphi 0, %s32
      %s35 = sphi 0, %s33
      %s36 = sphi 0, %s34
      %s37 = sphi 0, %s35
      %s49 = sphi 0, %s51
      %s52 = sphi 0, %s49
      %s53 = sphi 0, %s52
      %s69 = sphi 0, %s53
      %s73 = sphi 0, %s73
      %s75 = sphi 0, %s73
      %s76 = sphi 0, %s75
      %s90 = sphi 0, %s76
      %s94 = sphi 0, %s94
      %s96 = sphi 0, %s94
      %s97 = sphi 0, %s96
      %s111 = sphi 0, %s97
      %s115 = sphi 0, %s115
      %s117 = sphi 0, %s115
      %s118 = sphi 0, %s117
      %s132 = sphi 0, %s118
      %s136 = sphi 0, %s136
      %s138 = sphi 0, %s136
      %s139 = sphi 0, %s138
      %s153 = sphi 0, %s139
      %s157 = sphi 0, %s157
      %s159 = sphi 0, %s157
      %s160 = sphi 0, %s159
      %s174 = sphi 0, %s160
      %s178 = sphi 0, %s178
      %s180 = sphi 0, %s178
      %s181 = sphi 0, %s180
      %s195 = sphi 0, %s181
      %s199 = sphi 0, %s199
      %s201 = sphi 0, %s199
      %s202 = sphi 0, %s201
      %s216 = sphi 0, %s202
      %s220 = sphi 0, %s220
      %s222 = sphi 0, %s220
      %s223 = sphi 0, %s222
      %s237 = sphi 0, %s223
      %s241 = sphi 0, %s241
      %s243 = sphi 0, %s241
      %s244 = sphi 0, %s243
      %s258 = sphi 0, %s244
      %s262 = sphi 0, %s262
      %s264 = sphi 0, %s262
      %s265 = sphi 0, %s264
      %s279 = sphi 0, %s265
      %s283 = sphi 0, %s283
      %s285 = sphi 0, %s283
      %s286 = sphi 0, %s285
      %s300 = sphi 0, %s286
      %s308 = sphi 0, %s310
      %s311 = sphi 0, %s308
      %s312 = sphi 0, %s311
      %s328 = sphi 0, %s312
    $region4: #{tpu_custom_call.1} parent=1 // loop_header_branch
      %28 = sbr.rel (%p26) target = $region8
    $region5: #{tpu_custom_call.1} parent=1 // loop_body
      %s30 = ssub.s32 %s25, 1
      %s31 = ssub.s32 %s25, 2
      %s38 = sadd.s32 1, %s33
      %p39 = scmp.ge.s32.totalorder %s38, 1
      %s40 = scalar_select %p39, 0, %s38
      %s41 = sadd.s32 1, %s32
      %s42 = scalar_select %p39, %s41, %s32
      %p43 = scmp.ge.s32.totalorder %s42, 2
      %s44 = scalar_select %p43, 0, %s42
      %s45 = ssub.s32 %s32, %s44
      %s46 = ssub.s32 %s33, %s40
      %s47 = sor.u32 %s45, %s46
      %p48 = scmp.eq.s32.totalorder %s47, 0
      %s50 = sadd.s32 %s49, 1
      %s51 = scalar_select %p48, %s49, %s50
      %p54 = pneg %p48
      %p55 = scmp.eq.s32.totalorder %s25, 1
      %p56 = por %p54, %p55
      %p57 = scmp.ne.s32.totalorder %s49, %s52
      %p58 = scmp.eq.s32.totalorder %s25, 0
      %p59 = por %p57, %p58
      %p60 = scmp.ne.s32.totalorder %s49, %s52
      %p61 = scmp.eq.s32.totalorder %s30, 1
      %p62 = por %p60, %p61
      %p63 = scmp.ne.s32.totalorder %s52, %s53
      %p64 = scmp.eq.s32.totalorder %s30, 0
      %p65 = por %p63, %p64
      %p66 = scmp.ne.s32.totalorder %s52, %s53
      %p67 = scmp.eq.s32.totalorder %s31, 1
      %p68 = por %p66, %p67
      %p70 = scmp.ne.s32.totalorder %s53, %s69
      %p71 = scmp.eq.s32.totalorder %s31, 0
      %p72 = por %p70, %p71
      %s74 = sadd.s32 %s73, 1
      %p77 = scmp.eq.s32.totalorder %s25, 1
      %p78 = scmp.ne.s32.totalorder %s73, %s75
      %p79 = scmp.eq.s32.totalorder %s25, 0
      %p80 = por %p78, %p79
      %p81 = scmp.ne.s32.totalorder %s73, %s75
      %p82 = scmp.eq.s32.totalorder %s30, 1
      %p83 = por %p81, %p82
      %p84 = scmp.ne.s32.totalorder %s75, %s76
      %p85 = scmp.eq.s32.totalorder %s30, 0
      %p86 = por %p84, %p85
      %p87 = scmp.ne.s32.totalorder %s75, %s76
      %p88 = scmp.eq.s32.totalorder %s31, 1
      %p89 = por %p87, %p88
      %p91 = scmp.ne.s32.totalorder %s76, %s90
      %p92 = scmp.eq.s32.totalorder %s31, 0
      %p93 = por %p91, %p92
      %s95 = sadd.s32 %s94, 1
      %p98 = scmp.eq.s32.totalorder %s25, 1
      %p99 = scmp.ne.s32.totalorder %s94, %s96
      %p100 = scmp.eq.s32.totalorder %s25, 0
      %p101 = por %p99, %p100
      %p102 = scmp.ne.s32.totalorder %s94, %s96
      %p103 = scmp.eq.s32.totalorder %s30, 1
      %p104 = por %p102, %p103
      %p105 = scmp.ne.s32.totalorder %s96, %s97
      %p106 = scmp.eq.s32.totalorder %s30, 0
      %p107 = por %p105, %p106
      %p108 = scmp.ne.s32.totalorder %s96, %s97
      %p109 = scmp.eq.s32.totalorder %s31, 1
      %p110 = por %p108, %p109
      %p112 = scmp.ne.s32.totalorder %s97, %s111
      %p113 = scmp.eq.s32.totalorder %s31, 0
      %p114 = por %p112, %p113
      %s116 = sadd.s32 %s115, 1
      %p119 = scmp.eq.s32.totalorder %s25, 1
      %p120 = scmp.ne.s32.totalorder %s115, %s117
      %p121 = scmp.eq.s32.totalorder %s25, 0
      %p122 = por %p120, %p121
      %p123 = scmp.ne.s32.totalorder %s115, %s117
      %p124 = scmp.eq.s32.totalorder %s30, 1
      %p125 = por %p123, %p124
      %p126 = scmp.ne.s32.totalorder %s117, %s118
      %p127 = scmp.eq.s32.totalorder %s30, 0
      %p128 = por %p126, %p127
      %p129 = scmp.ne.s32.totalorder %s117, %s118
      %p130 = scmp.eq.s32.totalorder %s31, 1
      %p131 = por %p129, %p130
      %p133 = scmp.ne.s32.totalorder %s118, %s132
      %p134 = scmp.eq.s32.totalorder %s31, 0
      %p135 = por %p133, %p134
      %s137 = sadd.s32 %s136, 1
      %p140 = scmp.eq.s32.totalorder %s25, 1
      %p141 = scmp.ne.s32.totalorder %s136, %s138
      %p142 = scmp.eq.s32.totalorder %s25, 0
      %p143 = por %p141, %p142
      %p144 = scmp.ne.s32.totalorder %s136, %s138
      %p145 = scmp.eq.s32.totalorder %s30, 1
      %p146 = por %p144, %p145
      %p147 = scmp.ne.s32.totalorder %s138, %s139
      %p148 = scmp.eq.s32.totalorder %s30, 0
      %p149 = por %p147, %p148
      %p150 = scmp.ne.s32.totalorder %s138, %s139
      %p151 = scmp.eq.s32.totalorder %s31, 1
      %p152 = por %p150, %p151
      %p154 = scmp.ne.s32.totalorder %s139, %s153
      %p155 = scmp.eq.s32.totalorder %s31, 0
      %p156 = por %p154, %p155
      %s158 = sadd.s32 %s157, 1
      %p161 = scmp.eq.s32.totalorder %s25, 1
      %p162 = scmp.ne.s32.totalorder %s157, %s159
      %p163 = scmp.eq.s32.totalorder %s25, 0
      %p164 = por %p162, %p163
      %p165 = scmp.ne.s32.totalorder %s157, %s159
      %p166 = scmp.eq.s32.totalorder %s30, 1
      %p167 = por %p165, %p166
      %p168 = scmp.ne.s32.totalorder %s159, %s160
      %p169 = scmp.eq.s32.totalorder %s30, 0
      %p170 = por %p168, %p169
      %p171 = scmp.ne.s32.totalorder %s159, %s160
      %p172 = scmp.eq.s32.totalorder %s31, 1
      %p173 = por %p171, %p172
      %p175 = scmp.ne.s32.totalorder %s160, %s174
      %p176 = scmp.eq.s32.totalorder %s31, 0
      %p177 = por %p175, %p176
      %s179 = sadd.s32 %s178, 1
      %p182 = scmp.eq.s32.totalorder %s25, 1
      %p183 = scmp.ne.s32.totalorder %s178, %s180
      %p184 = scmp.eq.s32.totalorder %s25, 0
      %p185 = por %p183, %p184
      %p186 = scmp.ne.s32.totalorder %s178, %s180
      %p187 = scmp.eq.s32.totalorder %s30, 1
      %p188 = por %p186, %p187
      %p189 = scmp.ne.s32.totalorder %s180, %s181
      %p190 = scmp.eq.s32.totalorder %s30, 0
      %p191 = por %p189, %p190
      %p192 = scmp.ne.s32.totalorder %s180, %s181
      %p193 = scmp.eq.s32.totalorder %s31, 1
      %p194 = por %p192, %p193
      %p196 = scmp.ne.s32.totalorder %s181, %s195
      %p197 = scmp.eq.s32.totalorder %s31, 0
      %p198 = por %p196, %p197
      %s200 = sadd.s32 %s199, 1
      %p203 = scmp.eq.s32.totalorder %s25, 1
      %p204 = scmp.ne.s32.totalorder %s199, %s201
      %p205 = scmp.eq.s32.totalorder %s25, 0
      %p206 = por %p204, %p205
      %p207 = scmp.ne.s32.totalorder %s199, %s201
      %p208 = scmp.eq.s32.totalorder %s30, 1
      %p209 = por %p207, %p208
      %p210 = scmp.ne.s32.totalorder %s201, %s202
      %p211 = scmp.eq.s32.totalorder %s30, 0
      %p212 = por %p210, %p211
      %p213 = scmp.ne.s32.totalorder %s201, %s202
      %p214 = scmp.eq.s32.totalorder %s31, 1
      %p215 = por %p213, %p214
      %p217 = scmp.ne.s32.totalorder %s202, %s216
      %p218 = scmp.eq.s32.totalorder %s31, 0
      %p219 = por %p217, %p218
      %s221 = sadd.s32 %s220, 1
      %p224 = scmp.eq.s32.totalorder %s25, 1
      %p225 = scmp.ne.s32.totalorder %s220, %s222
      %p226 = scmp.eq.s32.totalorder %s25, 0
      %p227 = por %p225, %p226
      %p228 = scmp.ne.s32.totalorder %s220, %s222
      %p229 = scmp.eq.s32.totalorder %s30, 1
      %p230 = por %p228, %p229
      %p231 = scmp.ne.s32.totalorder %s222, %s223
      %p232 = scmp.eq.s32.totalorder %s30, 0
      %p233 = por %p231, %p232
      %p234 = scmp.ne.s32.totalorder %s222, %s223
      %p235 = scmp.eq.s32.totalorder %s31, 1
      %p236 = por %p234, %p235
      %p238 = scmp.ne.s32.totalorder %s223, %s237
      %p239 = scmp.eq.s32.totalorder %s31, 0
      %p240 = por %p238, %p239
      %s242 = sadd.s32 %s241, 1
      %p245 = scmp.eq.s32.totalorder %s25, 1
      %p246 = scmp.ne.s32.totalorder %s241, %s243
      %p247 = scmp.eq.s32.totalorder %s25, 0
      %p248 = por %p246, %p247
      %p249 = scmp.ne.s32.totalorder %s241, %s243
      %p250 = scmp.eq.s32.totalorder %s30, 1
      %p251 = por %p249, %p250
      %p252 = scmp.ne.s32.totalorder %s243, %s244
      %p253 = scmp.eq.s32.totalorder %s30, 0
      %p254 = por %p252, %p253
      %p255 = scmp.ne.s32.totalorder %s243, %s244
      %p256 = scmp.eq.s32.totalorder %s31, 1
      %p257 = por %p255, %p256
      %p259 = scmp.ne.s32.totalorder %s244, %s258
      %p260 = scmp.eq.s32.totalorder %s31, 0
      %p261 = por %p259, %p260
      %s263 = sadd.s32 %s262, 1
      %p266 = scmp.eq.s32.totalorder %s25, 1
      %p267 = scmp.ne.s32.totalorder %s262, %s264
      %p268 = scmp.eq.s32.totalorder %s25, 0
      %p269 = por %p267, %p268
      %p270 = scmp.ne.s32.totalorder %s262, %s264
      %p271 = scmp.eq.s32.totalorder %s30, 1
      %p272 = por %p270, %p271
      %p273 = scmp.ne.s32.totalorder %s264, %s265
      %p274 = scmp.eq.s32.totalorder %s30, 0
      %p275 = por %p273, %p274
      %p276 = scmp.ne.s32.totalorder %s264, %s265
      %p277 = scmp.eq.s32.totalorder %s31, 1
      %p278 = por %p276, %p277
      %p280 = scmp.ne.s32.totalorder %s265, %s279
      %p281 = scmp.eq.s32.totalorder %s31, 0
      %p282 = por %p280, %p281
      %s284 = sadd.s32 %s283, 1
      %p287 = scmp.eq.s32.totalorder %s25, 1
      %p288 = scmp.ne.s32.totalorder %s283, %s285
      %p289 = scmp.eq.s32.totalorder %s25, 0
      %p290 = por %p288, %p289
      %p291 = scmp.ne.s32.totalorder %s283, %s285
      %p292 = scmp.eq.s32.totalorder %s30, 1
      %p293 = por %p291, %p292
      %p294 = scmp.ne.s32.totalorder %s285, %s286
      %p295 = scmp.eq.s32.totalorder %s30, 0
      %p296 = por %p294, %p295
      %p297 = scmp.ne.s32.totalorder %s285, %s286
      %p298 = scmp.eq.s32.totalorder %s31, 1
      %p299 = por %p297, %p298
      %p301 = scmp.ne.s32.totalorder %s286, %s300
      %p302 = scmp.eq.s32.totalorder %s31, 0
      %p303 = por %p301, %p302
      %s304 = ssub.s32 %s32, %s44
      %s305 = ssub.s32 %s33, %s40
      %s306 = sor.u32 %s304, %s305
      %p307 = scmp.eq.s32.totalorder %s306, 0
      %s309 = sadd.s32 %s308, 1
      %s310 = scalar_select %p307, %s308, %s309
      %p313 = pneg %p307
      %p314 = scmp.eq.s32.totalorder %s25, 1
      %p315 = por %p313, %p314
      %p316 = scmp.ne.s32.totalorder %s308, %s311
      %p317 = scmp.eq.s32.totalorder %s25, 0
      %p318 = por %p316, %p317
      %p319 = scmp.ne.s32.totalorder %s308, %s311
      %p320 = scmp.eq.s32.totalorder %s30, 1
      %p321 = por %p319, %p320
      %p322 = scmp.ne.s32.totalorder %s311, %s312
      %p323 = scmp.eq.s32.totalorder %s30, 0
      %p324 = por %p322, %p323
      %p325 = scmp.ne.s32.totalorder %s311, %s312
      %p326 = scmp.eq.s32.totalorder %s31, 1
      %p327 = por %p325, %p326
      %p329 = scmp.ne.s32.totalorder %s312, %s328
      %p330 = scmp.eq.s32.totalorder %s31, 0
      %p331 = por %p329, %p330
      %p332 = scmp.le.s32.totalorder 1, %s25
      %p333 = scmp.lt.s32.totalorder %s25, 3
      %p334 = pnand %p332, %p333
      %p335 = pneg %p334
      // Predicated region
      $region9: #{tpu_custom_call.1} parent=5 // pred_check
        _
      $region10: #{tpu_custom_call.1} parent=5 // pred_check_branch
        %337 = sbr.rel (%p334) target = $region12
      $region11: #{tpu_custom_call.1} parent=5 // pred_region
        %s338 = ssub.s32 %s25, 1
        // Predicated region
        $region13: #{tpu_custom_call.1} parent=11 // pred_check
          %p339 = pneg %p86
        $region14: #{tpu_custom_call.1} parent=11 // pred_check_branch
          %341 = sbr.rel (%p339) target = $region16
        $region15: #{tpu_custom_call.1} parent=11 // pred_region
          %s343 = ssub.s32 16, 16
          %344 = vsyncadd [#allocation10], %s343
          %s346 = sshll.u32 [#allocation9], 4
          %s347 = int_to_ptr.vmem [resolvable:$true] %s346
          %349 = dma.hbm_to_vmem [thread:$0]  %s1, 16, %s347, [#allocation10]
        $region16: #{tpu_custom_call.1} parent=11 // pred_fallthru
          _
        // Predicated region
        $region17: #{tpu_custom_call.1} parent=11 // pred_check
          %p350 = pneg %p107
        $region18: #{tpu_custom_call.1} parent=11 // pred_check_branch
          %352 = sbr.rel (%p350) target = $region20
        $region19: #{tpu_custom_call.1} parent=11 // pred_region
          %s354 = ssub.s32 16, 16
          %355 = vsyncadd [#allocation13], %s354
          %s357 = sshll.u32 [#allocation12], 4
          %s358 = int_to_ptr.vmem [resolvable:$true] %s357
          %360 = dma.hbm_to_vmem [thread:$0]  %s2, 16, %s358, [#allocation13]
        $region20: #{tpu_custom_call.1} parent=11 // pred_fallthru
          _
        // Predicated region
        $region21: #{tpu_custom_call.1} parent=11 // pred_check
          %p361 = pneg %p128
        $region22: #{tpu_custom_call.1} parent=11 // pred_check_branch
          %363 = sbr.rel (%p361) target = $region24
        $region23: #{tpu_custom_call.1} parent=11 // pred_region
          _
        $region24: #{tpu_custom_call.1} parent=11 // pred_fallthru
          _
        // Predicated region
        $region25: #{tpu_custom_call.1} parent=11 // pred_check
          %p364 = pneg %p149
        $region26: #{tpu_custom_call.1} parent=11 // pred_check_branch
          %366 = sbr.rel (%p364) target = $region28
        $region27: #{tpu_custom_call.1} parent=11 // pred_region
          %s368 = ssub.s32 64, 64
          %369 = vsyncadd [#allocation13], %s368
          %s371 = sshll.u32 [#allocation14], 4
          %s372 = int_to_ptr.vmem [resolvable:$true] %s371
          %374 = dma.hbm_to_vmem [thread:$0]  %s4, 64, %s372, [#allocation13]
        $region28: #{tpu_custom_call.1} parent=11 // pred_fallthru
          _
        // Predicated region
        $region29: #{tpu_custom_call.1} parent=11 // pred_check
          %p375 = pneg %p170
        $region30: #{tpu_custom_call.1} parent=11 // pred_check_branch
          %377 = sbr.rel (%p375) target = $region32
        $region31: #{tpu_custom_call.1} parent=11 // pred_region
          %s379 = ssub.s32 16, 16
          %380 = vsyncadd [#allocation16], %s379
          %s382 = sshll.u32 [#allocation15], 4
          %s383 = int_to_ptr.vmem [resolvable:$true] %s382
          %385 = dma.hbm_to_vmem [thread:$0]  %s5, 16, %s383, [#allocation16]
        $region32: #{tpu_custom_call.1} parent=11 // pred_fallthru
          _
        // Predicated region
        $region33: #{tpu_custom_call.1} parent=11 // pred_check
          %p386 = pneg %p191
        $region34: #{tpu_custom_call.1} parent=11 // pred_check_branch
          %388 = sbr.rel (%p386) target = $region36
        $region35: #{tpu_custom_call.1} parent=11 // pred_region
          %s390 = ssub.s32 1024, 1024
          %391 = vsyncadd [#allocation16], %s390
          %s392 = sshll.u32 [#allocation17], 4
          %s393 = int_to_ptr.vmem [resolvable:$true] %s392
          %398 = dma.hbm_to_vmem [thread:$0]  %s6, 1024, %s393, [#allocation16], 128, 128, 8
        $region36: #{tpu_custom_call.1} parent=11 // pred_fallthru
          _
        // Predicated region
        $region37: #{tpu_custom_call.1} parent=11 // pred_check
          %p399 = pneg %p212
        $region38: #{tpu_custom_call.1} parent=11 // pred_check_branch
          %401 = sbr.rel (%p399) target = $region40
        $region39: #{tpu_custom_call.1} parent=11 // pred_region
          %s403 = ssub.s32 32, 32
          %404 = vsyncadd [#allocation19], %s403
          %s406 = sshll.u32 [#allocation18], 4
          %s407 = int_to_ptr.vmem [resolvable:$true] %s406
          %409 = dma.hbm_to_vmem [thread:$0]  %s7, 32, %s407, [#allocation19]
        $region40: #{tpu_custom_call.1} parent=11 // pred_fallthru
          _
        // Predicated region
        $region41: #{tpu_custom_call.1} parent=11 // pred_check
          %p410 = pneg %p233
        $region42: #{tpu_custom_call.1} parent=11 // pred_check_branch
          %412 = sbr.rel (%p410) target = $region44
        $region43: #{tpu_custom_call.1} parent=11 // pred_region
          %s414 = ssub.s32 16, 16
          %415 = vsyncadd [#allocation19], %s414
          %s417 = sshll.u32 [#allocation20], 4
          %s418 = int_to_ptr.vmem [resolvable:$true] %s417
          %420 = dma.hbm_to_vmem [thread:$0]  %s8, 16, %s418, [#allocation19]
        $region44: #{tpu_custom_call.1} parent=11 // pred_fallthru
          _
        // Predicated region
        $region45: #{tpu_custom_call.1} parent=11 // pred_check
          %p421 = pneg %p254
        $region46: #{tpu_custom_call.1} parent=11 // pred_check_branch
          %423 = sbr.rel (%p421) target = $region48
        $region47: #{tpu_custom_call.1} parent=11 // pred_region
          _
        $region48: #{tpu_custom_call.1} parent=11 // pred_fallthru
          _
        // Predicated region
        $region49: #{tpu_custom_call.1} parent=11 // pred_check
          %p424 = pneg %p275
        $region50: #{tpu_custom_call.1} parent=11 // pred_check_branch
          %426 = sbr.rel (%p424) target = $region52
        $region51: #{tpu_custom_call.1} parent=11 // pred_region
          _
        $region52: #{tpu_custom_call.1} parent=11 // pred_fallthru
          _
        // Predicated region
        $region53: #{tpu_custom_call.1} parent=11 // pred_check
          %p427 = pneg %p296
        $region54: #{tpu_custom_call.1} parent=11 // pred_check_branch
          %429 = sbr.rel (%p427) target = $region56
        $region55: #{tpu_custom_call.1} parent=11 // pred_region
          _
        $region56: #{tpu_custom_call.1} parent=11 // pred_fallthru
          _
      $region12: #{tpu_custom_call.1} parent=5 // pred_fallthru
        _
      %p430 = scmp.lt.s32.totalorder %s25, 2
      // Predicated region
      $region57: #{tpu_custom_call.1} parent=5 // pred_check
        %p431 = pneg %p430
      $region58: #{tpu_custom_call.1} parent=5 // pred_check_branch
        %433 = sbr.rel (%p431) target = $region60
      $region59: #{tpu_custom_call.1} parent=5 // pred_region
        // Predicated region
        $region61: #{tpu_custom_call.1} parent=59 // pred_check
          %p434 = pneg %p59
        $region62: #{tpu_custom_call.1} parent=59 // pred_check_branch
          %436 = sbr.rel (%p434) target = $region64
        $region63: #{tpu_custom_call.1} parent=59 // pred_region
          %s437 = smul.u32 2, %s33
          %p438 = scmp.lt.s32.totalorder %s32, 1
          %s439 = scalar_select %p438, %s32, 1
          %p440 = scmp.lt.s32.totalorder %s437, 1
          %s441 = scalar_select %p440, %s437, 1
          %s442 = smul.addr %s439, 2
          %s443 = sadd.s32 %s441, %s442
          %s444 = smul.addr %s443, 8
          %s445 = scalar_lea.vmem %s0, %s444
          %s446 = smul.u32 2, %s33
        $region64: #{tpu_custom_call.1} parent=59 // pred_fallthru
          _
      $region60: #{tpu_custom_call.1} parent=5 // pred_fallthru
        _
      %p447 = scmp.le.s32.totalorder 1, %s25
      %p448 = scmp.lt.s32.totalorder %s25, 3
      %p449 = pnand %p447, %p448
      %p450 = pneg %p449
      // Predicated region
      $region65: #{tpu_custom_call.1} parent=5 // pred_check
        _
      $region66: #{tpu_custom_call.1} parent=5 // pred_check_branch
        %452 = sbr.rel (%p449) target = $region68
      $region67: #{tpu_custom_call.1} parent=5 // pred_region
        %s453 = ssub.s32 %s25, 1
        // Predicated region
        $region69: #{tpu_custom_call.1} parent=67 // pred_check
          %p454 = pneg %p86
        $region70: #{tpu_custom_call.1} parent=67 // pred_check_branch
          %456 = sbr.rel (%p454) target = $region72
        $region71: #{tpu_custom_call.1} parent=67 // pred_region
          %457 = dma.done [#allocation10], 16
        $region72: #{tpu_custom_call.1} parent=67 // pred_fallthru
          _
        // Predicated region
        $region73: #{tpu_custom_call.1} parent=67 // pred_check
          %p458 = pneg %p107
        $region74: #{tpu_custom_call.1} parent=67 // pred_check_branch
          %460 = sbr.rel (%p458) target = $region76
        $region75: #{tpu_custom_call.1} parent=67 // pred_region
          %461 = dma.done [#allocation13], 16
        $region76: #{tpu_custom_call.1} parent=67 // pred_fallthru
          _
        // Predicated region
        $region77: #{tpu_custom_call.1} parent=67 // pred_check
          %p462 = pneg %p149
        $region78: #{tpu_custom_call.1} parent=67 // pred_check_branch
          %464 = sbr.rel (%p462) target = $region80
        $region79: #{tpu_custom_call.1} parent=67 // pred_region
          %465 = dma.done [#allocation13], 64
        $region80: #{tpu_custom_call.1} parent=67 // pred_fallthru
          _
        // Predicated region
        $region81: #{tpu_custom_call.1} parent=67 // pred_check
          %p466 = pneg %p170
        $region82: #{tpu_custom_call.1} parent=67 // pred_check_branch
          %468 = sbr.rel (%p466) target = $region84
        $region83: #{tpu_custom_call.1} parent=67 // pred_region
          %469 = dma.done [#allocation16], 16
        $region84: #{tpu_custom_call.1} parent=67 // pred_fallthru
          _
        // Predicated region
        $region85: #{tpu_custom_call.1} parent=67 // pred_check
          %p470 = pneg %p191
        $region86: #{tpu_custom_call.1} parent=67 // pred_check_branch
          %472 = sbr.rel (%p470) target = $region88
        $region87: #{tpu_custom_call.1} parent=67 // pred_region
          %473 = dma.done [#allocation16], 1024
        $region88: #{tpu_custom_call.1} parent=67 // pred_fallthru
          _
        // Predicated region
        $region89: #{tpu_custom_call.1} parent=67 // pred_check
          %p474 = pneg %p212
        $region90: #{tpu_custom_call.1} parent=67 // pred_check_branch
          %476 = sbr.rel (%p474) target = $region92
        $region91: #{tpu_custom_call.1} parent=67 // pred_region
          %477 = dma.done [#allocation19], 32
        $region92: #{tpu_custom_call.1} parent=67 // pred_fallthru
          _
        // Predicated region
        $region93: #{tpu_custom_call.1} parent=67 // pred_check
          %p478 = pneg %p233
        $region94: #{tpu_custom_call.1} parent=67 // pred_check_branch
          %480 = sbr.rel (%p478) target = $region96
        $region95: #{tpu_custom_call.1} parent=67 // pred_region
          %481 = dma.done [#allocation19], 16
        $region96: #{tpu_custom_call.1} parent=67 // pred_fallthru
          _
        %s482 = smul.u32 2, %s35
        %p483 = scmp.lt.s32.totalorder %s34, 1
        %s484 = scalar_select %p483, %s34, 1
        %p485 = scmp.lt.s32.totalorder %s482, 1
        %s486 = scalar_select %p485, %s482, 1
        %s487 = smul.addr %s484, 2
        %s488 = sadd.s32 %s486, %s487
        %s489 = smul.addr %s488, 8
        %s490 = scalar_lea.vmem %s0, %s489
        %p491 = pneg %p65
        %p492 = pneg %p62
        %p493 = pneg %p86
        %p494 = pneg %p83
        %p495 = pneg %p107
        %p496 = pneg %p104
        %p497 = pneg %p128
        %p498 = pneg %p125
        %p499 = pneg %p149
        %p500 = pneg %p146
        %p501 = pneg %p170
        %p502 = pneg %p167
        %p503 = pneg %p191
        %p504 = pneg %p188
        %p505 = pneg %p212
        %p506 = pneg %p209
        %p507 = pneg %p233
        %p508 = pneg %p230
        %p509 = pneg %p254
        %p510 = pneg %p251
        %p511 = pneg %p275
        %p512 = pneg %p272
        %p513 = pneg %p296
        %p514 = pneg %p293
        %p515 = pneg %p324
        %p516 = pneg %p321
        %s517 = sand.u32 %s311, 1
        %s518 = scalar_lea.sflag [#allocation11], %s517
        %s519 = sand.u32 %s311, 1
        %s520 = smul.addr %s519, 16
        %s521 = scalar_lea.vmem [#allocation21], %s520
        %s522 = smul.u32 2, %s35
        %p523 = scmp.lt.s32.totalorder %s34, 1
        %s524 = scalar_select %p523, %s34, 1
        %p525 = scmp.lt.s32.totalorder %s522, 1
        %s526 = scalar_select %p525, %s522, 1
        %s527 = smul.addr %s524, 2
        %s528 = sadd.s32 %s526, %s527
        %s529 = smul.addr %s528, 8
        %s530 = scalar_lea.vmem %s0, %s529
        %s531 = smul.u32 2, %s35
        %s532 = smul.u32 2, %s35
        %p534 = scmp.eq.s32.totalorder %s35, 0
        // Predicated region
        $region97: #{tpu_custom_call.1} parent=67 // pred_check
          %p535 = pneg %p534
        $region98: #{tpu_custom_call.1} parent=67 // pred_check_branch
          %537 = sbr.rel (%p535) target = $region100
        $region99: #{tpu_custom_call.1} parent=67 // pred_region
          %vm538 = vcmask 523264
          %539 = vst.msk [vmem:[#allocation8] sm:$0xff] %vm538, 0.0
          %540 = vst.msk [vmem:[#allocation8 + $0x8] sm:$0xff] %vm538, 0.0
          %541 = vst.msk [vmem:[#allocation3] sm:$0xff] %vm538, 0.0
        $region100: #{tpu_custom_call.1} parent=67 // pred_fallthru
          _
        %v542 = vld [vmem:[%s530] sm:$0xff]
        %v543 = vld [vmem:[%s530 + $0x8] sm:$0xff]
        %vm544 = vcmask 261120
        %v545 = vsel %vm544, %v542, 0.0
        %546 = vadd.xlane.f32.xlu0 %v545
        %v547 = vpop.xlane.xlu0 %546
        %v548 = vsel %vm544, %v543, 0.0
        %549 = vadd.xlane.f32.xlu0 %v548
        %v550 = vpop.xlane.xlu0 %549
        %v551 = vrcp.pop 32.0
        %v552 = vmul.f32 %v547, %v551
        %v553 = vmul.f32 %v550, %v551
        %v554 = vsub.f32 %v542, %v552
        %v555 = vsub.f32 %v543, %v553
        %v556 = vmul.f32 %v554, %v554
        %v557 = vmul.f32 %v555, %v555
        %v558 = vsel %vm544, %v556, 0.0
        %559 = vadd.xlane.f32.xlu0 %v558
        %v560 = vpop.xlane.xlu0 %559
        %v561 = vsel %vm544, %v557, 0.0
        %562 = vadd.xlane.f32.xlu0 %v561
        %v563 = vpop.xlane.xlu0 %562
        %v564 = vmul.f32 %v560, %v551
        %v565 = vmul.f32 %v563, %v551
        %v566 = vadd.f32 %v564, 1e-05
        %v567 = vadd.f32 %v565, 1e-05
        %v568 = vrsqrt.pop %v566
        %v569 = vrsqrt.pop %v567
        %v570 = vmul.f32 %v554, %v568
        %v571 = vmul.f32 %v555, %v569
        %v572 = vld [vmem:[#allocation9] sm:$0x1]
        %v574 = vlaneseq
        %v575 = vshrl.u32 %v574, 7
        %v576 = vsub.s32 0, %v575
        %v577 = vrot.slane %v572, %v576
        %v579 = vmul.f32 %v570, %v577
        %v580 = vmul.f32 %v571, %v577
        %v581 = vld [vmem:[#allocation12] sm:$0x1]
        %v583 = vlaneseq
        %v584 = vshrl.u32 %v583, 7
        %v585 = vsub.s32 0, %v584
        %v586 = vrot.slane %v581, %v585
        %v588 = vadd.f32 %v579, %v586
        %v589 = vadd.f32 %v580, %v586
        %v590 = vpack.c.bf16 %v589, %v588
        %v591 = vld [vmem:[%s3] sm:$0xf]
        %v592 = vld [vmem:[%s3 + $0x4] sm:$0xf]
        %v593 = vld [vmem:[%s3 + $0x8] sm:$0xf]
        %v594 = vld [vmem:[%s3 + $0xc] sm:$0xf]
        %v599 = vunpack.c.l.b16 %v591
        %v600 = vunpack.c.l.b16 %v592
        %v601 = vunpack.c.l.b16 %v593
        %v602 = vunpack.c.l.b16 %v594
        %v603 = vpack.c.b16 %v600, %v599
        %v604 = vpack.c.b16 %v602, %v601
        %v608 = vsel %vm544, %v590, 0
        %610 = vmatprep.subr.bf16.mxu0 0
        %611 = vmatpush1.bf16.msra.mxu0 0
        %612 = vmatprep.subr.bf16.mxu0 0
        %613 = vmatpush1.bf16.msra.mxu0 0
        %614 = vmatprep.subr.bf16.mxu0 0
        %615 = vmatpush1.bf16.msra.mxu0 0
        %616 = vmatprep.subr.bf16.mxu0 0
        %617 = vmatpush1.bf16.msra.mxu0 0
        %618 = vmatprep.subr.bf16.mxu0 0
        %619 = vmatpush1.bf16.msra.mxu0 0
        %620 = vmatprep.subr.bf16.mxu0 0
        %621 = vmatpush1.bf16.msra.mxu0 0
        %622 = vmatprep.subr.bf16.mxu0 0
        %623 = vmatpush1.bf16.msra.mxu0 %v604
        %624 = vmatprep.subr.bf16.mxu0 0
        %625 = vmatpush1.bf16.msra.mxu0 %v603
        %626 = vmatprep.subr.bf16.mxu0 0
        %627 = vmatpush2.bf16.msra.mxu0 0
        %628 = vmatprep.subr.bf16.mxu0 0
        %629 = vmatpush2.bf16.msra.mxu0 0
        %630 = vmatprep.subr.bf16.mxu0 0
        %631 = vmatpush2.bf16.msra.mxu0 0
        %632 = vmatprep.subr.bf16.mxu0 0
        %633 = vmatpush2.bf16.msra.mxu0 0
        %634 = vmatprep.subr.bf16.mxu0 0
        %635 = vmatpush2.bf16.msra.mxu0 0
        %636 = vmatprep.subr.bf16.mxu0 0
        %637 = vmatpush2.bf16.msra.mxu0 0
        %638 = vmatprep.subr.bf16.mxu0 0
        %639 = vmatpush2.bf16.msra.mxu0 0
        %640 = vmatprep.subr.bf16.mxu0 0
        %641 = vmatpush2.bf16.msra.mxu0 0
        %642 = vmatprep.mubr.bf16.mxu0 0
        %643 = vmatmul.mubr.bf16.gmra.mxu0 %v608
        %v644 = vpop.f32.mrf.mxu0
        %v645 = vadd.f32 0.0, %v644
        %v646 = vpop.f32.mrf.mxu0
        %v647 = vpop.f32.mrf.mxu0
        %v648 = vadd.f32 0.0, %v647
        %v649 = vpop.f32.mrf.mxu0
        %650 = vdwg.mxu0
        %v651 = vld [vmem:[#allocation3] sm:$0xff]
        %vm652 = vcmask 523264
        %653 = vst.msk [vmem:[#allocation2] sm:$0xff] %vm652, %v651
        %654 = vst.msk [vmem:[#allocation2 + $0x8] sm:$0xff] %vm652, %v645
        %655 = vst.msk [vmem:[#allocation2 + $0x10] sm:$0xff] %vm652, %v648
        %656 = vst.msk [vmem:[#allocation3] sm:$0xff] %vm652, %v648
        %v657 = vld [vmem:[#allocation14] sm:$0xf]
        %v658 = vld [vmem:[#allocation15] sm:$0x1]
        %v659 = vlaneseq
        %v660 = vshrl.u32 %v659, 7
        %v661 = vsub.s32 3, %v660
        %v662 = vrot.slane %v657, %v661
        %v663 = vmul.f32 %v662, %v645
        %v664 = vmul.f32 %v662, %v648
        %v666 = vlaneseq
        %v667 = vshrl.u32 %v666, 7
        %v668 = vsub.s32 0, %v667
        %v669 = vrot.slane %v658, %v668
        %v671 = vadd.f32 %v669, %v663
        %v672 = vadd.f32 %v669, %v664
        %v673 = vld [vmem:[#allocation2 + $0x5] sm:$0xff]
        %v674 = vld [vmem:[#allocation2 + $0xd] sm:$0xff]
        %v675 = vlaneseq
        %v676 = vshrl.u32 %v675, 7
        %v677 = vsub.s32 0, %v676
        %v678 = vrot.slane %v657, %v677
        %v679 = vmul.f32 %v678, %v673
        %v680 = vmul.f32 %v678, %v674
        %v681 = vadd.f32 %v671, %v679
        %v682 = vadd.f32 %v672, %v680
        %v683 = vld [vmem:[#allocation2 + $0x6] sm:$0xff]
        %v684 = vld [vmem:[#allocation2 + $0xe] sm:$0xff]
        %v685 = vlaneseq
        %v686 = vshrl.u32 %v685, 7
        %v687 = vsub.s32 1, %v686
        %v688 = vrot.slane %v657, %v687
        %v689 = vmul.f32 %v688, %v683
        %v690 = vmul.f32 %v688, %v684
        %v691 = vadd.f32 %v681, %v689
        %v692 = vadd.f32 %v682, %v690
        %v693 = vld [vmem:[#allocation2 + $0x7] sm:$0xff]
        %v694 = vld [vmem:[#allocation2 + $0xf] sm:$0xff]
        %v695 = vlaneseq
        %v696 = vshrl.u32 %v695, 7
        %v697 = vsub.s32 2, %v696
        %v698 = vrot.slane %v657, %v697
        %v699 = vmul.f32 %v698, %v693
        %v700 = vmul.f32 %v698, %v694
        %v701 = vadd.f32 %v691, %v699
        %v702 = vadd.f32 %v692, %v700
        %v703 = vsub.f32 0.0, %v701
        %v704 = vsub.f32 0.0, %v702
        %v705 = vmul.f32 %v703, 1.442695
        %v706 = vpow.pop %v705
        %v707 = vmul.f32 %v704, 1.442695
        %v708 = vpow.pop %v707
        %v709 = vadd.f32 %v706, 1.0
        %v710 = vadd.f32 %v708, 1.0
        %v711 = vrcp.pop %v709
        %v712 = vrcp.pop %v710
        %v713 = vmul.f32 %v701, %v711
        %v714 = vmul.f32 %v702, %v712
        %v715 = vld [vmem:[#allocation17] sm:$0xff]
        %v716 = vld [vmem:[#allocation17 + $0x8] sm:$0xff]
        %v717 = vld [vmem:[#allocation17 + $0x10] sm:$0xff]
        %v718 = vld [vmem:[#allocation17 + $0x18] sm:$0xff]
        %v719 = vld [vmem:[#allocation17 + $0x20] sm:$0xff]
        %v720 = vld [vmem:[#allocation17 + $0x28] sm:$0xff]
        %v721 = vld [vmem:[#allocation17 + $0x30] sm:$0xff]
        %v722 = vld [vmem:[#allocation17 + $0x38] sm:$0xff]
        %v724 = vsel %vm652, %v713, 0
        %v727 = vsel %vm652, %v714, 0
        %729 = vmatprep.subr.mxu0 0.0
        %730 = vmatpush1.msra.mxu0 0.0
        %731 = vmatprep.subr.mxu0 0.0
        %732 = vmatpush1.msra.mxu0 0.0
        %733 = vmatprep.subr.mxu0 0.0
        %734 = vmatpush1.msra.mxu0 0.0
        %735 = vmatprep.subr.mxu0 0.0
        %736 = vmatpush1.msra.mxu0 0.0
        %737 = vmatprep.subr.mxu0 0.0
        %738 = vmatpush1.msra.mxu0 0.0
        %739 = vmatprep.subr.mxu0 0.0
        %740 = vmatpush1.msra.mxu0 0.0
        %741 = vmatprep.subr.mxu0 0.0
        %742 = vmatpush1.msra.mxu0 0.0
        %743 = vmatprep.subr.mxu0 0.0
        %744 = vmatpush1.msra.mxu0 0.0
        %745 = vmatprep.subr.mxu0 0.0
        %746 = vmatpush1.msra.mxu0 %v722
        %747 = vmatprep.subr.mxu0 0.0
        %748 = vmatpush1.msra.mxu0 %v721
        %749 = vmatprep.subr.mxu0 0.0
        %750 = vmatpush1.msra.mxu0 %v720
        %751 = vmatprep.subr.mxu0 0.0
        %752 = vmatpush1.msra.mxu0 %v719
        %753 = vmatprep.subr.mxu0 0.0
        %754 = vmatpush1.msra.mxu0 %v718
        %755 = vmatprep.subr.mxu0 0.0
        %756 = vmatpush1.msra.mxu0 %v717
        %757 = vmatprep.subr.mxu0 0.0
        %758 = vmatpush1.msra.mxu0 %v716
        %759 = vmatprep.subr.mxu0 0.0
        %760 = vmatpush1.msra.mxu0 %v715
        %761 = vmatprep.subr.mxu0 0.0
        %762 = vmatpush2.msra.mxu0 0.0
        %763 = vmatprep.subr.mxu0 0.0
        %764 = vmatpush2.msra.mxu0 0.0
        %765 = vmatprep.subr.mxu0 0.0
        %766 = vmatpush2.msra.mxu0 0.0
        %767 = vmatprep.subr.mxu0 0.0
        %768 = vmatpush2.msra.mxu0 0.0
        %769 = vmatprep.subr.mxu0 0.0
        %770 = vmatpush2.msra.mxu0 0.0
        %771 = vmatprep.subr.mxu0 0.0
        %772 = vmatpush2.msra.mxu0 0.0
        %773 = vmatprep.subr.mxu0 0.0
        %774 = vmatpush2.msra.mxu0 0.0
        %775 = vmatprep.subr.mxu0 0.0
        %776 = vmatpush2.msra.mxu0 0.0
        %777 = vmatprep.subr.mxu0 0.0
        %778 = vmatpush2.msra.mxu0 0.0
        %779 = vmatprep.subr.mxu0 0.0
        %780 = vmatpush2.msra.mxu0 0.0
        %781 = vmatprep.subr.mxu0 0.0
        %782 = vmatpush2.msra.mxu0 0.0
        %783 = vmatprep.subr.mxu0 0.0
        %784 = vmatpush2.msra.mxu0 0.0
        %785 = vmatprep.subr.mxu0 0.0
        %786 = vmatpush2.msra.mxu0 0.0
        %787 = vmatprep.subr.mxu0 0.0
        %788 = vmatpush2.msra.mxu0 0.0
        %789 = vmatprep.subr.mxu0 0.0
        %790 = vmatpush2.msra.mxu0 0.0
        %791 = vmatprep.subr.mxu0 0.0
        %792 = vmatpush2.msra.mxu0 0.0
        %793 = vmatprep.mubr.f32.mxu0 0.0
        %794 = vmatmul.mubr.f32.gmra.mxu0 %v724
        %v795 = vpop.f32.mrf.mxu0
        %v796 = vadd.f32 0.0, %v795
        %v797 = vpop.f32.mrf.mxu0
        %798 = vmatprep.mubr.f32.mxu0 0.0
        %799 = vmatmul.mubr.f32.gmra.mxu0 %v727
        %v800 = vpop.f32.mrf.mxu0
        %v801 = vadd.f32 0.0, %v800
        %v802 = vpop.f32.mrf.mxu0
        %803 = vdwg.mxu0
        %v804 = vld [vmem:[#allocation18] sm:$0x3]
        %v805 = vld [vmem:[#allocation20] sm:$0x1]
        %v807 = vlaneseq
        %v808 = vshrl.u32 %v807, 7
        %v809 = vsub.s32 0, %v808
        %v810 = vrot.slane %v805, %v809
        %vm812 = vcmask 15360
        %v814 = vsel %vm812, %v796, 0
        %v817 = vsel %vm812, %v801, 0
        %vm819 = vcmask 1041408
        %v821 = vsel %vm819, %v804, 0
        %823 = vmatprep.subr.mxu0 0.0
        %824 = vmatpush1.msra.mxu0 0.0
        %825 = vmatprep.subr.mxu0 0.0
        %826 = vmatpush1.msra.mxu0 0.0
        %827 = vmatprep.subr.mxu0 0.0
        %828 = vmatpush1.msra.mxu0 0.0
        %829 = vmatprep.subr.mxu0 0.0
        %830 = vmatpush1.msra.mxu0 0.0
        %831 = vmatprep.subr.mxu0 0.0
        %832 = vmatpush1.msra.mxu0 0.0
        %833 = vmatprep.subr.mxu0 0.0
        %834 = vmatpush1.msra.mxu0 0.0
        %835 = vmatprep.subr.mxu0 0.0
        %836 = vmatpush1.msra.mxu0 0.0
        %837 = vmatprep.subr.mxu0 0.0
        %838 = vmatpush1.msra.mxu0 0.0
        %839 = vmatprep.subr.mxu0 0.0
        %840 = vmatpush1.msra.mxu0 0.0
        %841 = vmatprep.subr.mxu0 0.0
        %842 = vmatpush1.msra.mxu0 0.0
        %843 = vmatprep.subr.mxu0 0.0
        %844 = vmatpush1.msra.mxu0 0.0
        %845 = vmatprep.subr.mxu0 0.0
        %846 = vmatpush1.msra.mxu0 0.0
        %847 = vmatprep.subr.mxu0 0.0
        %848 = vmatpush1.msra.mxu0 0.0
        %849 = vmatprep.subr.mxu0 0.0
        %850 = vmatpush1.msra.mxu0 0.0
        %851 = vmatprep.subr.mxu0 0.0
        %852 = vmatpush1.msra.mxu0 0.0
        %853 = vmatprep.subr.mxu0 0.0
        %854 = vmatpush1.msra.mxu0 %v821
        %855 = vmatprep.subr.mxu0 0.0
        %856 = vmatpush2.msra.mxu0 0.0
        %857 = vmatprep.subr.mxu0 0.0
        %858 = vmatpush2.msra.mxu0 0.0
        %859 = vmatprep.subr.mxu0 0.0
        %860 = vmatpush2.msra.mxu0 0.0
        %861 = vmatprep.subr.mxu0 0.0
        %862 = vmatpush2.msra.mxu0 0.0
        %863 = vmatprep.subr.mxu0 0.0
        %864 = vmatpush2.msra.mxu0 0.0
        %865 = vmatprep.subr.mxu0 0.0
        %866 = vmatpush2.msra.mxu0 0.0
        %867 = vmatprep.subr.mxu0 0.0
        %868 = vmatpush2.msra.mxu0 0.0
        %869 = vmatprep.subr.mxu0 0.0
        %870 = vmatpush2.msra.mxu0 0.0
        %871 = vmatprep.subr.mxu0 0.0
        %872 = vmatpush2.msra.mxu0 0.0
        %873 = vmatprep.subr.mxu0 0.0
        %874 = vmatpush2.msra.mxu0 0.0
        %875 = vmatprep.subr.mxu0 0.0
        %876 = vmatpush2.msra.mxu0 0.0
        %877 = vmatprep.subr.mxu0 0.0
        %878 = vmatpush2.msra.mxu0 0.0
        %879 = vmatprep.subr.mxu0 0.0
        %880 = vmatpush2.msra.mxu0 0.0
        %881 = vmatprep.subr.mxu0 0.0
        %882 = vmatpush2.msra.mxu0 0.0
        %883 = vmatprep.subr.mxu0 0.0
        %884 = vmatpush2.msra.mxu0 0.0
        %885 = vmatprep.subr.mxu0 0.0
        %886 = vmatpush2.msra.mxu0 0.0
        %887 = vmatprep.mubr.f32.mxu0 0.0
        %888 = vmatmul.mubr.f32.gmra.mxu0 %v814
        %v889 = vpop.f32.mrf.mxu0
        %v890 = vadd.f32 %v810, %v889
        %v891 = vpop.f32.mrf.mxu0
        %892 = vmatprep.mubr.f32.mxu0 0.0
        %893 = vmatmul.mubr.f32.gmra.mxu0 %v817
        %v894 = vpop.f32.mrf.mxu0
        %v895 = vadd.f32 %v810, %v894
        %v896 = vpop.f32.mrf.mxu0
        %897 = vdwg.mxu0
        %vm898 = vcmp.gt.f32.partialorder %v890, 20.0
        %vm899 = vcmp.gt.f32.partialorder %v895, 20.0
        %v900 = vmin.f32 %v890, 20.0
        %v901 = vmin.f32 %v895, 20.0
        %v902 = vmul.f32 %v900, 1.442695
        %v903 = vpow.pop %v902
        %v904 = vmul.f32 %v901, 1.442695
        %v905 = vpow.pop %v904
        %v906 = vadd.f32 %v903, 1.0
        %v907 = vlog2.pop %v906
        %v908 = vmul.f32 %v907, 0.6931472
        %v909 = vmul.f32 -0.5, %v903
        %v910 = vadd.f32 %v909, 1.0
        %v911 = vmul.f32 %v910, %v903
        %v912 = vand.u32 2147483647, %v903
        %vm913 = vcmp.lt.f32.partialorder %v912, 0.0004427343
        %v914 = vsel %vm913, %v911, %v908
        %v915 = vadd.f32 %v905, 1.0
        %v916 = vlog2.pop %v915
        %v917 = vmul.f32 %v916, 0.6931472
        %v918 = vmul.f32 -0.5, %v905
        %v919 = vadd.f32 %v918, 1.0
        %v920 = vmul.f32 %v919, %v905
        %v921 = vand.u32 2147483647, %v905
        %vm922 = vcmp.lt.f32.partialorder %v921, 0.0004427343
        %v923 = vsel %vm922, %v920, %v917
        %v924 = vsel %vm898, %v890, %v914
        %v925 = vsel %vm899, %v895, %v923
        %926 = vst.msk [vmem:[#allocation4] sm:$0xff] %vm652, %v924
        %927 = vst.msk [vmem:[#allocation4 + $0x8] sm:$0xff] %vm652, %v925
        %v928 = vmul.f32 %v924, %v713
        %v929 = vmul.f32 %v925, %v714
        %930 = vst.msk [vmem:[#allocation5] sm:$0xff] %vm652, %v928
        %931 = vst.msk [vmem:[#allocation5 + $0x8] sm:$0xff] %vm652, %v929
        %932 = vrot.lane.b32.xlu0 %v796, 126
        %v933 = vpop.permute.xlu0 %932
        %934 = vrot.lane.b32.xlu0 %v801, 126
        %v935 = vpop.permute.xlu0 %934
        %vm938 = vcmask 130048
        %939 = vst.msk [vmem:[#allocation6] sm:$0xff] %vm938, %v933
        %940 = vst.msk [vmem:[#allocation6 + $0x8] sm:$0xff] %vm938, %v935
        %941 = vrot.lane.b32.xlu0 %v796, 110
        %v942 = vpop.permute.xlu0 %941
        %943 = vrot.lane.b32.xlu0 %v801, 110
        %v944 = vpop.permute.xlu0 %943
        %947 = vst.msk [vmem:[#allocation7] sm:$0xff] %vm938, %v942
        %948 = vst.msk [vmem:[#allocation7 + $0x8] sm:$0xff] %vm938, %v944
        %v949 = vld [vmem:[%s9] sm:$0xff]
        %v950 = vld [vmem:[%s9 + $0x8] sm:$0xff]
        %v951 = vld [vmem:[#allocation8] sm:$0xff]
        %v952 = vld [vmem:[#allocation8 + $0x8] sm:$0xff]
        %v953 = vld [vmem:[#allocation4] sm:$0xff]
        %v954 = vld [vmem:[#allocation4 + $0x8] sm:$0xff]
        %v955 = vld [vmem:[#allocation5] sm:$0xff]
        %v956 = vld [vmem:[#allocation5 + $0x8] sm:$0xff]
        %v957 = vld [vmem:[#allocation6] sm:$0xff]
        %v958 = vld [vmem:[#allocation6 + $0x8] sm:$0xff]
        %959 = vxpose.xlu0.b32.start [1/16] %v957, 128
        %960 = vxpose.xlu0.b32.cont [2/16] %v958, 128
        %961 = vxpose.xlu0.b32.cont [3/16] 0.0, 128
        %962 = vxpose.xlu0.b32.cont [4/16] 0.0, 128
        %963 = vxpose.xlu0.b32.cont [5/16] 0.0, 128
        %964 = vxpose.xlu0.b32.cont [6/16] 0.0, 128
        %965 = vxpose.xlu0.b32.cont [7/16] 0.0, 128
        %966 = vxpose.xlu0.b32.cont [8/16] 0.0, 128
        %967 = vxpose.xlu0.b32.cont [9/16] 0.0, 128
        %968 = vxpose.xlu0.b32.cont [10/16] 0.0, 128
        %969 = vxpose.xlu0.b32.cont [11/16] 0.0, 128
        %970 = vxpose.xlu0.b32.cont [12/16] 0.0, 128
        %971 = vxpose.xlu0.b32.cont [13/16] 0.0, 128
        %972 = vxpose.xlu0.b32.cont [14/16] 0.0, 128
        %973 = vxpose.xlu0.b32.cont [15/16] 0.0, 128
        %974 = vxpose.xlu0.b32.end [16/16] 0.0, 128
        %v975 = vpop.trf.xlu0
        %v976 = vpop.trf.xlu0
        %v977 = vpop.trf.xlu0
        %v978 = vpop.trf.xlu0
        %v979 = vpop.trf.xlu0
        %v980 = vpop.trf.xlu0
        %v981 = vpop.trf.xlu0
        %v982 = vpop.trf.xlu0
        %v983 = vpop.trf.xlu0
        %v984 = vpop.trf.xlu0
        %v985 = vpop.trf.xlu0
        %v986 = vpop.trf.xlu0
        %v987 = vpop.trf.xlu0
        %v988 = vpop.trf.xlu0
        %v989 = vpop.trf.xlu0
        %v990 = vpop.trf.xlu0
        %v991 = vld [vmem:[#allocation7] sm:$0xff]
        %v992 = vld [vmem:[#allocation7 + $0x8] sm:$0xff]
        %993 = vxpose.xlu0.b32.start [1/16] %v991, 128
        %994 = vxpose.xlu0.b32.cont [2/16] %v992, 128
        %995 = vxpose.xlu0.b32.cont [3/16] 0.0, 128
        %996 = vxpose.xlu0.b32.cont [4/16] 0.0, 128
        %997 = vxpose.xlu0.b32.cont [5/16] 0.0, 128
        %998 = vxpose.xlu0.b32.cont [6/16] 0.0, 128
        %999 = vxpose.xlu0.b32.cont [7/16] 0.0, 128
        %1000 = vxpose.xlu0.b32.cont [8/16] 0.0, 128
        %1001 = vxpose.xlu0.b32.cont [9/16] 0.0, 128
        %1002 = vxpose.xlu0.b32.cont [10/16] 0.0, 128
        %1003 = vxpose.xlu0.b32.cont [11/16] 0.0, 128
        %1004 = vxpose.xlu0.b32.cont [12/16] 0.0, 128
        %1005 = vxpose.xlu0.b32.cont [13/16] 0.0, 128
        %1006 = vxpose.xlu0.b32.cont [14/16] 0.0, 128
        %1007 = vxpose.xlu0.b32.cont [15/16] 0.0, 128
        %1008 = vxpose.xlu0.b32.end [16/16] 0.0, 128
        %v1009 = vpop.trf.xlu0
        %v1010 = vpop.trf.xlu0
        %v1011 = vpop.trf.xlu0
        %v1012 = vpop.trf.xlu0
        %v1013 = vpop.trf.xlu0
        %v1014 = vpop.trf.xlu0
        %v1015 = vpop.trf.xlu0
        %v1016 = vpop.trf.xlu0
        %v1017 = vpop.trf.xlu0
        %v1018 = vpop.trf.xlu0
        %v1019 = vpop.trf.xlu0
        %v1020 = vpop.trf.xlu0
        %v1021 = vpop.trf.xlu0
        %v1022 = vpop.trf.xlu0
        %v1023 = vpop.trf.xlu0
        %v1024 = vpop.trf.xlu0
        %v1025 = vlaneseq
        %v1026 = vshrl.u32 %v1025, 7
        %v1027 = vsub.s32 0, %v1026
        %v1028 = vrot.slane %v953, %v1027
        %v1029 = vmul.f32 %v1028, %v949
        %v1030 = vmul.f32 %v1028, %v950
        %v1031 = vmul.f32 %v1029, 1.442695
        %v1032 = vpow.pop %v1031
        %v1033 = vmul.f32 %v1030, 1.442695
        %v1034 = vpow.pop %v1033
        %v1035 = vmul.f32 %v1032, %v951
        %v1036 = vmul.f32 %v1034, %v952
        %1038 = vset.pattern.permute.xlu0 0
        %1039 = vperm.xlu0 %1038, %v975
        %v1040 = vpop.permute.xlu0 %1039
        %1043 = vset.pattern.permute.xlu0 0
        %1044 = vperm.xlu0 %1043, %v976
        %v1045 = vpop.permute.xlu0 %1044
        %v1047 = vlaneseq
        %v1048 = vshrl.u32 %v1047, 7
        %v1049 = vsub.s32 0, %v1048
        %v1050 = vrot.slane %v955, %v1049
        %v1051 = vmul.f32 %v1040, %v1050
        %v1052 = vmul.f32 %v1045, %v1050
        %v1053 = vadd.f32 %v1035, %v1051
        %v1054 = vadd.f32 %v1036, %v1052
        %1056 = vset.pattern.permute.xlu0 0
        %1057 = vperm.xlu0 %1056, %v1009
        %v1058 = vpop.permute.xlu0 %1057
        %1061 = vset.pattern.permute.xlu0 0
        %1062 = vperm.xlu0 %1061, %v1010
        %v1063 = vpop.permute.xlu0 %1062
        %v1065 = vmul.f32 %v1058, %v1053
        %v1066 = vmul.f32 %v1063, %v1054
        %v1067 = vsel %vm652, %v1065, 0.0
        %v1068 = vsel %vm652, %v1066, 0.0
        %v1069 = vadd.f32 %v1067, %v1068
        %v1070 = vrot.slane %v1069, 4
        %v1071 = vadd.f32 %v1069, %v1070
        %v1072 = vrot.slane %v1071, 2
        %v1073 = vadd.f32 %v1071, %v1072
        %v1074 = vrot.slane %v1073, 1
        %v1075 = vadd.f32 %v1073, %v1074
        %v1076 = vlaneseq
        %v1077 = vshrl.u32 %v1076, 7
        %v1078 = vsub.s32 1, %v1077
        %v1079 = vrot.slane %v953, %v1078
        %v1080 = vmul.f32 %v1079, %v949
        %v1081 = vmul.f32 %v1079, %v950
        %v1082 = vmul.f32 %v1080, 1.442695
        %v1083 = vpow.pop %v1082
        %v1084 = vmul.f32 %v1081, 1.442695
        %v1085 = vpow.pop %v1084
        %v1086 = vmul.f32 %v1083, %v1053
        %v1087 = vmul.f32 %v1085, %v1054
        %1088 = vset.pattern.permute.xlu0 1
        %1089 = vperm.xlu0 %1088, %v975
        %v1090 = vpop.permute.xlu0 %1089
        %1092 = vset.pattern.permute.xlu0 1
        %1093 = vperm.xlu0 %1092, %v976
        %v1094 = vpop.permute.xlu0 %1093
        %v1096 = vlaneseq
        %v1097 = vshrl.u32 %v1096, 7
        %v1098 = vsub.s32 1, %v1097
        %v1099 = vrot.slane %v955, %v1098
        %v1100 = vmul.f32 %v1090, %v1099
        %v1101 = vmul.f32 %v1094, %v1099
        %v1102 = vadd.f32 %v1086, %v1100
        %v1103 = vadd.f32 %v1087, %v1101
        %1104 = vset.pattern.permute.xlu0 1
        %1105 = vperm.xlu0 %1104, %v1009
        %v1106 = vpop.permute.xlu0 %1105
        %1108 = vset.pattern.permute.xlu0 1
        %1109 = vperm.xlu0 %1108, %v1010
        %v1110 = vpop.permute.xlu0 %1109
        %v1112 = vmul.f32 %v1106, %v1102
        %v1113 = vmul.f32 %v1110, %v1103
        %v1114 = vsel %vm652, %v1112, 0.0
        %v1115 = vsel %vm652, %v1113, 0.0
        %v1116 = vadd.f32 %v1114, %v1115
        %v1117 = vrot.slane %v1116, 4
        %v1118 = vadd.f32 %v1116, %v1117
        %v1119 = vrot.slane %v1118, 2
        %v1120 = vadd.f32 %v1118, %v1119
        %v1121 = vrot.slane %v1120, 1
        %v1122 = vadd.f32 %v1120, %v1121
        %v1123 = vlaneseq
        %v1124 = vshrl.u32 %v1123, 7
        %v1125 = vsub.s32 2, %v1124
        %v1126 = vrot.slane %v953, %v1125
        %v1127 = vmul.f32 %v1126, %v949
        %v1128 = vmul.f32 %v1126, %v950
        %v1129 = vmul.f32 %v1127, 1.442695
        %v1130 = vpow.pop %v1129
        %v1131 = vmul.f32 %v1128, 1.442695
        %v1132 = vpow.pop %v1131
        %v1133 = vmul.f32 %v1130, %v1102
        %v1134 = vmul.f32 %v1132, %v1103
        %1135 = vset.pattern.permute.xlu0 2
        %1136 = vperm.xlu0 %1135, %v975
        %v1137 = vpop.permute.xlu0 %1136
        %1139 = vset.pattern.permute.xlu0 2
        %1140 = vperm.xlu0 %1139, %v976
        %v1141 = vpop.permute.xlu0 %1140
        %v1143 = vlaneseq
        %v1144 = vshrl.u32 %v1143, 7
        %v1145 = vsub.s32 2, %v1144
        %v1146 = vrot.slane %v955, %v1145
        %v1147 = vmul.f32 %v1137, %v1146
        %v1148 = vmul.f32 %v1141, %v1146
        %v1149 = vadd.f32 %v1133, %v1147
        %v1150 = vadd.f32 %v1134, %v1148
        %1151 = vset.pattern.permute.xlu0 2
        %1152 = vperm.xlu0 %1151, %v1009
        %v1153 = vpop.permute.xlu0 %1152
        %1155 = vset.pattern.permute.xlu0 2
        %1156 = vperm.xlu0 %1155, %v1010
        %v1157 = vpop.permute.xlu0 %1156
        %v1159 = vmul.f32 %v1153, %v1149
        %v1160 = vmul.f32 %v1157, %v1150
        %v1161 = vsel %vm652, %v1159, 0.0
        %v1162 = vsel %vm652, %v1160, 0.0
        %v1163 = vadd.f32 %v1161, %v1162
        %v1164 = vrot.slane %v1163, 4
        %v1165 = vadd.f32 %v1163, %v1164
        %v1166 = vrot.slane %v1165, 2
        %v1167 = vadd.f32 %v1165, %v1166
        %v1168 = vrot.slane %v1167, 1
        %v1169 = vadd.f32 %v1167, %v1168
        %v1170 = vlaneseq
        %v1171 = vshrl.u32 %v1170, 7
        %v1172 = vsub.s32 3, %v1171
        %v1173 = vrot.slane %v953, %v1172
        %v1174 = vmul.f32 %v1173, %v949
        %v1175 = vmul.f32 %v1173, %v950
        %v1176 = vmul.f32 %v1174, 1.442695
        %v1177 = vpow.pop %v1176
        %v1178 = vmul.f32 %v1175, 1.442695
        %v1179 = vpow.pop %v1178
        %v1180 = vmul.f32 %v1177, %v1149
        %v1181 = vmul.f32 %v1179, %v1150
        %1182 = vset.pattern.permute.xlu0 3
        %1183 = vperm.xlu0 %1182, %v975
        %v1184 = vpop.permute.xlu0 %1183
        %1186 = vset.pattern.permute.xlu0 3
        %1187 = vperm.xlu0 %1186, %v976
        %v1188 = vpop.permute.xlu0 %1187
        %v1190 = vlaneseq
        %v1191 = vshrl.u32 %v1190, 7
        %v1192 = vsub.s32 3, %v1191
        %v1193 = vrot.slane %v955, %v1192
        %v1194 = vmul.f32 %v1184, %v1193
        %v1195 = vmul.f32 %v1188, %v1193
        %v1196 = vadd.f32 %v1180, %v1194
        %v1197 = vadd.f32 %v1181, %v1195
        %1198 = vset.pattern.permute.xlu0 3
        %1199 = vperm.xlu0 %1198, %v1009
        %v1200 = vpop.permute.xlu0 %1199
        %1202 = vset.pattern.permute.xlu0 3
        %1203 = vperm.xlu0 %1202, %v1010
        %v1204 = vpop.permute.xlu0 %1203
        %v1206 = vmul.f32 %v1200, %v1196
        %v1207 = vmul.f32 %v1204, %v1197
        %v1208 = vsel %vm652, %v1206, 0.0
        %v1209 = vsel %vm652, %v1207, 0.0
        %v1210 = vadd.f32 %v1208, %v1209
        %v1211 = vrot.slane %v1210, 4
        %v1212 = vadd.f32 %v1210, %v1211
        %v1213 = vrot.slane %v1212, 2
        %v1214 = vadd.f32 %v1212, %v1213
        %v1215 = vrot.slane %v1214, 1
        %v1216 = vadd.f32 %v1214, %v1215
        %v1217 = vlaneseq
        %v1218 = vshrl.u32 %v1217, 7
        %v1219 = vsub.s32 4, %v1218
        %v1220 = vrot.slane %v953, %v1219
        %v1221 = vmul.f32 %v1220, %v949
        %v1222 = vmul.f32 %v1220, %v950
        %v1223 = vmul.f32 %v1221, 1.442695
        %v1224 = vpow.pop %v1223
        %v1225 = vmul.f32 %v1222, 1.442695
        %v1226 = vpow.pop %v1225
        %v1227 = vmul.f32 %v1224, %v1196
        %v1228 = vmul.f32 %v1226, %v1197
        %1229 = vset.pattern.permute.xlu0 4
        %1230 = vperm.xlu0 %1229, %v975
        %v1231 = vpop.permute.xlu0 %1230
        %1233 = vset.pattern.permute.xlu0 4
        %1234 = vperm.xlu0 %1233, %v976
        %v1235 = vpop.permute.xlu0 %1234
        %v1237 = vlaneseq
        %v1238 = vshrl.u32 %v1237, 7
        %v1239 = vsub.s32 4, %v1238
        %v1240 = vrot.slane %v955, %v1239
        %v1241 = vmul.f32 %v1231, %v1240
        %v1242 = vmul.f32 %v1235, %v1240
        %v1243 = vadd.f32 %v1227, %v1241
        %v1244 = vadd.f32 %v1228, %v1242
        %1245 = vset.pattern.permute.xlu0 4
        %1246 = vperm.xlu0 %1245, %v1009
        %v1247 = vpop.permute.xlu0 %1246
        %1249 = vset.pattern.permute.xlu0 4
        %1250 = vperm.xlu0 %1249, %v1010
        %v1251 = vpop.permute.xlu0 %1250
        %v1253 = vmul.f32 %v1247, %v1243
        %v1254 = vmul.f32 %v1251, %v1244
        %v1255 = vsel %vm652, %v1253, 0.0
        %v1256 = vsel %vm652, %v1254, 0.0
        %v1257 = vadd.f32 %v1255, %v1256
        %v1258 = vrot.slane %v1257, 4
        %v1259 = vadd.f32 %v1257, %v1258
        %v1260 = vrot.slane %v1259, 2
        %v1261 = vadd.f32 %v1259, %v1260
        %v1262 = vrot.slane %v1261, 1
        %v1263 = vadd.f32 %v1261, %v1262
        %v1264 = vlaneseq
        %v1265 = vshrl.u32 %v1264, 7
        %v1266 = vsub.s32 5, %v1265
        %v1267 = vrot.slane %v953, %v1266
        %v1268 = vmul.f32 %v1267, %v949
        %v1269 = vmul.f32 %v1267, %v950
        %v1270 = vmul.f32 %v1268, 1.442695
        %v1271 = vpow.pop %v1270
        %v1272 = vmul.f32 %v1269, 1.442695
        %v1273 = vpow.pop %v1272
        %v1274 = vmul.f32 %v1271, %v1243
        %v1275 = vmul.f32 %v1273, %v1244
        %1276 = vset.pattern.permute.xlu0 5
        %1277 = vperm.xlu0 %1276, %v975
        %v1278 = vpop.permute.xlu0 %1277
        %1280 = vset.pattern.permute.xlu0 5
        %1281 = vperm.xlu0 %1280, %v976
        %v1282 = vpop.permute.xlu0 %1281
        %v1284 = vlaneseq
        %v1285 = vshrl.u32 %v1284, 7
        %v1286 = vsub.s32 5, %v1285
        %v1287 = vrot.slane %v955, %v1286
        %v1288 = vmul.f32 %v1278, %v1287
        %v1289 = vmul.f32 %v1282, %v1287
        %v1290 = vadd.f32 %v1274, %v1288
        %v1291 = vadd.f32 %v1275, %v1289
        %1292 = vset.pattern.permute.xlu0 5
        %1293 = vperm.xlu0 %1292, %v1009
        %v1294 = vpop.permute.xlu0 %1293
        %1296 = vset.pattern.permute.xlu0 5
        %1297 = vperm.xlu0 %1296, %v1010
        %v1298 = vpop.permute.xlu0 %1297
        %v1300 = vmul.f32 %v1294, %v1290
        %v1301 = vmul.f32 %v1298, %v1291
        %v1302 = vsel %vm652, %v1300, 0.0
        %v1303 = vsel %vm652, %v1301, 0.0
        %v1304 = vadd.f32 %v1302, %v1303
        %v1305 = vrot.slane %v1304, 4
        %v1306 = vadd.f32 %v1304, %v1305
        %v1307 = vrot.slane %v1306, 2
        %v1308 = vadd.f32 %v1306, %v1307
        %v1309 = vrot.slane %v1308, 1
        %v1310 = vadd.f32 %v1308, %v1309
        %v1311 = vlaneseq
        %v1312 = vshrl.u32 %v1311, 7
        %v1313 = vsub.s32 6, %v1312
        %v1314 = vrot.slane %v953, %v1313
        %v1315 = vmul.f32 %v1314, %v949
        %v1316 = vmul.f32 %v1314, %v950
        %v1317 = vmul.f32 %v1315, 1.442695
        %v1318 = vpow.pop %v1317
        %v1319 = vmul.f32 %v1316, 1.442695
        %v1320 = vpow.pop %v1319
        %v1321 = vmul.f32 %v1318, %v1290
        %v1322 = vmul.f32 %v1320, %v1291
        %1323 = vset.pattern.permute.xlu0 6
        %1324 = vperm.xlu0 %1323, %v975
        %v1325 = vpop.permute.xlu0 %1324
        %1327 = vset.pattern.permute.xlu0 6
        %1328 = vperm.xlu0 %1327, %v976
        %v1329 = vpop.permute.xlu0 %1328
        %v1331 = vlaneseq
        %v1332 = vshrl.u32 %v1331, 7
        %v1333 = vsub.s32 6, %v1332
        %v1334 = vrot.slane %v955, %v1333
        %v1335 = vmul.f32 %v1325, %v1334
        %v1336 = vmul.f32 %v1329, %v1334
        %v1337 = vadd.f32 %v1321, %v1335
        %v1338 = vadd.f32 %v1322, %v1336
        %1339 = vset.pattern.permute.xlu0 6
        %1340 = vperm.xlu0 %1339, %v1009
        %v1341 = vpop.permute.xlu0 %1340
        %1343 = vset.pattern.permute.xlu0 6
        %1344 = vperm.xlu0 %1343, %v1010
        %v1345 = vpop.permute.xlu0 %1344
        %v1347 = vmul.f32 %v1341, %v1337
        %v1348 = vmul.f32 %v1345, %v1338
        %v1349 = vsel %vm652, %v1347, 0.0
        %v1350 = vsel %vm652, %v1348, 0.0
        %v1351 = vadd.f32 %v1349, %v1350
        %v1352 = vrot.slane %v1351, 4
        %v1353 = vadd.f32 %v1351, %v1352
        %v1354 = vrot.slane %v1353, 2
        %v1355 = vadd.f32 %v1353, %v1354
        %v1356 = vrot.slane %v1355, 1
        %v1357 = vadd.f32 %v1355, %v1356
        %v1358 = vlaneseq
        %v1359 = vshrl.u32 %v1358, 7
        %v1360 = vsub.s32 7, %v1359
        %v1361 = vrot.slane %v953, %v1360
        %v1362 = vmul.f32 %v1361, %v949
        %v1363 = vmul.f32 %v1361, %v950
        %v1364 = vmul.f32 %v1362, 1.442695
        %v1365 = vpow.pop %v1364
        %v1366 = vmul.f32 %v1363, 1.442695
        %v1367 = vpow.pop %v1366
        %v1368 = vmul.f32 %v1365, %v1337
        %v1369 = vmul.f32 %v1367, %v1338
        %1370 = vset.pattern.permute.xlu0 7
        %1371 = vperm.xlu0 %1370, %v975
        %v1372 = vpop.permute.xlu0 %1371
        %1374 = vset.pattern.permute.xlu0 7
        %1375 = vperm.xlu0 %1374, %v976
        %v1376 = vpop.permute.xlu0 %1375
        %v1378 = vlaneseq
        %v1379 = vshrl.u32 %v1378, 7
        %v1380 = vsub.s32 7, %v1379
        %v1381 = vrot.slane %v955, %v1380
        %v1382 = vmul.f32 %v1372, %v1381
        %v1383 = vmul.f32 %v1376, %v1381
        %v1384 = vadd.f32 %v1368, %v1382
        %v1385 = vadd.f32 %v1369, %v1383
        %1386 = vset.pattern.permute.xlu0 7
        %1387 = vperm.xlu0 %1386, %v1009
        %v1388 = vpop.permute.xlu0 %1387
        %1390 = vset.pattern.permute.xlu0 7
        %1391 = vperm.xlu0 %1390, %v1010
        %v1392 = vpop.permute.xlu0 %1391
        %v1394 = vmul.f32 %v1388, %v1384
        %v1395 = vmul.f32 %v1392, %v1385
        %v1396 = vsel %vm652, %v1394, 0.0
        %v1397 = vsel %vm652, %v1395, 0.0
        %v1398 = vadd.f32 %v1396, %v1397
        %v1399 = vrot.slane %v1398, 4
        %v1400 = vadd.f32 %v1398, %v1399
        %v1401 = vrot.slane %v1400, 2
        %v1402 = vadd.f32 %v1400, %v1401
        %v1403 = vrot.slane %v1402, 1
        %v1404 = vadd.f32 %v1402, %v1403
        %v1405 = vlaneseq
        %v1406 = vshrl.u32 %v1405, 7
        %v1407 = vsub.s32 0, %v1406
        %v1408 = vrot.slane %v954, %v1407
        %v1409 = vmul.f32 %v1408, %v949
        %v1410 = vmul.f32 %v1408, %v950
        %v1411 = vmul.f32 %v1409, 1.442695
        %v1412 = vpow.pop %v1411
        %v1413 = vmul.f32 %v1410, 1.442695
        %v1414 = vpow.pop %v1413
        %v1415 = vmul.f32 %v1412, %v1384
        %v1416 = vmul.f32 %v1414, %v1385
        %1417 = vset.pattern.permute.xlu0 8
        %1418 = vperm.xlu0 %1417, %v975
        %v1419 = vpop.permute.xlu0 %1418
        %1421 = vset.pattern.permute.xlu0 8
        %1422 = vperm.xlu0 %1421, %v976
        %v1423 = vpop.permute.xlu0 %1422
        %v1425 = vlaneseq
        %v1426 = vshrl.u32 %v1425, 7
        %v1427 = vsub.s32 0, %v1426
        %v1428 = vrot.slane %v956, %v1427
        %v1429 = vmul.f32 %v1419, %v1428
        %v1430 = vmul.f32 %v1423, %v1428
        %v1431 = vadd.f32 %v1415, %v1429
        %v1432 = vadd.f32 %v1416, %v1430
        %1433 = vset.pattern.permute.xlu0 8
        %1434 = vperm.xlu0 %1433, %v1009
        %v1435 = vpop.permute.xlu0 %1434
        %1437 = vset.pattern.permute.xlu0 8
        %1438 = vperm.xlu0 %1437, %v1010
        %v1439 = vpop.permute.xlu0 %1438
        %v1441 = vmul.f32 %v1435, %v1431
        %v1442 = vmul.f32 %v1439, %v1432
        %v1443 = vsel %vm652, %v1441, 0.0
        %v1444 = vsel %vm652, %v1442, 0.0
        %v1445 = vadd.f32 %v1443, %v1444
        %v1446 = vrot.slane %v1445, 4
        %v1447 = vadd.f32 %v1445, %v1446
        %v1448 = vrot.slane %v1447, 2
        %v1449 = vadd.f32 %v1447, %v1448
        %v1450 = vrot.slane %v1449, 1
        %v1451 = vadd.f32 %v1449, %v1450
        %v1452 = vlaneseq
        %v1453 = vshrl.u32 %v1452, 7
        %v1454 = vsub.s32 1, %v1453
        %v1455 = vrot.slane %v954, %v1454
        %v1456 = vmul.f32 %v1455, %v949
        %v1457 = vmul.f32 %v1455, %v950
        %v1458 = vmul.f32 %v1456, 1.442695
        %v1459 = vpow.pop %v1458
        %v1460 = vmul.f32 %v1457, 1.442695
        %v1461 = vpow.pop %v1460
        %v1462 = vmul.f32 %v1459, %v1431
        %v1463 = vmul.f32 %v1461, %v1432
        %1464 = vset.pattern.permute.xlu0 9
        %1465 = vperm.xlu0 %1464, %v975
        %v1466 = vpop.permute.xlu0 %1465
        %1468 = vset.pattern.permute.xlu0 9
        %1469 = vperm.xlu0 %1468, %v976
        %v1470 = vpop.permute.xlu0 %1469
        %v1472 = vlaneseq
        %v1473 = vshrl.u32 %v1472, 7
        %v1474 = vsub.s32 1, %v1473
        %v1475 = vrot.slane %v956, %v1474
        %v1476 = vmul.f32 %v1466, %v1475
        %v1477 = vmul.f32 %v1470, %v1475
        %v1478 = vadd.f32 %v1462, %v1476
        %v1479 = vadd.f32 %v1463, %v1477
        %1480 = vset.pattern.permute.xlu0 9
        %1481 = vperm.xlu0 %1480, %v1009
        %v1482 = vpop.permute.xlu0 %1481
        %1484 = vset.pattern.permute.xlu0 9
        %1485 = vperm.xlu0 %1484, %v1010
        %v1486 = vpop.permute.xlu0 %1485
        %v1488 = vmul.f32 %v1482, %v1478
        %v1489 = vmul.f32 %v1486, %v1479
        %v1490 = vsel %vm652, %v1488, 0.0
        %v1491 = vsel %vm652, %v1489, 0.0
        %v1492 = vadd.f32 %v1490, %v1491
        %v1493 = vrot.slane %v1492, 4
        %v1494 = vadd.f32 %v1492, %v1493
        %v1495 = vrot.slane %v1494, 2
        %v1496 = vadd.f32 %v1494, %v1495
        %v1497 = vrot.slane %v1496, 1
        %v1498 = vadd.f32 %v1496, %v1497
        %v1499 = vlaneseq
        %v1500 = vshrl.u32 %v1499, 7
        %v1501 = vsub.s32 2, %v1500
        %v1502 = vrot.slane %v954, %v1501
        %v1503 = vmul.f32 %v1502, %v949
        %v1504 = vmul.f32 %v1502, %v950
        %v1505 = vmul.f32 %v1503, 1.442695
        %v1506 = vpow.pop %v1505
        %v1507 = vmul.f32 %v1504, 1.442695
        %v1508 = vpow.pop %v1507
        %v1509 = vmul.f32 %v1506, %v1478
        %v1510 = vmul.f32 %v1508, %v1479
        %1511 = vset.pattern.permute.xlu0 10
        %1512 = vperm.xlu0 %1511, %v975
        %v1513 = vpop.permute.xlu0 %1512
        %1515 = vset.pattern.permute.xlu0 10
        %1516 = vperm.xlu0 %1515, %v976
        %v1517 = vpop.permute.xlu0 %1516
        %v1519 = vlaneseq
        %v1520 = vshrl.u32 %v1519, 7
        %v1521 = vsub.s32 2, %v1520
        %v1522 = vrot.slane %v956, %v1521
        %v1523 = vmul.f32 %v1513, %v1522
        %v1524 = vmul.f32 %v1517, %v1522
        %v1525 = vadd.f32 %v1509, %v1523
        %v1526 = vadd.f32 %v1510, %v1524
        %1527 = vset.pattern.permute.xlu0 10
        %1528 = vperm.xlu0 %1527, %v1009
        %v1529 = vpop.permute.xlu0 %1528
        %1531 = vset.pattern.permute.xlu0 10
        %1532 = vperm.xlu0 %1531, %v1010
        %v1533 = vpop.permute.xlu0 %1532
        %v1535 = vmul.f32 %v1529, %v1525
        %v1536 = vmul.f32 %v1533, %v1526
        %v1537 = vsel %vm652, %v1535, 0.0
        %v1538 = vsel %vm652, %v1536, 0.0
        %v1539 = vadd.f32 %v1537, %v1538
        %v1540 = vrot.slane %v1539, 4
        %v1541 = vadd.f32 %v1539, %v1540
        %v1542 = vrot.slane %v1541, 2
        %v1543 = vadd.f32 %v1541, %v1542
        %v1544 = vrot.slane %v1543, 1
        %v1545 = vadd.f32 %v1543, %v1544
        %v1546 = vlaneseq
        %v1547 = vshrl.u32 %v1546, 7
        %v1548 = vsub.s32 3, %v1547
        %v1549 = vrot.slane %v954, %v1548
        %v1550 = vmul.f32 %v1549, %v949
        %v1551 = vmul.f32 %v1549, %v950
        %v1552 = vmul.f32 %v1550, 1.442695
        %v1553 = vpow.pop %v1552
        %v1554 = vmul.f32 %v1551, 1.442695
        %v1555 = vpow.pop %v1554
        %v1556 = vmul.f32 %v1553, %v1525
        %v1557 = vmul.f32 %v1555, %v1526
        %1558 = vset.pattern.permute.xlu0 11
        %1559 = vperm.xlu0 %1558, %v975
        %v1560 = vpop.permute.xlu0 %1559
        %1562 = vset.pattern.permute.xlu0 11
        %1563 = vperm.xlu0 %1562, %v976
        %v1564 = vpop.permute.xlu0 %1563
        %v1566 = vlaneseq
        %v1567 = vshrl.u32 %v1566, 7
        %v1568 = vsub.s32 3, %v1567
        %v1569 = vrot.slane %v956, %v1568
        %v1570 = vmul.f32 %v1560, %v1569
        %v1571 = vmul.f32 %v1564, %v1569
        %v1572 = vadd.f32 %v1556, %v1570
        %v1573 = vadd.f32 %v1557, %v1571
        %1574 = vset.pattern.permute.xlu0 11
        %1575 = vperm.xlu0 %1574, %v1009
        %v1576 = vpop.permute.xlu0 %1575
        %1578 = vset.pattern.permute.xlu0 11
        %1579 = vperm.xlu0 %1578, %v1010
        %v1580 = vpop.permute.xlu0 %1579
        %v1582 = vmul.f32 %v1576, %v1572
        %v1583 = vmul.f32 %v1580, %v1573
        %v1584 = vsel %vm652, %v1582, 0.0
        %v1585 = vsel %vm652, %v1583, 0.0
        %v1586 = vadd.f32 %v1584, %v1585
        %v1587 = vrot.slane %v1586, 4
        %v1588 = vadd.f32 %v1586, %v1587
        %v1589 = vrot.slane %v1588, 2
        %v1590 = vadd.f32 %v1588, %v1589
        %v1591 = vrot.slane %v1590, 1
        %v1592 = vadd.f32 %v1590, %v1591
        %v1593 = vlaneseq
        %v1594 = vshrl.u32 %v1593, 7
        %v1595 = vsub.s32 4, %v1594
        %v1596 = vrot.slane %v954, %v1595
        %v1597 = vmul.f32 %v1596, %v949
        %v1598 = vmul.f32 %v1596, %v950
        %v1599 = vmul.f32 %v1597, 1.442695
        %v1600 = vpow.pop %v1599
        %v1601 = vmul.f32 %v1598, 1.442695
        %v1602 = vpow.pop %v1601
        %v1603 = vmul.f32 %v1600, %v1572
        %v1604 = vmul.f32 %v1602, %v1573
        %1605 = vset.pattern.permute.xlu0 12
        %1606 = vperm.xlu0 %1605, %v975
        %v1607 = vpop.permute.xlu0 %1606
        %1609 = vset.pattern.permute.xlu0 12
        %1610 = vperm.xlu0 %1609, %v976
        %v1611 = vpop.permute.xlu0 %1610
        %v1613 = vlaneseq
        %v1614 = vshrl.u32 %v1613, 7
        %v1615 = vsub.s32 4, %v1614
        %v1616 = vrot.slane %v956, %v1615
        %v1617 = vmul.f32 %v1607, %v1616
        %v1618 = vmul.f32 %v1611, %v1616
        %v1619 = vadd.f32 %v1603, %v1617
        %v1620 = vadd.f32 %v1604, %v1618
        %1621 = vset.pattern.permute.xlu0 12
        %1622 = vperm.xlu0 %1621, %v1009
        %v1623 = vpop.permute.xlu0 %1622
        %1625 = vset.pattern.permute.xlu0 12
        %1626 = vperm.xlu0 %1625, %v1010
        %v1627 = vpop.permute.xlu0 %1626
        %v1629 = vmul.f32 %v1623, %v1619
        %v1630 = vmul.f32 %v1627, %v1620
        %v1631 = vsel %vm652, %v1629, 0.0
        %v1632 = vsel %vm652, %v1630, 0.0
        %v1633 = vadd.f32 %v1631, %v1632
        %v1634 = vrot.slane %v1633, 4
        %v1635 = vadd.f32 %v1633, %v1634
        %v1636 = vrot.slane %v1635, 2
        %v1637 = vadd.f32 %v1635, %v1636
        %v1638 = vrot.slane %v1637, 1
        %v1639 = vadd.f32 %v1637, %v1638
        %v1640 = vlaneseq
        %v1641 = vshrl.u32 %v1640, 7
        %v1642 = vsub.s32 5, %v1641
        %v1643 = vrot.slane %v954, %v1642
        %v1644 = vmul.f32 %v1643, %v949
        %v1645 = vmul.f32 %v1643, %v950
        %v1646 = vmul.f32 %v1644, 1.442695
        %v1647 = vpow.pop %v1646
        %v1648 = vmul.f32 %v1645, 1.442695
        %v1649 = vpow.pop %v1648
        %v1650 = vmul.f32 %v1647, %v1619
        %v1651 = vmul.f32 %v1649, %v1620
        %1652 = vset.pattern.permute.xlu0 13
        %1653 = vperm.xlu0 %1652, %v975
        %v1654 = vpop.permute.xlu0 %1653
        %1656 = vset.pattern.permute.xlu0 13
        %1657 = vperm.xlu0 %1656, %v976
        %v1658 = vpop.permute.xlu0 %1657
        %v1660 = vlaneseq
        %v1661 = vshrl.u32 %v1660, 7
        %v1662 = vsub.s32 5, %v1661
        %v1663 = vrot.slane %v956, %v1662
        %v1664 = vmul.f32 %v1654, %v1663
        %v1665 = vmul.f32 %v1658, %v1663
        %v1666 = vadd.f32 %v1650, %v1664
        %v1667 = vadd.f32 %v1651, %v1665
        %1668 = vset.pattern.permute.xlu0 13
        %1669 = vperm.xlu0 %1668, %v1009
        %v1670 = vpop.permute.xlu0 %1669
        %1672 = vset.pattern.permute.xlu0 13
        %1673 = vperm.xlu0 %1672, %v1010
        %v1674 = vpop.permute.xlu0 %1673
        %v1676 = vmul.f32 %v1670, %v1666
        %v1677 = vmul.f32 %v1674, %v1667
        %v1678 = vsel %vm652, %v1676, 0.0
        %v1679 = vsel %vm652, %v1677, 0.0
        %v1680 = vadd.f32 %v1678, %v1679
        %v1681 = vrot.slane %v1680, 4
        %v1682 = vadd.f32 %v1680, %v1681
        %v1683 = vrot.slane %v1682, 2
        %v1684 = vadd.f32 %v1682, %v1683
        %v1685 = vrot.slane %v1684, 1
        %v1686 = vadd.f32 %v1684, %v1685
        %v1687 = vlaneseq
        %v1688 = vshrl.u32 %v1687, 7
        %v1689 = vsub.s32 6, %v1688
        %v1690 = vrot.slane %v954, %v1689
        %v1691 = vmul.f32 %v1690, %v949
        %v1692 = vmul.f32 %v1690, %v950
        %v1693 = vmul.f32 %v1691, 1.442695
        %v1694 = vpow.pop %v1693
        %v1695 = vmul.f32 %v1692, 1.442695
        %v1696 = vpow.pop %v1695
        %v1697 = vmul.f32 %v1694, %v1666
        %v1698 = vmul.f32 %v1696, %v1667
        %1699 = vset.pattern.permute.xlu0 14
        %1700 = vperm.xlu0 %1699, %v975
        %v1701 = vpop.permute.xlu0 %1700
        %1703 = vset.pattern.permute.xlu0 14
        %1704 = vperm.xlu0 %1703, %v976
        %v1705 = vpop.permute.xlu0 %1704
        %v1707 = vlaneseq
        %v1708 = vshrl.u32 %v1707, 7
        %v1709 = vsub.s32 6, %v1708
        %v1710 = vrot.slane %v956, %v1709
        %v1711 = vmul.f32 %v1701, %v1710
        %v1712 = vmul.f32 %v1705, %v1710
        %v1713 = vadd.f32 %v1697, %v1711
        %v1714 = vadd.f32 %v1698, %v1712
        %1715 = vset.pattern.permute.xlu0 14
        %1716 = vperm.xlu0 %1715, %v1009
        %v1717 = vpop.permute.xlu0 %1716
        %1719 = vset.pattern.permute.xlu0 14
        %1720 = vperm.xlu0 %1719, %v1010
        %v1721 = vpop.permute.xlu0 %1720
        %v1723 = vmul.f32 %v1717, %v1713
        %v1724 = vmul.f32 %v1721, %v1714
        %v1725 = vsel %vm652, %v1723, 0.0
        %v1726 = vsel %vm652, %v1724, 0.0
        %v1727 = vadd.f32 %v1725, %v1726
        %v1728 = vrot.slane %v1727, 4
        %v1729 = vadd.f32 %v1727, %v1728
        %v1730 = vrot.slane %v1729, 2
        %v1731 = vadd.f32 %v1729, %v1730
        %v1732 = vrot.slane %v1731, 1
        %v1733 = vadd.f32 %v1731, %v1732
        %v1734 = vlaneseq
        %v1735 = vshrl.u32 %v1734, 7
        %v1736 = vsub.s32 7, %v1735
        %v1737 = vrot.slane %v954, %v1736
        %v1738 = vmul.f32 %v1737, %v949
        %v1739 = vmul.f32 %v1737, %v950
        %v1740 = vmul.f32 %v1738, 1.442695
        %v1741 = vpow.pop %v1740
        %v1742 = vmul.f32 %v1739, 1.442695
        %v1743 = vpow.pop %v1742
        %v1744 = vmul.f32 %v1741, %v1713
        %v1745 = vmul.f32 %v1743, %v1714
        %1746 = vset.pattern.permute.xlu0 15
        %1747 = vperm.xlu0 %1746, %v975
        %v1748 = vpop.permute.xlu0 %1747
        %1750 = vset.pattern.permute.xlu0 15
        %1751 = vperm.xlu0 %1750, %v976
        %v1752 = vpop.permute.xlu0 %1751
        %v1754 = vlaneseq
        %v1755 = vshrl.u32 %v1754, 7
        %v1756 = vsub.s32 7, %v1755
        %v1757 = vrot.slane %v956, %v1756
        %v1758 = vmul.f32 %v1748, %v1757
        %v1759 = vmul.f32 %v1752, %v1757
        %v1760 = vadd.f32 %v1744, %v1758
        %v1761 = vadd.f32 %v1745, %v1759
        %1762 = vset.pattern.permute.xlu0 15
        %1763 = vperm.xlu0 %1762, %v1009
        %v1764 = vpop.permute.xlu0 %1763
        %1766 = vset.pattern.permute.xlu0 15
        %1767 = vperm.xlu0 %1766, %v1010
        %v1768 = vpop.permute.xlu0 %1767
        %v1770 = vmul.f32 %v1764, %v1760
        %v1771 = vmul.f32 %v1768, %v1761
        %v1772 = vsel %vm652, %v1770, 0.0
        %v1773 = vsel %vm652, %v1771, 0.0
        %v1774 = vadd.f32 %v1772, %v1773
        %v1775 = vrot.slane %v1774, 4
        %v1776 = vadd.f32 %v1774, %v1775
        %v1777 = vrot.slane %v1776, 2
        %v1778 = vadd.f32 %v1776, %v1777
        %v1779 = vrot.slane %v1778, 1
        %v1780 = vadd.f32 %v1778, %v1779
        %vm1781 = vcmask 1040384
        %v1782 = vsel %vm1781, %v1075, %v1122
        %v1783 = vsel %vm819, %v1782, %v1169
        %vm1784 = vcmask 1042432
        %v1785 = vsel %vm1784, %v1783, %v1216
        %vm1786 = vcmask 1043456
        %v1787 = vsel %vm1786, %v1785, %v1263
        %vm1788 = vcmask 1044480
        %v1789 = vsel %vm1788, %v1787, %v1310
        %vm1790 = vcmask 1045504
        %v1791 = vsel %vm1790, %v1789, %v1357
        %vm1792 = vcmask 1046528
        %v1793 = vsel %vm1792, %v1791, %v1404
        %v1794 = vsel %vm1781, %v1451, %v1498
        %v1795 = vsel %vm819, %v1794, %v1545
        %v1796 = vsel %vm1784, %v1795, %v1592
        %v1797 = vsel %vm1786, %v1796, %v1639
        %v1798 = vsel %vm1788, %v1797, %v1686
        %v1799 = vsel %vm1790, %v1798, %v1733
        %v1800 = vsel %vm1792, %v1799, %v1780
        %s1801 = sadd.s32 0, 8
        %s1802 = scalar_lea.vmem [#allocation2], %s1801
        %1803 = vst.msk [vmem:[%s1802] sm:$0xff] %vm652, %v1793
        %1804 = vst.msk [vmem:[%s1802 + $0x8] sm:$0xff] %vm652, %v1800
        %1805 = vst.msk [vmem:[#allocation8] sm:$0xff] %vm652, %v1760
        %1806 = vst.msk [vmem:[#allocation8 + $0x8] sm:$0xff] %vm652, %v1761
        %v1807 = vld [vmem:[#allocation2 + $0x8] sm:$0xff]
        %v1808 = vld [vmem:[#allocation2 + $0x10] sm:$0xff]
        %v1809 = vld [vmem:[%s10] sm:$0x1]
        %v1811 = vlaneseq
        %v1812 = vshrl.u32 %v1811, 7
        %v1813 = vsub.s32 0, %v1812
        %v1814 = vrot.slane %v1809, %v1813
        %v1816 = vmul.f32 %v1814, %v713
        %v1817 = vmul.f32 %v1814, %v714
        %v1818 = vadd.f32 %v1807, %v1816
        %v1819 = vadd.f32 %v1808, %v1817
        %v1820 = vsub.f32 0.0, %v645
        %v1821 = vsub.f32 0.0, %v648
        %v1822 = vmul.f32 %v1820, 1.442695
        %v1823 = vpow.pop %v1822
        %v1824 = vmul.f32 %v1821, 1.442695
        %v1825 = vpow.pop %v1824
        %v1826 = vadd.f32 %v1823, 1.0
        %v1827 = vadd.f32 %v1825, 1.0
        %v1828 = vrcp.pop %v1826
        %v1829 = vrcp.pop %v1827
        %v1830 = vmul.f32 %v645, %v1828
        %v1831 = vmul.f32 %v648, %v1829
        %1834 = vrot.lane.b32.xlu0 %v1830, 64
        %v1835 = vpop.permute.xlu0 %1834
        %1836 = vrot.lane.b32.xlu0 %v1831, 64
        %v1837 = vpop.permute.xlu0 %1836
        %v1840 = vmul.f32 %v1818, %v1835
        %v1841 = vmul.f32 %v1819, %v1837
        %v1842 = vpack.c.bf16 %v1841, %v1840
        %v1843 = vld [vmem:[%s11] sm:$0xf]
        %v1844 = vld [vmem:[%s11 + $0x4] sm:$0xf]
        %v1845 = vld [vmem:[%s11 + $0x8] sm:$0xf]
        %v1846 = vld [vmem:[%s11 + $0xc] sm:$0xf]
        %v1847 = vld [vmem:[%s11 + $0x10] sm:$0xf]
        %v1848 = vld [vmem:[%s11 + $0x14] sm:$0xf]
        %v1849 = vld [vmem:[%s11 + $0x18] sm:$0xf]
        %v1850 = vld [vmem:[%s11 + $0x1c] sm:$0xf]
        %v1859 = vunpack.c.l.b16 %v1843
        %v1860 = vunpack.c.l.b16 %v1844
        %v1861 = vunpack.c.l.b16 %v1845
        %v1862 = vunpack.c.l.b16 %v1846
        %v1863 = vunpack.c.l.b16 %v1847
        %v1864 = vunpack.c.l.b16 %v1848
        %v1865 = vunpack.c.l.b16 %v1849
        %v1866 = vunpack.c.l.b16 %v1850
        %v1867 = vpack.c.b16 %v1860, %v1859
        %v1868 = vpack.c.b16 %v1862, %v1861
        %v1869 = vpack.c.b16 %v1864, %v1863
        %v1870 = vpack.c.b16 %v1866, %v1865
        %v1876 = vsel %vm652, %v1842, 0
        %1878 = vmatprep.subr.bf16.mxu0 0
        %1879 = vmatpush1.bf16.msra.mxu0 0
        %1880 = vmatprep.subr.bf16.mxu0 0
        %1881 = vmatpush1.bf16.msra.mxu0 0
        %1882 = vmatprep.subr.bf16.mxu0 0
        %1883 = vmatpush1.bf16.msra.mxu0 0
        %1884 = vmatprep.subr.bf16.mxu0 0
        %1885 = vmatpush1.bf16.msra.mxu0 0
        %1886 = vmatprep.subr.bf16.mxu0 0
        %1887 = vmatpush1.bf16.msra.mxu0 %v1870
        %1888 = vmatprep.subr.bf16.mxu0 0
        %1889 = vmatpush1.bf16.msra.mxu0 %v1869
        %1890 = vmatprep.subr.bf16.mxu0 0
        %1891 = vmatpush1.bf16.msra.mxu0 %v1868
        %1892 = vmatprep.subr.bf16.mxu0 0
        %1893 = vmatpush1.bf16.msra.mxu0 %v1867
        %1894 = vmatprep.subr.bf16.mxu0 0
        %1895 = vmatpush2.bf16.msra.mxu0 0
        %1896 = vmatprep.subr.bf16.mxu0 0
        %1897 = vmatpush2.bf16.msra.mxu0 0
        %1898 = vmatprep.subr.bf16.mxu0 0
        %1899 = vmatpush2.bf16.msra.mxu0 0
        %1900 = vmatprep.subr.bf16.mxu0 0
        %1901 = vmatpush2.bf16.msra.mxu0 0
        %1902 = vmatprep.subr.bf16.mxu0 0
        %1903 = vmatpush2.bf16.msra.mxu0 0
        %1904 = vmatprep.subr.bf16.mxu0 0
        %1905 = vmatpush2.bf16.msra.mxu0 0
        %1906 = vmatprep.subr.bf16.mxu0 0
        %1907 = vmatpush2.bf16.msra.mxu0 0
        %1908 = vmatprep.subr.bf16.mxu0 0
        %1909 = vmatpush2.bf16.msra.mxu0 0
        %1910 = vmatprep.mubr.bf16.mxu0 0
        %1911 = vmatmul.mubr.bf16.gmra.mxu0 %v1876
        %v1912 = vpop.f32.mrf.mxu0
        %v1913 = vadd.f32 %v542, %v1912
        %v1914 = vpop.f32.mrf.mxu0
        %v1915 = vpop.f32.mrf.mxu0
        %v1916 = vadd.f32 %v543, %v1915
        %v1917 = vpop.f32.mrf.mxu0
        %1918 = vdwg.mxu0
        %1919 = vst.msk [vmem:[%s521] sm:$0xff] %vm544, %v1913
        %1920 = vst.msk [vmem:[%s521 + $0x8] sm:$0xff] %vm544, %v1916
        %s1921 = sand.u32 %s311, 1
        %s1922 = scalar_lea.sflag [#allocation11], %s1921
        %s1923 = sand.u32 %s311, 1
        %s1924 = smul.addr %s1923, 16
        %s1925 = scalar_lea.vmem [#allocation21], %s1924
        // Predicated region
        $region101: #{tpu_custom_call.1} parent=67 // pred_check
          %p1926 = pneg %p321
        $region102: #{tpu_custom_call.1} parent=67 // pred_check_branch
          %1928 = sbr.rel (%p1926) target = $region104
        $region103: #{tpu_custom_call.1} parent=67 // pred_region
          %s1929 = smul.u32 2, %s35
          %s1931 = ssub.s32 256, 256
          %1932 = vsyncadd %s1922, %s1931
          %s1933 = smul.addr %s34, 2
          %s1934 = sadd.s32 %s1929, %s1933
          %s1935 = smul.addr %s1934, 128
          %s1936 = scalar_lea.hbm %s12, %s1935
          %s1937 = sshll.u32 %s1925, 4
          %s1938 = int_to_ptr.vmem [resolvable:$true] %s1937
          %1943 = dma.vmem_to_hbm [thread:$0]  %s1938, 256, %s1936, %s1922, 128, 128, 8
        $region104: #{tpu_custom_call.1} parent=67 // pred_fallthru
          _
      $region68: #{tpu_custom_call.1} parent=5 // pred_fallthru
        _
      %p1944 = scmp.le.s32.totalorder 2, %s25
      // Predicated region
      $region105: #{tpu_custom_call.1} parent=5 // pred_check
        %p1945 = pneg %p1944
      $region106: #{tpu_custom_call.1} parent=5 // pred_check_branch
        %1947 = sbr.rel (%p1945) target = $region108
      $region107: #{tpu_custom_call.1} parent=5 // pred_region
        %s1948 = ssub.s32 %s25, 2
        // Predicated region
        $region109: #{tpu_custom_call.1} parent=107 // pred_check
          %p1949 = pneg %p327
        $region110: #{tpu_custom_call.1} parent=107 // pred_check_branch
          %1951 = sbr.rel (%p1949) target = $region112
        $region111: #{tpu_custom_call.1} parent=107 // pred_region
          %s1952 = sand.u32 %s312, 1
          %s1953 = scalar_lea.sflag [#allocation11], %s1952
          %s1954 = sand.u32 %s312, 1
          %s1955 = smul.addr %s1954, 16
          %s1956 = scalar_lea.vmem [#allocation21], %s1955
          %1957 = dma.done %s1953, 256
        $region112: #{tpu_custom_call.1} parent=107 // pred_fallthru
          _
      $region108: #{tpu_custom_call.1} parent=5 // pred_fallthru
        _
    $region6: #{tpu_custom_call.1} parent=1 // loop_footer
      %s29 = sadd.s32 1, %s25
    $region7: #{tpu_custom_call.1} parent=1 // loop_footer_branch
      %24 = sbr.rel target = $region3
    $region8: #{tpu_custom_call.1} parent=1 // loop_exit
      _
    %1958 = vsyncpa [#allocation10], 1
    %s1959 = scalar_lea.sflag [#allocation10], 1
    %1960 = vsyncpa %s1959, 1
    %1961 = vsyncpa [#allocation13], 1
    %1962 = vsyncpa [#allocation16], 1
    %1963 = vsyncpa [#allocation19], 1
    %1964 = vsyncpa [#allocation11], 1
    %s1965 = scalar_lea.sflag [#allocation11], 1
    %1966 = vsyncpa %s1965, 1

</llo_original>
